<compile_context>
chip_gen: v5e
topology: v5e:2x2
jax: 0.10.0
libtpu: 0.0.40
codegen_flags: <defaults>
</compile_context>

<pallas_src>
import functools

import jax
import jax.numpy as jnp
from jax.experimental import pallas as pl
from jax.experimental.pallas import tpu as pltpu


# ------------------------------------------------------------------ helpers ---

def _full_spec(shape):
    # Whole-array block; index_map is constant so the block stays resident
    # across grid iterations (no re-DMA).  Works with or without a grid.
    return pl.BlockSpec(tuple(shape), lambda *args: (0,) * len(shape))


def _layer_spec(shape):
    # Stacked per-layer parameter: block (1, *shape) selected by the layer-grid
    # index; the pipeline double-buffers layer l+1's weights while l computes.
    return pl.BlockSpec((1,) + tuple(shape), lambda l: (l,) + (0,) * len(shape))


def _gelu(x):
    # tanh-approx GELU (matches BERT's gelu closely, EUP-friendly).
    # TODO(synk): HF BERT default is exact erf-GELU; tanh approx deviates slightly.
    return 0.5 * x * (1.0 + jnp.tanh(0.7978845608028654 * (x + 0.044715 * x * x * x)))


def _layernorm_f32(y, g, b, eps):
    mu = jnp.mean(y, axis=-1, keepdims=True)
    var = jnp.mean((y - mu) * (y - mu), axis=-1, keepdims=True)
    return (y - mu) * jax.lax.rsqrt(var + eps) * g + b


# ------------------------------------------------------------------ kernels ---

def _encoder_kernel(x_ref, embg_ref, embb_ref, bias_ref,
                    wqkv_ref, bqkv_ref, wo_ref, bo_ref, ln1g_ref, ln1b_ref,
                    w1_ref, b1_ref, w2_ref, b2_ref, ln2g_ref, ln2b_ref,
                    o_ref, *, B, S, H, dh, eps):
    """One grid step == one transformer layer.

    The (B*S, D) activation is carried in the resident output block o_ref
    (constant out index_map across the layer axis).  At l == 0 the embedding
    LayerNorm initializes the carry.
    """
    D = H * dh
    M = B * S

    @pl.when(pl.program_id(0) == 0)
    def _():
        x0 = x_ref[...].astype(jnp.float32)
        o_ref[...] = _layernorm_f32(
            x0, embg_ref[...], embb_ref[...], eps).astype(o_ref.dtype)

    x = o_ref[...].astype(jnp.float32)                       # (M, D) residual stream
    x_bf = x.astype(jnp.bfloat16)

    # ---- attention sub-block: fused QKV -> per-head attn -> fused out-proj ----
    qkv = jnp.dot(x_bf, wqkv_ref[0],
                  preferred_element_type=jnp.float32) + bqkv_ref[0]
    qkv = qkv.astype(jnp.bfloat16)                           # cast once, slice in bf16

    scale = 1.0 / float(dh) ** 0.5
    # Hoisted: materialize the additive key mask once, reused by every head.
    bias = jnp.broadcast_to(bias_ref[...], (B, S, S)).astype(jnp.float32)
    wo = wo_ref[0]                                           # (D, D) bf16, loaded once

    attn = jnp.zeros((M, D), jnp.float32)
    for h in range(H):                                       # static unroll
        qh = qkv[:, h * dh:(h + 1) * dh].reshape(B, S, dh)
        kh = qkv[:, D + h * dh:D + (h + 1) * dh].reshape(B, S, dh)
        vh = qkv[:, 2 * D + h * dh:2 * D + (h + 1) * dh].reshape(B, S, dh)

        s = jnp.einsum('bqd,bkd->bqk', qh, kh,
                       preferred_element_type=jnp.float32) * scale + bias
        m = jnp.max(s, axis=-1, keepdims=True)
        p = jnp.exp(s - m)
        p = p * pl.reciprocal(jnp.sum(p, axis=-1, keepdims=True), approx=True)

        oh = jnp.einsum('bqk,bkd->bqd', p.astype(jnp.bfloat16), vh,
                        preferred_element_type=jnp.float32)
        # Fold the head concat into the output projection: accumulate partials.
        attn = attn + jnp.dot(oh.reshape(M, dh).astype(jnp.bfloat16),
                              wo[h * dh:(h + 1) * dh, :],
                              preferred_element_type=jnp.float32)

    y = x + attn + bo_ref[0]
    y = _layernorm_f32(y, ln1g_ref[0], ln1b_ref[0], eps)

    # ---- FFN sub-block: w1 + GELU + w2 + residual + LN2 ----
    hmid = jnp.dot(y.astype(jnp.bfloat16), w1_ref[0],
                   preferred_element_type=jnp.float32) + b1_ref[0]
    hmid = _gelu(hmid)
    z = jnp.dot(hmid.astype(jnp.bfloat16), w2_ref[0],
                preferred_element_type=jnp.float32) + b2_ref[0]
    z = y + z
    o_ref[...] = _layernorm_f32(z, ln2g_ref[0], ln2b_ref[0], eps).astype(o_ref.dtype)


def _pool_head_kernel(cls_ref, wp_ref, bp_ref, wc_ref, bc_ref, o_ref):
    """Fused: pooler (tanh linear) + classifier + softmax over classes.

    The [1, 0, 2] column permutation is folded into wc/bc by the wrapper.
    """
    pooled = jnp.tanh(
        jnp.dot(cls_ref[...].astype(jnp.bfloat16), wp_ref[...],
                preferred_element_type=jnp.float32) + bp_ref[...])
    logits = jnp.dot(pooled.astype(jnp.bfloat16), wc_ref[...],
                     preferred_element_type=jnp.float32) + bc_ref[...]
    m = jnp.max(logits, axis=-1, keepdims=True)
    e = jnp.exp(logits - m)
    o_ref[...] = (e / jnp.sum(e, axis=-1, keepdims=True)).astype(o_ref.dtype)


# ---------------------------------------------------------- pallas wrappers ---

def encoder_forward(x_emb, params, attn_bias, *, B, S, H, dh, eps=1e-12):
    D = H * dh
    M = B * S
    L = params["wqkv"].shape[0]
    F = params["w1"].shape[2]

    kernel = functools.partial(_encoder_kernel, B=B, S=S, H=H, dh=dh, eps=eps)
    return pl.pallas_call(
        kernel,
        out_shape=jax.ShapeDtypeStruct((M, D), jnp.bfloat16),   # bf16 at HBM boundary
        grid=(L,),
        in_specs=[
            _full_spec((M, D)),            # embedding sum (resident)
            _full_spec((1, D)),            # emb LN gamma
            _full_spec((1, D)),            # emb LN beta
            _full_spec((B, 1, S)),         # additive attention mask
            _layer_spec((D, 3 * D)),       # wqkv
            _layer_spec((1, 3 * D)),       # bqkv
            _layer_spec((D, D)),           # wo
            _layer_spec((1, D)),           # bo
            _layer_spec((1, D)),           # ln1 gamma
            _layer_spec((1, D)),           # ln1 beta
            _layer_spec((D, F)),           # w1
            _layer_spec((1, F)),           # b1
            _layer_spec((F, D)),           # w2
            _layer_spec((1, D)),           # b2
            _layer_spec((1, D)),           # ln2 gamma
            _layer_spec((1, D)),           # ln2 beta
        ],
        out_specs=_full_spec((M, D)),      # constant index_map -> resident carry
        compiler_params=pltpu.CompilerParams(
            dimension_semantics=("arbitrary",),    # layer axis is sequential
            vmem_limit_bytes=32 * 1024 * 1024,     # re-derive per-tile at real dims
        ),
    )(x_emb, params["emb_ln_g"], params["emb_ln_b"], attn_bias,
      params["wqkv"], params["bqkv"], params["wo"], params["bo"],
      params["ln1_g"], params["ln1_b"],
      params["w1"], params["b1"], params["w2"], params["b2"],
      params["ln2_g"], params["ln2_b"])


def pool_head(cls, wp, bp, wc, bc):
    B, D = cls.shape
    C = wc.shape[1]
    return pl.pallas_call(
        _pool_head_kernel,
        out_shape=jax.ShapeDtypeStruct((B, C), jnp.float32),
        in_specs=[_full_spec((B, D)),
                  _full_spec((D, D)), _full_spec((1, D)),
                  _full_spec((D, C)), _full_spec((1, C))],
        out_specs=_full_spec((B, C)),
    )(cls, wp, bp.reshape(1, D), wc, bc.reshape(1, C))


# -------------------------------------------------------------- model (glue) ---

def init_params(key, vocab, max_pos, D, H, F, L, C):
    keys = jax.random.split(key, 5 + L)

    def norm(k, shape, dtype=jnp.float32):
        return (0.02 * jax.random.normal(k, shape)).astype(dtype)

    wdt = jnp.bfloat16  # MXU-facing weights in bf16 (f32 accumulation in-kernel)
    wqkv, wo, w1, w2 = [], [], [], []
    for l in range(L):
        lk = jax.random.split(keys[5 + l], 6)
        wq, wk, wv = norm(lk[0], (D, D)), norm(lk[1], (D, D)), norm(lk[2], (D, D))
        # Q/K/V fused into a single (D, 3D) weight -> one matmul per layer.
        wqkv.append(jnp.concatenate([wq, wk, wv], axis=1).astype(wdt))
        wo.append(norm(lk[3], (D, D), wdt))
        w1.append(norm(lk[4], (D, F), wdt))
        w2.append(norm(lk[5], (F, D), wdt))

    return {
        "tok_emb": norm(keys[0], (vocab, D)),
        "pos_emb": norm(keys[1], (max_pos, D)),
        "type_emb": norm(keys[2], (2, D)),
        "emb_ln_g": jnp.ones((1, D), jnp.float32),
        "emb_ln_b": jnp.zeros((1, D), jnp.float32),
        "wp": norm(keys[3], (D, D), wdt), "bp": jnp.zeros((D,), jnp.float32),
        "wc": norm(keys[4], (D, C), wdt), "bc": jnp.zeros((C,), jnp.float32),
        # Per-layer weights stacked on a leading L axis -> one encoder pallas_call.
        "wqkv": jnp.stack(wqkv), "bqkv": jnp.zeros((L, 1, 3 * D), jnp.float32),
        "wo": jnp.stack(wo), "bo": jnp.zeros((L, 1, D), jnp.float32),
        "ln1_g": jnp.ones((L, 1, D), jnp.float32),
        "ln1_b": jnp.zeros((L, 1, D), jnp.float32),
        "w1": jnp.stack(w1), "b1": jnp.zeros((L, 1, F), jnp.float32),
        "w2": jnp.stack(w2), "b2": jnp.zeros((L, 1, D), jnp.float32),
        "ln2_g": jnp.ones((L, 1, D), jnp.float32),
        "ln2_b": jnp.zeros((L, 1, D), jnp.float32),
    }


@functools.partial(jax.jit, static_argnames=("num_heads",))
def bert_snli_forward(params, input_ids, token_type_ids, attention_mask, *, num_heads):
    """BERT-style encoder + pooler + 3-way head, then logits[:, [1,0,2]] softmax."""
    # TODO(synk): BertTokenizer string tokenization / inv_dict lookup /
    # adjustBatchInputLen padding and checkpoint loading have no kernel
    # equivalent; the kernel consumes already-tokenized ids, segment ids and an
    # attention mask directly.
    B, S = input_ids.shape
    D = params["tok_emb"].shape[1]
    H = num_heads
    dh = D // H

    # Embedding lookups (gather) stay in XLA glue; everything dense is Pallas.
    x = (params["tok_emb"][input_ids]
         + params["pos_emb"][:S][None, :, :]
         + params["type_emb"][token_type_ids])
    x = x.reshape(B * S, D).astype(jnp.bfloat16)   # bf16 at the kernel boundary

    # Additive attention-mask bias: 0 for real tokens, -1e9 for padding keys.
    attn_bias = ((1.0 - attention_mask.astype(jnp.float32)) * -1e9)[:, None, :]

    # Whole encoder (emb-LN + L transformer layers) in one kernel, grid=(L,).
    x = encoder_forward(x, params, attn_bias, B=B, S=S, H=H, dh=dh)

    cls = x.reshape(B, S, D)[:, 0, :]              # [CLS] token

    # logits[:, [1, 0, 2]] then Softmax(dim=1): fold the column permutation into
    # the classifier weights/bias, fuse pooler + matmul + softmax in one kernel.
    perm = jnp.array([1, 0, 2], dtype=jnp.int32)
    w_perm = jnp.take(params["wc"], perm, axis=1)
    b_perm = jnp.take(params["bc"], perm, axis=0)
    return pool_head(cls, params["wp"], params["bp"], w_perm, b_perm)


# --------------------------------------------------------------------- main ---

if __name__ == "__main__":
    B, S = 2, 16           # batch, sequence length (after tokenization/padding)
    D, H, F, L = 128, 4, 256, 2   # lane-dense toy dims (last dims multiples of 128)
    VOCAB, MAX_POS, C = 128, 32, 3

    params = init_params(jax.random.PRNGKey(0), VOCAB, MAX_POS, D, H, F, L, C)

    input_ids = jax.random.randint(jax.random.PRNGKey(1), (B, S), 5, VOCAB,
                                   dtype=jnp.int32)
    # Emulate [CLS] premise [SEP] | hypothesis [SEP] segments: first half = 0,
    # second half = 1; last token of row 1 is padding (masked out).
    token_type_ids = jnp.broadcast_to(
        (jnp.arange(S)[None, :] >= (S // 2)).astype(jnp.int32), (B, S))
    attention_mask = jnp.ones((B, S), jnp.int32).at[1, S - 1].set(0)

    probs = bert_snli_forward(params, input_ids, token_type_ids, attention_mask,
                              num_heads=H)
    probs = jax.block_until_ready(probs)

    assert probs.shape == (B, C)
    assert bool(jnp.all(jnp.isfinite(probs)))
    assert bool(jnp.allclose(jnp.sum(probs, axis=1), 1.0, atol=1e-5))
    print("KERNEL_OK")
</pallas_src>

<mosaic_0001>
module attributes {stable_mosaic.version = 11 : i64} {
  func.func @_encoder_kernel(%arg0: i32, %arg1: memref<32x128xbf16, #tpu.memory_space<vmem>>, %arg2: memref<1x128xf32, #tpu.memory_space<vmem>>, %arg3: memref<1x128xf32, #tpu.memory_space<vmem>>, %arg4: memref<2x1x16xf32, #tpu.memory_space<vmem>>, %arg5: memref<1x128x384xbf16, #tpu.memory_space<vmem>>, %arg6: memref<1x1x384xf32, #tpu.memory_space<vmem>>, %arg7: memref<1x128x128xbf16, #tpu.memory_space<vmem>>, %arg8: memref<1x1x128xf32, #tpu.memory_space<vmem>>, %arg9: memref<1x1x128xf32, #tpu.memory_space<vmem>>, %arg10: memref<1x1x128xf32, #tpu.memory_space<vmem>>, %arg11: memref<1x128x256xbf16, #tpu.memory_space<vmem>>, %arg12: memref<1x1x256xf32, #tpu.memory_space<vmem>>, %arg13: memref<1x256x128xbf16, #tpu.memory_space<vmem>>, %arg14: memref<1x1x128xf32, #tpu.memory_space<vmem>>, %arg15: memref<1x1x128xf32, #tpu.memory_space<vmem>>, %arg16: memref<1x1x128xf32, #tpu.memory_space<vmem>>, %arg17: memref<32x128xbf16, #tpu.memory_space<vmem>>) attributes {dimension_semantics = [#tpu.dimension_semantics<arbitrary>], iteration_bounds = array<i64: 2>, scalar_prefetch = 0 : i64, scratch_operands = 0 : i64, tpu.core_type = #tpu.core_type<tc>, window_params = [{pipeline_mode = #tpu.pipeline_mode<synchronous>, transform_indices = @transform_0, window_bounds = array<i64: 32, 128>}, {pipeline_mode = #tpu.pipeline_mode<synchronous>, transform_indices = @transform_1, window_bounds = array<i64: 1, 128>}, {pipeline_mode = #tpu.pipeline_mode<synchronous>, transform_indices = @transform_2, window_bounds = array<i64: 1, 128>}, {pipeline_mode = #tpu.pipeline_mode<synchronous>, transform_indices = @transform_3, window_bounds = array<i64: 2, 1, 16>}, {transform_indices = @transform_4, window_bounds = array<i64: 1, 128, 384>}, {transform_indices = @transform_5, window_bounds = array<i64: 1, 1, 384>}, {transform_indices = @transform_6, window_bounds = array<i64: 1, 128, 128>}, {transform_indices = @transform_7, window_bounds = array<i64: 1, 1, 128>}, {transform_indices = @transform_8, window_bounds = array<i64: 1, 1, 128>}, {transform_indices = @transform_9, window_bounds = array<i64: 1, 1, 128>}, {transform_indices = @transform_10, window_bounds = array<i64: 1, 128, 256>}, {transform_indices = @transform_11, window_bounds = array<i64: 1, 1, 256>}, {transform_indices = @transform_12, window_bounds = array<i64: 1, 256, 128>}, {transform_indices = @transform_13, window_bounds = array<i64: 1, 1, 128>}, {transform_indices = @transform_14, window_bounds = array<i64: 1, 1, 128>}, {transform_indices = @transform_15, window_bounds = array<i64: 1, 1, 128>}, {pipeline_mode = #tpu.pipeline_mode<synchronous>, transform_indices = @transform_16, window_bounds = array<i64: 32, 128>}]} {
    %c0_i32 = arith.constant 0 : i32
    %0 = arith.cmpi eq, %arg0, %c0_i32 : i32
    %1 = arith.extui %0 : i1 to i32
    %c0_i32_0 = arith.constant 0 : i32
    %2 = arith.cmpi ne, %1, %c0_i32_0 : i32
    scf.if %2 {
      %c0_84 = arith.constant 0 : index
      %c0_85 = arith.constant 0 : index
      %221 = vector.load %arg1[%c0_84, %c0_85] : memref<32x128xbf16, #tpu.memory_space<vmem>>, vector<32x128xbf16>
      %222 = arith.extf %221 : vector<32x128xbf16> to vector<32x128xf32>
      %c0_86 = arith.constant 0 : index
      %c0_87 = arith.constant 0 : index
      %223 = vector.load %arg2[%c0_86, %c0_87] : memref<1x128xf32, #tpu.memory_space<vmem>>, vector<1x128xf32>
      %c0_88 = arith.constant 0 : index
      %c0_89 = arith.constant 0 : index
      %224 = vector.load %arg3[%c0_88, %c0_89] : memref<1x128xf32, #tpu.memory_space<vmem>>, vector<1x128xf32>
      %cst_90 = arith.constant dense<0.000000e+00> : vector<32xf32>
      %225 = vector.multi_reduction <add>, %222, %cst_90 [1] : vector<32x128xf32> to vector<32xf32>
      %226 = vector.shape_cast %225 : vector<32xf32> to vector<32x1xf32>
      %cst_91 = arith.constant 1.280000e+02 : f32
      %227 = vector.broadcast %cst_91 : f32 to vector<32x1xf32>
      %228 = arith.divf %226, %227 : vector<32x1xf32>
      %229 = vector.broadcast %228 : vector<32x1xf32> to vector<32x128xf32>
      %230 = arith.subf %222, %229 : vector<32x128xf32>
      %231 = vector.broadcast %228 : vector<32x1xf32> to vector<32x128xf32>
      %232 = arith.subf %222, %231 : vector<32x128xf32>
      %233 = arith.mulf %230, %232 : vector<32x128xf32>
      %cst_92 = arith.constant dense<0.000000e+00> : vector<32xf32>
      %234 = vector.multi_reduction <add>, %233, %cst_92 [1] : vector<32x128xf32> to vector<32xf32>
      %235 = vector.shape_cast %234 : vector<32xf32> to vector<32x1xf32>
      %cst_93 = arith.constant 1.280000e+02 : f32
      %236 = vector.broadcast %cst_93 : f32 to vector<32x1xf32>
      %237 = arith.divf %235, %236 : vector<32x1xf32>
      %238 = vector.broadcast %228 : vector<32x1xf32> to vector<32x128xf32>
      %239 = arith.subf %222, %238 : vector<32x128xf32>
      %cst_94 = arith.constant 9.99999996E-13 : f32
      %240 = vector.broadcast %cst_94 : f32 to vector<32x1xf32>
      %241 = arith.addf %237, %240 : vector<32x1xf32>
      %242 = math.rsqrt %241 : vector<32x1xf32>
      %243 = vector.broadcast %242 : vector<32x1xf32> to vector<32x128xf32>
      %244 = arith.mulf %239, %243 : vector<32x128xf32>
      %245 = vector.broadcast %223 : vector<1x128xf32> to vector<32x128xf32>
      %246 = arith.mulf %244, %245 : vector<32x128xf32>
      %247 = vector.broadcast %224 : vector<1x128xf32> to vector<32x128xf32>
      %248 = arith.addf %246, %247 : vector<32x128xf32>
      %249 = arith.truncf %248 : vector<32x128xf32> to vector<32x128xbf16>
      %c0_95 = arith.constant 0 : index
      %c0_96 = arith.constant 0 : index
      %250 = vector.load %arg17[%c0_95, %c0_96] : memref<32x128xbf16, #tpu.memory_space<vmem>>, vector<32x128xbf16>
      tpu.vector_store %arg17[%c0_95, %c0_96], %249 {strides = array<i32>} : memref<32x128xbf16, #tpu.memory_space<vmem>>, vector<32x128xbf16>,
    } else {
    }
    %c0 = arith.constant 0 : index
    %c0_1 = arith.constant 0 : index
    %3 = vector.load %arg17[%c0, %c0_1] : memref<32x128xbf16, #tpu.memory_space<vmem>>, vector<32x128xbf16>
    %4 = arith.extf %3 : vector<32x128xbf16> to vector<32x128xf32>
    %5 = arith.truncf %4 : vector<32x128xf32> to vector<32x128xbf16>
    %c0_2 = arith.constant 0 : index
    %c0_3 = arith.constant 0 : index
    %c0_4 = arith.constant 0 : index
    %6 = vector.load %arg5[%c0_2, %c0_3, %c0_4] : memref<1x128x384xbf16, #tpu.memory_space<vmem>>, vector<1x128x384xbf16>
    %7 = vector.shape_cast %6 : vector<1x128x384xbf16> to vector<128x384xbf16>
    %cst = arith.constant dense<0.000000e+00> : vector<32x384xf32>
    %8 = tpu.matmul %5, %7, %cst {dimension_numbers = #tpu.dot_dimension_numbers<[1], [0], [0], [1], [0, 0, 1, 1], [], []>} : vector<32x128xbf16>, vector<128x384xbf16>, vector<32x384xf32> -> vector<32x384xf32>
    %c0_5 = arith.constant 0 : index
    %c0_6 = arith.constant 0 : index
    %c0_7 = arith.constant 0 : index
    %9 = vector.load %arg6[%c0_5, %c0_6, %c0_7] : memref<1x1x384xf32, #tpu.memory_space<vmem>>, vector<1x1x384xf32>
    %10 = vector.shape_cast %9 : vector<1x1x384xf32> to vector<1x384xf32>
    %11 = vector.broadcast %10 : vector<1x384xf32> to vector<32x384xf32>
    %12 = arith.addf %8, %11 : vector<32x384xf32>
    %13 = arith.truncf %12 : vector<32x384xf32> to vector<32x384xbf16>
    %c0_8 = arith.constant 0 : index
    %c0_9 = arith.constant 0 : index
    %c0_10 = arith.constant 0 : index
    %14 = vector.load %arg4[%c0_8, %c0_9, %c0_10] : memref<2x1x16xf32, #tpu.memory_space<vmem>>, vector<2x1x16xf32>
    %15 = vector.shape_cast %14 : vector<2x1x16xf32> to vector<2x1x16xf32>
    %16 = vector.broadcast %15 : vector<2x1x16xf32> to vector<2x16x16xf32>
    %c0_11 = arith.constant 0 : index
    %c0_12 = arith.constant 0 : index
    %c0_13 = arith.constant 0 : index
    %17 = vector.load %arg7[%c0_11, %c0_12, %c0_13] : memref<1x128x128xbf16, #tpu.memory_space<vmem>>, vector<1x128x128xbf16>
    %18 = vector.shape_cast %17 : vector<1x128x128xbf16> to vector<128x128xbf16>
    %cst_14 = arith.constant 0.000000e+00 : f32
    %19 = vector.broadcast %cst_14 : f32 to vector<32x128xf32>
    %20 = vector.extract_strided_slice %13 {offsets = [0, 0], sizes = [32, 32], strides = [1, 1]} : vector<32x384xbf16> to vector<32x32xbf16>
    %21 = vector.shape_cast %20 : vector<32x32xbf16> to vector<2x16x32xbf16>
    %22 = vector.extract_strided_slice %13 {offsets = [0, 128], sizes = [32, 32], strides = [1, 1]} : vector<32x384xbf16> to vector<32x32xbf16>
    %23 = vector.shape_cast %22 : vector<32x32xbf16> to vector<2x16x32xbf16>
    %24 = vector.extract_strided_slice %13 {offsets = [0, 256], sizes = [32, 32], strides = [1, 1]} : vector<32x384xbf16> to vector<32x32xbf16>
    %25 = vector.shape_cast %24 : vector<32x32xbf16> to vector<2x16x32xbf16>
    "tpu.trace_start"() <{level = 10 : i32, message = "bqd,bkd->bqk"}> : () -> ()
    %cst_15 = arith.constant dense<0.000000e+00> : vector<2x16x16xf32>
    %26 = tpu.matmul %21, %23, %cst_15 {dimension_numbers = #tpu.dot_dimension_numbers<[2], [2], [1], [1], [0, 0, 0, 1, 1, 1], [0], [0]>} : vector<2x16x32xbf16>, vector<2x16x32xbf16>, vector<2x16x16xf32> -> vector<2x16x16xf32>
    "tpu.trace_stop"() : () -> ()
    %cst_16 = arith.constant 0.176776692 : f32
    %27 = vector.broadcast %cst_16 : f32 to vector<2x16x16xf32>
    %28 = arith.mulf %26, %27 : vector<2x16x16xf32>
    %29 = arith.addf %28, %16 : vector<2x16x16xf32>
    %cst_17 = arith.constant dense<0xFF800000> : vector<2x16xf32>
    %30 = vector.multi_reduction <maximumf>, %29, %cst_17 [2] : vector<2x16x16xf32> to vector<2x16xf32>
    %31 = vector.shape_cast %30 : vector<2x16xf32> to vector<2x16x1xf32>
    %32 = vector.broadcast %31 : vector<2x16x1xf32> to vector<2x16x16xf32>
    %33 = arith.subf %29, %32 : vector<2x16x16xf32>
    %34 = math.exp %33 : vector<2x16x16xf32>
    %cst_18 = arith.constant dense<0.000000e+00> : vector<2x16xf32>
    %35 = vector.multi_reduction <add>, %34, %cst_18 [2] : vector<2x16x16xf32> to vector<2x16xf32>
    %36 = vector.shape_cast %35 : vector<2x16xf32> to vector<2x16x1xf32>
    %37 = tpu.reciprocal %36 {approx = true} : vector<2x16x1xf32> -> vector<2x16x1xf32>
    %38 = vector.broadcast %37 : vector<2x16x1xf32> to vector<2x16x16xf32>
    %39 = arith.mulf %34, %38 : vector<2x16x16xf32>
    %40 = arith.truncf %39 : vector<2x16x16xf32> to vector<2x16x16xbf16>
    "tpu.trace_start"() <{level = 10 : i32, message = "bqk,bkd->bqd"}> : () -> ()
    %cst_19 = arith.constant dense<0.000000e+00> : vector<2x16x32xf32>
    %41 = tpu.matmul %40, %25, %cst_19 {dimension_numbers = #tpu.dot_dimension_numbers<[2], [1], [1], [2], [0, 0, 0, 1, 1, 2], [0], [0]>} : vector<2x16x16xbf16>, vector<2x16x32xbf16>, vector<2x16x32xf32> -> vector<2x16x32xf32>
    "tpu.trace_stop"() : () -> ()
    %42 = vector.shape_cast %41 : vector<2x16x32xf32> to vector<32x32xf32>
    %43 = arith.truncf %42 : vector<32x32xf32> to vector<32x32xbf16>
    %44 = vector.extract_strided_slice %18 {offsets = [0, 0], sizes = [32, 128], strides = [1, 1]} : vector<128x128xbf16> to vector<32x128xbf16>
    %cst_20 = arith.constant dense<0.000000e+00> : vector<32x128xf32>
    %45 = tpu.matmul %43, %44, %cst_20 {dimension_numbers = #tpu.dot_dimension_numbers<[1], [0], [0], [1], [0, 0, 1, 1], [], []>} : vector<32x32xbf16>, vector<32x128xbf16>, vector<32x128xf32> -> vector<32x128xf32>
    %46 = arith.addf %19, %45 : vector<32x128xf32>
    %47 = vector.extract_strided_slice %13 {offsets = [0, 32], sizes = [32, 32], strides = [1, 1]} : vector<32x384xbf16> to vector<32x32xbf16>
    %48 = vector.shape_cast %47 : vector<32x32xbf16> to vector<2x16x32xbf16>
    %49 = vector.extract_strided_slice %13 {offsets = [0, 160], sizes = [32, 32], strides = [1, 1]} : vector<32x384xbf16> to vector<32x32xbf16>
    %50 = vector.shape_cast %49 : vector<32x32xbf16> to vector<2x16x32xbf16>
    %51 = vector.extract_strided_slice %13 {offsets = [0, 288], sizes = [32, 32], strides = [1, 1]} : vector<32x384xbf16> to vector<32x32xbf16>
    %52 = vector.shape_cast %51 : vector<32x32xbf16> to vector<2x16x32xbf16>
    "tpu.trace_start"() <{level = 10 : i32, message = "bqd,bkd->bqk"}> : () -> ()
    %cst_21 = arith.constant dense<0.000000e+00> : vector<2x16x16xf32>
    %53 = tpu.matmul %48, %50, %cst_21 {dimension_numbers = #tpu.dot_dimension_numbers<[2], [2], [1], [1], [0, 0, 0, 1, 1, 1], [0], [0]>} : vector<2x16x32xbf16>, vector<2x16x32xbf16>, vector<2x16x16xf32> -> vector<2x16x16xf32>
    "tpu.trace_stop"() : () -> ()
    %cst_22 = arith.constant 0.176776692 : f32
    %54 = vector.broadcast %cst_22 : f32 to vector<2x16x16xf32>
    %55 = arith.mulf %53, %54 : vector<2x16x16xf32>
    %56 = arith.addf %55, %16 : vector<2x16x16xf32>
    %cst_23 = arith.constant dense<0xFF800000> : vector<2x16xf32>
    %57 = vector.multi_reduction <maximumf>, %56, %cst_23 [2] : vector<2x16x16xf32> to vector<2x16xf32>
    %58 = vector.shape_cast %57 : vector<2x16xf32> to vector<2x16x1xf32>
    %59 = vector.broadcast %58 : vector<2x16x1xf32> to vector<2x16x16xf32>
    %60 = arith.subf %56, %59 : vector<2x16x16xf32>
    %61 = math.exp %60 : vector<2x16x16xf32>
    %cst_24 = arith.constant dense<0.000000e+00> : vector<2x16xf32>
    %62 = vector.multi_reduction <add>, %61, %cst_24 [2] : vector<2x16x16xf32> to vector<2x16xf32>
    %63 = vector.shape_cast %62 : vector<2x16xf32> to vector<2x16x1xf32>
    %64 = tpu.reciprocal %63 {approx = true} : vector<2x16x1xf32> -> vector<2x16x1xf32>
    %65 = vector.broadcast %64 : vector<2x16x1xf32> to vector<2x16x16xf32>
    %66 = arith.mulf %61, %65 : vector<2x16x16xf32>
    %67 = arith.truncf %66 : vector<2x16x16xf32> to vector<2x16x16xbf16>
    "tpu.trace_start"() <{level = 10 : i32, message = "bqk,bkd->bqd"}> : () -> ()
    %cst_25 = arith.constant dense<0.000000e+00> : vector<2x16x32xf32>
    %68 = tpu.matmul %67, %52, %cst_25 {dimension_numbers = #tpu.dot_dimension_numbers<[2], [1], [1], [2], [0, 0, 0, 1, 1, 2], [0], [0]>} : vector<2x16x16xbf16>, vector<2x16x32xbf16>, vector<2x16x32xf32> -> vector<2x16x32xf32>
    "tpu.trace_stop"() : () -> ()
    %69 = vector.shape_cast %68 : vector<2x16x32xf32> to vector<32x32xf32>
    %70 = arith.truncf %69 : vector<32x32xf32> to vector<32x32xbf16>
    %71 = vector.extract_strided_slice %18 {offsets = [32, 0], sizes = [32, 128], strides = [1, 1]} : vector<128x128xbf16> to vector<32x128xbf16>
    %cst_26 = arith.constant dense<0.000000e+00> : vector<32x128xf32>
    %72 = tpu.matmul %70, %71, %cst_26 {dimension_numbers = #tpu.dot_dimension_numbers<[1], [0], [0], [1], [0, 0, 1, 1], [], []>} : vector<32x32xbf16>, vector<32x128xbf16>, vector<32x128xf32> -> vector<32x128xf32>
    %73 = arith.addf %46, %72 : vector<32x128xf32>
    %74 = vector.extract_strided_slice %13 {offsets = [0, 64], sizes = [32, 32], strides = [1, 1]} : vector<32x384xbf16> to vector<32x32xbf16>
    %75 = vector.shape_cast %74 : vector<32x32xbf16> to vector<2x16x32xbf16>
    %76 = vector.extract_strided_slice %13 {offsets = [0, 192], sizes = [32, 32], strides = [1, 1]} : vector<32x384xbf16> to vector<32x32xbf16>
    %77 = vector.shape_cast %76 : vector<32x32xbf16> to vector<2x16x32xbf16>
    %78 = vector.extract_strided_slice %13 {offsets = [0, 320], sizes = [32, 32], strides = [1, 1]} : vector<32x384xbf16> to vector<32x32xbf16>
    %79 = vector.shape_cast %78 : vector<32x32xbf16> to vector<2x16x32xbf16>
    "tpu.trace_start"() <{level = 10 : i32, message = "bqd,bkd->bqk"}> : () -> ()
    %cst_27 = arith.constant dense<0.000000e+00> : vector<2x16x16xf32>
    %80 = tpu.matmul %75, %77, %cst_27 {dimension_numbers = #tpu.dot_dimension_numbers<[2], [2], [1], [1], [0, 0, 0, 1, 1, 1], [0], [0]>} : vector<2x16x32xbf16>, vector<2x16x32xbf16>, vector<2x16x16xf32> -> vector<2x16x16xf32>
    "tpu.trace_stop"() : () -> ()
    %cst_28 = arith.constant 0.176776692 : f32
    %81 = vector.broadcast %cst_28 : f32 to vector<2x16x16xf32>
    %82 = arith.mulf %80, %81 : vector<2x16x16xf32>
    %83 = arith.addf %82, %16 : vector<2x16x16xf32>
    %cst_29 = arith.constant dense<0xFF800000> : vector<2x16xf32>
    %84 = vector.multi_reduction <maximumf>, %83, %cst_29 [2] : vector<2x16x16xf32> to vector<2x16xf32>
    %85 = vector.shape_cast %84 : vector<2x16xf32> to vector<2x16x1xf32>
    %86 = vector.broadcast %85 : vector<2x16x1xf32> to vector<2x16x16xf32>
    %87 = arith.subf %83, %86 : vector<2x16x16xf32>
    %88 = math.exp %87 : vector<2x16x16xf32>
    %cst_30 = arith.constant dense<0.000000e+00> : vector<2x16xf32>
    %89 = vector.multi_reduction <add>, %88, %cst_30 [2] : vector<2x16x16xf32> to vector<2x16xf32>
    %90 = vector.shape_cast %89 : vector<2x16xf32> to vector<2x16x1xf32>
    %91 = tpu.reciprocal %90 {approx = true} : vector<2x16x1xf32> -> vector<2x16x1xf32>
    %92 = vector.broadcast %91 : vector<2x16x1xf32> to vector<2x16x16xf32>
    %93 = arith.mulf %88, %92 : vector<2x16x16xf32>
    %94 = arith.truncf %93 : vector<2x16x16xf32> to vector<2x16x16xbf16>
    "tpu.trace_start"() <{level = 10 : i32, message = "bqk,bkd->bqd"}> : () -> ()
    %cst_31 = arith.constant dense<0.000000e+00> : vector<2x16x32xf32>
    %95 = tpu.matmul %94, %79, %cst_31 {dimension_numbers = #tpu.dot_dimension_numbers<[2], [1], [1], [2], [0, 0, 0, 1, 1, 2], [0], [0]>} : vector<2x16x16xbf16>, vector<2x16x32xbf16>, vector<2x16x32xf32> -> vector<2x16x32xf32>
    "tpu.trace_stop"() : () -> ()
    %96 = vector.shape_cast %95 : vector<2x16x32xf32> to vector<32x32xf32>
    %97 = arith.truncf %96 : vector<32x32xf32> to vector<32x32xbf16>
    %98 = vector.extract_strided_slice %18 {offsets = [64, 0], sizes = [32, 128], strides = [1, 1]} : vector<128x128xbf16> to vector<32x128xbf16>
    %cst_32 = arith.constant dense<0.000000e+00> : vector<32x128xf32>
    %99 = tpu.matmul %97, %98, %cst_32 {dimension_numbers = #tpu.dot_dimension_numbers<[1], [0], [0], [1], [0, 0, 1, 1], [], []>} : vector<32x32xbf16>, vector<32x128xbf16>, vector<32x128xf32> -> vector<32x128xf32>
    %100 = arith.addf %73, %99 : vector<32x128xf32>
    %101 = vector.extract_strided_slice %13 {offsets = [0, 96], sizes = [32, 32], strides = [1, 1]} : vector<32x384xbf16> to vector<32x32xbf16>
    %102 = vector.shape_cast %101 : vector<32x32xbf16> to vector<2x16x32xbf16>
    %103 = vector.extract_strided_slice %13 {offsets = [0, 224], sizes = [32, 32], strides = [1, 1]} : vector<32x384xbf16> to vector<32x32xbf16>
    %104 = vector.shape_cast %103 : vector<32x32xbf16> to vector<2x16x32xbf16>
    %105 = vector.extract_strided_slice %13 {offsets = [0, 352], sizes = [32, 32], strides = [1, 1]} : vector<32x384xbf16> to vector<32x32xbf16>
    %106 = vector.shape_cast %105 : vector<32x32xbf16> to vector<2x16x32xbf16>
    "tpu.trace_start"() <{level = 10 : i32, message = "bqd,bkd->bqk"}> : () -> ()
    %cst_33 = arith.constant dense<0.000000e+00> : vector<2x16x16xf32>
    %107 = tpu.matmul %102, %104, %cst_33 {dimension_numbers = #tpu.dot_dimension_numbers<[2], [2], [1], [1], [0, 0, 0, 1, 1, 1], [0], [0]>} : vector<2x16x32xbf16>, vector<2x16x32xbf16>, vector<2x16x16xf32> -> vector<2x16x16xf32>
    "tpu.trace_stop"() : () -> ()
    %cst_34 = arith.constant 0.176776692 : f32
    %108 = vector.broadcast %cst_34 : f32 to vector<2x16x16xf32>
    %109 = arith.mulf %107, %108 : vector<2x16x16xf32>
    %110 = arith.addf %109, %16 : vector<2x16x16xf32>
    %cst_35 = arith.constant dense<0xFF800000> : vector<2x16xf32>
    %111 = vector.multi_reduction <maximumf>, %110, %cst_35 [2] : vector<2x16x16xf32> to vector<2x16xf32>
    %112 = vector.shape_cast %111 : vector<2x16xf32> to vector<2x16x1xf32>
    %113 = vector.broadcast %112 : vector<2x16x1xf32> to vector<2x16x16xf32>
    %114 = arith.subf %110, %113 : vector<2x16x16xf32>
    %115 = math.exp %114 : vector<2x16x16xf32>
    %cst_36 = arith.constant dense<0.000000e+00> : vector<2x16xf32>
    %116 = vector.multi_reduction <add>, %115, %cst_36 [2] : vector<2x16x16xf32> to vector<2x16xf32>
    %117 = vector.shape_cast %116 : vector<2x16xf32> to vector<2x16x1xf32>
    %118 = tpu.reciprocal %117 {approx = true} : vector<2x16x1xf32> -> vector<2x16x1xf32>
    %119 = vector.broadcast %118 : vector<2x16x1xf32> to vector<2x16x16xf32>
    %120 = arith.mulf %115, %119 : vector<2x16x16xf32>
    %121 = arith.truncf %120 : vector<2x16x16xf32> to vector<2x16x16xbf16>
    "tpu.trace_start"() <{level = 10 : i32, message = "bqk,bkd->bqd"}> : () -> ()
    %cst_37 = arith.constant dense<0.000000e+00> : vector<2x16x32xf32>
    %122 = tpu.matmul %121, %106, %cst_37 {dimension_numbers = #tpu.dot_dimension_numbers<[2], [1], [1], [2], [0, 0, 0, 1, 1, 2], [0], [0]>} : vector<2x16x16xbf16>, vector<2x16x32xbf16>, vector<2x16x32xf32> -> vector<2x16x32xf32>
    "tpu.trace_stop"() : () -> ()
    %123 = vector.shape_cast %122 : vector<2x16x32xf32> to vector<32x32xf32>
    %124 = arith.truncf %123 : vector<32x32xf32> to vector<32x32xbf16>
    %125 = vector.extract_strided_slice %18 {offsets = [96, 0], sizes = [32, 128], strides = [1, 1]} : vector<128x128xbf16> to vector<32x128xbf16>
    %cst_38 = arith.constant dense<0.000000e+00> : vector<32x128xf32>
    %126 = tpu.matmul %124, %125, %cst_38 {dimension_numbers = #tpu.dot_dimension_numbers<[1], [0], [0], [1], [0, 0, 1, 1], [], []>} : vector<32x32xbf16>, vector<32x128xbf16>, vector<32x128xf32> -> vector<32x128xf32>
    %127 = arith.addf %100, %126 : vector<32x128xf32>
    %128 = arith.addf %4, %127 : vector<32x128xf32>
    %c0_39 = arith.constant 0 : index
    %c0_40 = arith.constant 0 : index
    %c0_41 = arith.constant 0 : index
    %129 = vector.load %arg8[%c0_39, %c0_40, %c0_41] : memref<1x1x128xf32, #tpu.memory_space<vmem>>, vector<1x1x128xf32>
    %130 = vector.shape_cast %129 : vector<1x1x128xf32> to vector<1x128xf32>
    %131 = vector.broadcast %130 : vector<1x128xf32> to vector<32x128xf32>
    %132 = arith.addf %128, %131 : vector<32x128xf32>
    %c0_42 = arith.constant 0 : index
    %c0_43 = arith.constant 0 : index
    %c0_44 = arith.constant 0 : index
    %133 = vector.load %arg9[%c0_42, %c0_43, %c0_44] : memref<1x1x128xf32, #tpu.memory_space<vmem>>, vector<1x1x128xf32>
    %134 = vector.shape_cast %133 : vector<1x1x128xf32> to vector<1x128xf32>
    %c0_45 = arith.constant 0 : index
    %c0_46 = arith.constant 0 : index
    %c0_47 = arith.constant 0 : index
    %135 = vector.load %arg10[%c0_45, %c0_46, %c0_47] : memref<1x1x128xf32, #tpu.memory_space<vmem>>, vector<1x1x128xf32>
    %136 = vector.shape_cast %135 : vector<1x1x128xf32> to vector<1x128xf32>
    %cst_48 = arith.constant dense<0.000000e+00> : vector<32xf32>
    %137 = vector.multi_reduction <add>, %132, %cst_48 [1] : vector<32x128xf32> to vector<32xf32>
    %138 = vector.shape_cast %137 : vector<32xf32> to vector<32x1xf32>
    %cst_49 = arith.constant 1.280000e+02 : f32
    %139 = vector.broadcast %cst_49 : f32 to vector<32x1xf32>
    %140 = arith.divf %138, %139 : vector<32x1xf32>
    %141 = vector.broadcast %140 : vector<32x1xf32> to vector<32x128xf32>
    %142 = arith.subf %132, %141 : vector<32x128xf32>
    %143 = vector.broadcast %140 : vector<32x1xf32> to vector<32x128xf32>
    %144 = arith.subf %132, %143 : vector<32x128xf32>
    %145 = arith.mulf %142, %144 : vector<32x128xf32>
    %cst_50 = arith.constant dense<0.000000e+00> : vector<32xf32>
    %146 = vector.multi_reduction <add>, %145, %cst_50 [1] : vector<32x128xf32> to vector<32xf32>
    %147 = vector.shape_cast %146 : vector<32xf32> to vector<32x1xf32>
    %cst_51 = arith.constant 1.280000e+02 : f32
    %148 = vector.broadcast %cst_51 : f32 to vector<32x1xf32>
    %149 = arith.divf %147, %148 : vector<32x1xf32>
    %150 = vector.broadcast %140 : vector<32x1xf32> to vector<32x128xf32>
    %151 = arith.subf %132, %150 : vector<32x128xf32>
    %cst_52 = arith.constant 9.99999996E-13 : f32
    %152 = vector.broadcast %cst_52 : f32 to vector<32x1xf32>
    %153 = arith.addf %149, %152 : vector<32x1xf32>
    %154 = math.rsqrt %153 : vector<32x1xf32>
    %155 = vector.broadcast %154 : vector<32x1xf32> to vector<32x128xf32>
    %156 = arith.mulf %151, %155 : vector<32x128xf32>
    %157 = vector.broadcast %134 : vector<1x128xf32> to vector<32x128xf32>
    %158 = arith.mulf %156, %157 : vector<32x128xf32>
    %159 = vector.broadcast %136 : vector<1x128xf32> to vector<32x128xf32>
    %160 = arith.addf %158, %159 : vector<32x128xf32>
    %161 = arith.truncf %160 : vector<32x128xf32> to vector<32x128xbf16>
    %c0_53 = arith.constant 0 : index
    %c0_54 = arith.constant 0 : index
    %c0_55 = arith.constant 0 : index
    %162 = vector.load %arg11[%c0_53, %c0_54, %c0_55] : memref<1x128x256xbf16, #tpu.memory_space<vmem>>, vector<1x128x256xbf16>
    %163 = vector.shape_cast %162 : vector<1x128x256xbf16> to vector<128x256xbf16>
    %cst_56 = arith.constant dense<0.000000e+00> : vector<32x256xf32>
    %164 = tpu.matmul %161, %163, %cst_56 {dimension_numbers = #tpu.dot_dimension_numbers<[1], [0], [0], [1], [0, 0, 1, 1], [], []>} : vector<32x128xbf16>, vector<128x256xbf16>, vector<32x256xf32> -> vector<32x256xf32>
    %c0_57 = arith.constant 0 : index
    %c0_58 = arith.constant 0 : index
    %c0_59 = arith.constant 0 : index
    %165 = vector.load %arg12[%c0_57, %c0_58, %c0_59] : memref<1x1x256xf32, #tpu.memory_space<vmem>>, vector<1x1x256xf32>
    %166 = vector.shape_cast %165 : vector<1x1x256xf32> to vector<1x256xf32>
    %167 = vector.broadcast %166 : vector<1x256xf32> to vector<32x256xf32>
    %168 = arith.addf %164, %167 : vector<32x256xf32>
    %cst_60 = arith.constant 5.000000e-01 : f32
    %169 = vector.broadcast %cst_60 : f32 to vector<32x256xf32>
    %170 = arith.mulf %169, %168 : vector<32x256xf32>
    %cst_61 = arith.constant 4.471500e-02 : f32
    %171 = vector.broadcast %cst_61 : f32 to vector<32x256xf32>
    %172 = arith.mulf %171, %168 : vector<32x256xf32>
    %173 = arith.mulf %172, %168 : vector<32x256xf32>
    %174 = arith.mulf %173, %168 : vector<32x256xf32>
    %175 = arith.addf %168, %174 : vector<32x256xf32>
    %cst_62 = arith.constant 0.797884583 : f32
    %176 = vector.broadcast %cst_62 : f32 to vector<32x256xf32>
    %177 = arith.mulf %176, %175 : vector<32x256xf32>
    %178 = math.tanh %177 : vector<32x256xf32>
    %cst_63 = arith.constant 1.000000e+00 : f32
    %179 = vector.broadcast %cst_63 : f32 to vector<32x256xf32>
    %180 = arith.addf %179, %178 : vector<32x256xf32>
    %181 = arith.mulf %170, %180 : vector<32x256xf32>
    %182 = arith.truncf %181 : vector<32x256xf32> to vector<32x256xbf16>
    %c0_64 = arith.constant 0 : index
    %c0_65 = arith.constant 0 : index
    %c0_66 = arith.constant 0 : index
    %183 = vector.load %arg13[%c0_64, %c0_65, %c0_66] : memref<1x256x128xbf16, #tpu.memory_space<vmem>>, vector<1x256x128xbf16>
    %184 = vector.shape_cast %183 : vector<1x256x128xbf16> to vector<256x128xbf16>
    %cst_67 = arith.constant dense<0.000000e+00> : vector<32x128xf32>
    %185 = tpu.matmul %182, %184, %cst_67 {dimension_numbers = #tpu.dot_dimension_numbers<[1], [0], [0], [1], [0, 0, 1, 1], [], []>} : vector<32x256xbf16>, vector<256x128xbf16>, vector<32x128xf32> -> vector<32x128xf32>
    %c0_68 = arith.constant 0 : index
    %c0_69 = arith.constant 0 : index
    %c0_70 = arith.constant 0 : index
    %186 = vector.load %arg14[%c0_68, %c0_69, %c0_70] : memref<1x1x128xf32, #tpu.memory_space<vmem>>, vector<1x1x128xf32>
    %187 = vector.shape_cast %186 : vector<1x1x128xf32> to vector<1x128xf32>
    %188 = vector.broadcast %187 : vector<1x128xf32> to vector<32x128xf32>
    %189 = arith.addf %185, %188 : vector<32x128xf32>
    %190 = arith.addf %160, %189 : vector<32x128xf32>
    %c0_71 = arith.constant 0 : index
    %c0_72 = arith.constant 0 : index
    %c0_73 = arith.constant 0 : index
    %191 = vector.load %arg15[%c0_71, %c0_72, %c0_73] : memref<1x1x128xf32, #tpu.memory_space<vmem>>, vector<1x1x128xf32>
    %192 = vector.shape_cast %191 : vector<1x1x128xf32> to vector<1x128xf32>
    %c0_74 = arith.constant 0 : index
    %c0_75 = arith.constant 0 : index
    %c0_76 = arith.constant 0 : index
    %193 = vector.load %arg16[%c0_74, %c0_75, %c0_76] : memref<1x1x128xf32, #tpu.memory_space<vmem>>, vector<1x1x128xf32>
    %194 = vector.shape_cast %193 : vector<1x1x128xf32> to vector<1x128xf32>
    %cst_77 = arith.constant dense<0.000000e+00> : vector<32xf32>
    %195 = vector.multi_reduction <add>, %190, %cst_77 [1] : vector<32x128xf32> to vector<32xf32>
    %196 = vector.shape_cast %195 : vector<32xf32> to vector<32x1xf32>
    %cst_78 = arith.constant 1.280000e+02 : f32
    %197 = vector.broadcast %cst_78 : f32 to vector<32x1xf32>
    %198 = arith.divf %196, %197 : vector<32x1xf32>
    %199 = vector.broadcast %198 : vector<32x1xf32> to vector<32x128xf32>
    %200 = arith.subf %190, %199 : vector<32x128xf32>
    %201 = vector.broadcast %198 : vector<32x1xf32> to vector<32x128xf32>
    %202 = arith.subf %190, %201 : vector<32x128xf32>
    %203 = arith.mulf %200, %202 : vector<32x128xf32>
    %cst_79 = arith.constant dense<0.000000e+00> : vector<32xf32>
    %204 = vector.multi_reduction <add>, %203, %cst_79 [1] : vector<32x128xf32> to vector<32xf32>
    %205 = vector.shape_cast %204 : vector<32xf32> to vector<32x1xf32>
    %cst_80 = arith.constant 1.280000e+02 : f32
    %206 = vector.broadcast %cst_80 : f32 to vector<32x1xf32>
    %207 = arith.divf %205, %206 : vector<32x1xf32>
    %208 = vector.broadcast %198 : vector<32x1xf32> to vector<32x128xf32>
    %209 = arith.subf %190, %208 : vector<32x128xf32>
    %cst_81 = arith.constant 9.99999996E-13 : f32
    %210 = vector.broadcast %cst_81 : f32 to vector<32x1xf32>
    %211 = arith.addf %207, %210 : vector<32x1xf32>
    %212 = math.rsqrt %211 : vector<32x1xf32>
    %213 = vector.broadcast %212 : vector<32x1xf32> to vector<32x128xf32>
    %214 = arith.mulf %209, %213 : vector<32x128xf32>
    %215 = vector.broadcast %192 : vector<1x128xf32> to vector<32x128xf32>
    %216 = arith.mulf %214, %215 : vector<32x128xf32>
    %217 = vector.broadcast %194 : vector<1x128xf32> to vector<32x128xf32>
    %218 = arith.addf %216, %217 : vector<32x128xf32>
    %219 = arith.truncf %218 : vector<32x128xf32> to vector<32x128xbf16>
    %c0_82 = arith.constant 0 : index
    %c0_83 = arith.constant 0 : index
    %220 = vector.load %arg17[%c0_82, %c0_83] : memref<32x128xbf16, #tpu.memory_space<vmem>>, vector<32x128xbf16>
    tpu.vector_store %arg17[%c0_82, %c0_83], %219 {strides = array<i32>} : memref<32x128xbf16, #tpu.memory_space<vmem>>, vector<32x128xbf16>,
    return
  }
  func.func @transform_0(%arg0: i32) -> (i32, i32) {
    %c0_i32 = arith.constant 0 : i32
    %c0_i32_0 = arith.constant 0 : i32
    %c0_i32_1 = arith.constant 0 : i32
    return %c0_i32, %c0_i32_0 : i32, i32
  }
  func.func @transform_1(%arg0: i32) -> (i32, i32) {
    %c0_i32 = arith.constant 0 : i32
    %c0_i32_0 = arith.constant 0 : i32
    %c0_i32_1 = arith.constant 0 : i32
    return %c0_i32, %c0_i32_0 : i32, i32
  }
  func.func @transform_2(%arg0: i32) -> (i32, i32) {
    %c0_i32 = arith.constant 0 : i32
    %c0_i32_0 = arith.constant 0 : i32
    %c0_i32_1 = arith.constant 0 : i32
    return %c0_i32, %c0_i32_0 : i32, i32
  }
  func.func @transform_3(%arg0: i32) -> (i32, i32, i32) {
    %c0_i32 = arith.constant 0 : i32
    %c0_i32_0 = arith.constant 0 : i32
    %c0_i32_1 = arith.constant 0 : i32
    %c0_i32_2 = arith.constant 0 : i32
    return %c0_i32, %c0_i32_0, %c0_i32_1 : i32, i32, i32
  }
  func.func @transform_4(%arg0: i32) -> (i32, i32, i32) {
    %c0_i32 = arith.constant 0 : i32
    %c0_i32_0 = arith.constant 0 : i32
    %c0_i32_1 = arith.constant 0 : i32
    return %arg0, %c0_i32, %c0_i32_0 : i32, i32, i32
  }
  func.func @transform_5(%arg0: i32) -> (i32, i32, i32) {
    %c0_i32 = arith.constant 0 : i32
    %c0_i32_0 = arith.constant 0 : i32
    %c0_i32_1 = arith.constant 0 : i32
    return %arg0, %c0_i32, %c0_i32_0 : i32, i32, i32
  }
  func.func @transform_6(%arg0: i32) -> (i32, i32, i32) {
    %c0_i32 = arith.constant 0 : i32
    %c0_i32_0 = arith.constant 0 : i32
    %c0_i32_1 = arith.constant 0 : i32
    return %arg0, %c0_i32, %c0_i32_0 : i32, i32, i32
  }
  func.func @transform_7(%arg0: i32) -> (i32, i32, i32) {
    %c0_i32 = arith.constant 0 : i32
    %c0_i32_0 = arith.constant 0 : i32
    %c0_i32_1 = arith.constant 0 : i32
    return %arg0, %c0_i32, %c0_i32_0 : i32, i32, i32
  }
  func.func @transform_8(%arg0: i32) -> (i32, i32, i32) {
    %c0_i32 = arith.constant 0 : i32
    %c0_i32_0 = arith.constant 0 : i32
    %c0_i32_1 = arith.constant 0 : i32
    return %arg0, %c0_i32, %c0_i32_0 : i32, i32, i32
  }
  func.func @transform_9(%arg0: i32) -> (i32, i32, i32) {
    %c0_i32 = arith.constant 0 : i32
    %c0_i32_0 = arith.constant 0 : i32
    %c0_i32_1 = arith.constant 0 : i32
    return %arg0, %c0_i32, %c0_i32_0 : i32, i32, i32
  }
  func.func @transform_10(%arg0: i32) -> (i32, i32, i32) {
    %c0_i32 = arith.constant 0 : i32
    %c0_i32_0 = arith.constant 0 : i32
    %c0_i32_1 = arith.constant 0 : i32
    return %arg0, %c0_i32, %c0_i32_0 : i32, i32, i32
  }
  func.func @transform_11(%arg0: i32) -> (i32, i32, i32) {
    %c0_i32 = arith.constant 0 : i32
    %c0_i32_0 = arith.constant 0 : i32
    %c0_i32_1 = arith.constant 0 : i32
    return %arg0, %c0_i32, %c0_i32_0 : i32, i32, i32
  }
  func.func @transform_12(%arg0: i32) -> (i32, i32, i32) {
    %c0_i32 = arith.constant 0 : i32
    %c0_i32_0 = arith.constant 0 : i32
    %c0_i32_1 = arith.constant 0 : i32
    return %arg0, %c0_i32, %c0_i32_0 : i32, i32, i32
  }
  func.func @transform_13(%arg0: i32) -> (i32, i32, i32) {
    %c0_i32 = arith.constant 0 : i32
    %c0_i32_0 = arith.constant 0 : i32
    %c0_i32_1 = arith.constant 0 : i32
    return %arg0, %c0_i32, %c0_i32_0 : i32, i32, i32
  }
  func.func @transform_14(%arg0: i32) -> (i32, i32, i32) {
    %c0_i32 = arith.constant 0 : i32
    %c0_i32_0 = arith.constant 0 : i32
    %c0_i32_1 = arith.constant 0 : i32
    return %arg0, %c0_i32, %c0_i32_0 : i32, i32, i32
  }
  func.func @transform_15(%arg0: i32) -> (i32, i32, i32) {
    %c0_i32 = arith.constant 0 : i32
    %c0_i32_0 = arith.constant 0 : i32
    %c0_i32_1 = arith.constant 0 : i32
    return %arg0, %c0_i32, %c0_i32_0 : i32, i32, i32
  }
  func.func @transform_16(%arg0: i32) -> (i32, i32) {
    %c0_i32 = arith.constant 0 : i32
    %c0_i32_0 = arith.constant 0 : i32
    %c0_i32_1 = arith.constant 0 : i32
    return %c0_i32, %c0_i32_0 : i32, i32
  }
}

module attributes {stable_mosaic.version = 11 : i64} {
  func.func @_pool_head_kernel(%arg0: memref<2x128xbf16, #tpu.memory_space<vmem>>, %arg1: memref<128x128xbf16, #tpu.memory_space<vmem>>, %arg2: memref<1x128xf32, #tpu.memory_space<vmem>>, %arg3: memref<128x3xbf16, #tpu.memory_space<vmem>>, %arg4: memref<1x3xf32, #tpu.memory_space<vmem>>, %arg5: memref<2x3xf32, #tpu.memory_space<vmem>>) attributes {dimension_semantics = [], scalar_prefetch = 0 : i64, scratch_operands = 0 : i64, tpu.core_type = #tpu.core_type<tc>} {
    %c0 = arith.constant 0 : index
    %c0_0 = arith.constant 0 : index
    %0 = vector.load %arg0[%c0, %c0_0] : memref<2x128xbf16, #tpu.memory_space<vmem>>, vector<2x128xbf16>
    %c0_1 = arith.constant 0 : index
    %c0_2 = arith.constant 0 : index
    %1 = vector.load %arg1[%c0_1, %c0_2] : memref<128x128xbf16, #tpu.memory_space<vmem>>, vector<128x128xbf16>
    %cst = arith.constant dense<0.000000e+00> : vector<2x128xf32>
    %2 = tpu.matmul %0, %1, %cst {dimension_numbers = #tpu.dot_dimension_numbers<[1], [0], [0], [1], [0, 0, 1, 1], [], []>} : vector<2x128xbf16>, vector<128x128xbf16>, vector<2x128xf32> -> vector<2x128xf32>
    %c0_3 = arith.constant 0 : index
    %c0_4 = arith.constant 0 : index
    %3 = vector.load %arg2[%c0_3, %c0_4] : memref<1x128xf32, #tpu.memory_space<vmem>>, vector<1x128xf32>
    %4 = vector.broadcast %3 : vector<1x128xf32> to vector<2x128xf32>
    %5 = arith.addf %2, %4 : vector<2x128xf32>
    %6 = math.tanh %5 : vector<2x128xf32>
    %7 = arith.truncf %6 : vector<2x128xf32> to vector<2x128xbf16>
    %c0_5 = arith.constant 0 : index
    %c0_6 = arith.constant 0 : index
    %8 = vector.load %arg3[%c0_5, %c0_6] : memref<128x3xbf16, #tpu.memory_space<vmem>>, vector<128x3xbf16>
    %cst_7 = arith.constant dense<0.000000e+00> : vector<2x3xf32>
    %9 = tpu.matmul %7, %8, %cst_7 {dimension_numbers = #tpu.dot_dimension_numbers<[1], [0], [0], [1], [0, 0, 1, 1], [], []>} : vector<2x128xbf16>, vector<128x3xbf16>, vector<2x3xf32> -> vector<2x3xf32>
    %c0_8 = arith.constant 0 : index
    %c0_9 = arith.constant 0 : index
    %10 = vector.load %arg4[%c0_8, %c0_9] : memref<1x3xf32, #tpu.memory_space<vmem>>, vector<1x3xf32>
    %11 = vector.broadcast %10 : vector<1x3xf32> to vector<2x3xf32>
    %12 = arith.addf %9, %11 : vector<2x3xf32>
    %cst_10 = arith.constant dense<0xFF800000> : vector<2xf32>
    %13 = vector.multi_reduction <maximumf>, %12, %cst_10 [1] : vector<2x3xf32> to vector<2xf32>
    %14 = vector.shape_cast %13 : vector<2xf32> to vector<2x1xf32>
    %15 = vector.broadcast %14 : vector<2x1xf32> to vector<2x3xf32>
    %16 = arith.subf %12, %15 : vector<2x3xf32>
    %17 = math.exp %16 : vector<2x3xf32>
    %cst_11 = arith.constant dense<0.000000e+00> : vector<2xf32>
    %18 = vector.multi_reduction <add>, %17, %cst_11 [1] : vector<2x3xf32> to vector<2xf32>
    %19 = vector.shape_cast %18 : vector<2xf32> to vector<2x1xf32>
    %20 = vector.broadcast %19 : vector<2x1xf32> to vector<2x3xf32>
    %21 = arith.divf %17, %20 : vector<2x3xf32>
    %c0_12 = arith.constant 0 : index
    %c0_13 = arith.constant 0 : index
    %22 = vector.load %arg5[%c0_12, %c0_13] : memref<2x3xf32, #tpu.memory_space<vmem>>, vector<2x3xf32>
    tpu.vector_store %arg5[%c0_12, %c0_13], %21 {strides = array<i32>} : memref<2x3xf32, #tpu.memory_space<vmem>>, vector<2x3xf32>,
    return
  }
}

</mosaic_0001>

<llo_original>
// kernel: bert_snli_forward.3
$region0: #{bert_snli_forward.3}
  #allocation0 [shape = 'u32[]', space=smem, size = 0x4, offset = 0x4, fixed_abs, tag = 'smem constant byte address 0x4 - core index']
  #allocation1 [shape = 'u32[72,128]{1,0:T(1,128)}', space=vmem, size = 0x9000, scoped, tag = 'internal scratch']
  %s0 = inlined_call_operand.vmem [shape: bf16[2,128], index: 0, kind: input, shape index: {}]
  %s1 = inlined_call_operand.vmem [shape: bf16[128,128], index: 1, kind: input, shape index: {}]
  %s2 = inlined_call_operand.vmem [shape: f32[1,128], index: 2, kind: input, shape index: {}]
  %s3 = inlined_call_operand.vmem [shape: bf16[128,3], index: 3, kind: input, shape index: {}]
  %s4 = inlined_call_operand.vmem [shape: f32[1,3], index: 4, kind: input, shape index: {}]
  %s5 = inlined_call_operand.hbm [shape: f32[2,3], index: 5, kind: output, shape index: {}]
  %s6 = sld [smem:[#allocation0]]
  $region30: #{bert_snli_forward.3} parent=0
    _
  %s8 = ssub.s32 1, %s6
  %s9 = scalar_select 0, %s8, %s6
  $region1: #{bert_snli_forward.3} parent=0
    #allocation2 [shape = 'u8[1024]{0}', space=vmem, size = 0x400, scoped, tag = 'output window, operand 0, single buffered']
    #allocation3 [shape = 's32[1]{0}', space=sflag, size = 0x4, scoped, tag = 'scoped memory for bert_snli_forward.3']
    %10 = vsyncpa [#allocation3], 0
    // Predicated region
    $region2: #{bert_snli_forward.3} parent=1 // pred_check
      _
    $region3: #{bert_snli_forward.3} parent=1 // pred_check_branch
      %12 = sbr.rel (0) target = $region5
    $region4: #{bert_snli_forward.3} parent=1 // pred_region
      _
    $region5: #{bert_snli_forward.3} parent=1 // pred_fallthru
      _
    // Predicated region
    $region6: #{bert_snli_forward.3} parent=1 // pred_check
      _
    $region7: #{bert_snli_forward.3} parent=1 // pred_check_branch
      %14 = sbr.rel (0) target = $region9
    $region8: #{bert_snli_forward.3} parent=1 // pred_region
      _
    $region9: #{bert_snli_forward.3} parent=1 // pred_fallthru
      _
    // Predicated region
    $region10: #{bert_snli_forward.3} parent=1 // pred_check
      _
    $region11: #{bert_snli_forward.3} parent=1 // pred_check_branch
      %16 = sbr.rel (0) target = $region13
    $region12: #{bert_snli_forward.3} parent=1 // pred_region
      _
    $region13: #{bert_snli_forward.3} parent=1 // pred_fallthru
      _
    // Predicated region
    $region14: #{bert_snli_forward.3} parent=1 // pred_check
      _
    $region15: #{bert_snli_forward.3} parent=1 // pred_check_branch
      %18 = sbr.rel (0) target = $region17
    $region16: #{bert_snli_forward.3} parent=1 // pred_region
      _
    $region17: #{bert_snli_forward.3} parent=1 // pred_fallthru
      _
    // Predicated region
    $region18: #{bert_snli_forward.3} parent=1 // pred_check
      _
    $region19: #{bert_snli_forward.3} parent=1 // pred_check_branch
      %20 = sbr.rel (0) target = $region21
    $region20: #{bert_snli_forward.3} parent=1 // pred_region
      _
    $region21: #{bert_snli_forward.3} parent=1 // pred_fallthru
      _
    %v21 = vld [vmem:[%s0] sm:$0x1]
    %v22 = vld [vmem:[%s1] sm:$0xf]
    %v23 = vld [vmem:[%s1 + $0x4] sm:$0xf]
    %v24 = vld [vmem:[%s1 + $0x8] sm:$0xf]
    %v25 = vld [vmem:[%s1 + $0xc] sm:$0xf]
    %v26 = vld [vmem:[%s1 + $0x10] sm:$0xf]
    %v27 = vld [vmem:[%s1 + $0x14] sm:$0xf]
    %v28 = vld [vmem:[%s1 + $0x18] sm:$0xf]
    %v29 = vld [vmem:[%s1 + $0x1c] sm:$0xf]
    %v30 = vld [vmem:[%s1 + $0x20] sm:$0xf]
    %v31 = vld [vmem:[%s1 + $0x24] sm:$0xf]
    %v32 = vld [vmem:[%s1 + $0x28] sm:$0xf]
    %v33 = vld [vmem:[%s1 + $0x2c] sm:$0xf]
    %v34 = vld [vmem:[%s1 + $0x30] sm:$0xf]
    %v35 = vld [vmem:[%s1 + $0x34] sm:$0xf]
    %v36 = vld [vmem:[%s1 + $0x38] sm:$0xf]
    %v37 = vld [vmem:[%s1 + $0x3c] sm:$0xf]
    %v38 = vld [vmem:[%s2] sm:$0x1]
    %v40 = vperm.slane %v38, 0
    %v58 = vunpack.c.l.b16 %v22
    %v59 = vunpack.c.l.b16 %v23
    %v60 = vunpack.c.l.b16 %v24
    %v61 = vunpack.c.l.b16 %v25
    %v62 = vunpack.c.l.b16 %v26
    %v63 = vunpack.c.l.b16 %v27
    %v64 = vunpack.c.l.b16 %v28
    %v65 = vunpack.c.l.b16 %v29
    %v66 = vunpack.c.l.b16 %v30
    %v67 = vunpack.c.l.b16 %v31
    %v68 = vunpack.c.l.b16 %v32
    %v69 = vunpack.c.l.b16 %v33
    %v70 = vunpack.c.l.b16 %v34
    %v71 = vunpack.c.l.b16 %v35
    %v72 = vunpack.c.l.b16 %v36
    %v73 = vunpack.c.l.b16 %v37
    %v74 = vpack.c.b16 %v59, %v58
    %v75 = vpack.c.b16 %v61, %v60
    %v76 = vpack.c.b16 %v63, %v62
    %v77 = vpack.c.b16 %v65, %v64
    %v78 = vpack.c.b16 %v67, %v66
    %v79 = vpack.c.b16 %v69, %v68
    %v80 = vpack.c.b16 %v71, %v70
    %v81 = vpack.c.b16 %v73, %v72
    %90 = vmatpush.bf16.msra.mxu0 %v81
    %91 = vmatpush.bf16.msra.mxu0 %v80
    %92 = vmatpush.bf16.msra.mxu0 %v79
    %93 = vmatpush.bf16.msra.mxu0 %v78
    %94 = vmatpush.bf16.msra.mxu0 %v77
    %95 = vmatpush.bf16.msra.mxu0 %v76
    %96 = vmatpush.bf16.msra.mxu0 %v75
    %97 = vmatpush.bf16.msra.mxu0 %v74
    %98 = vmatmul.bf16.gmra.mxu0 %v21
    %v99 = vpop.f32.mrf.mxu0
    %v100 = vadd.f32 %v40, %v99
    %v101 = vpop.f32.mrf.mxu0
    %102 = vdwg.mxu0
    %v103 = vtanh.pop %v100
    %v104 = vpack.c.bf16 %v103, %v103
    %v105 = vld [vmem:[%s3] sm:$0xf]
    %v106 = vld [vmem:[%s3 + $0x4] sm:$0xf]
    %v107 = vld [vmem:[%s3 + $0x8] sm:$0xf]
    %v108 = vld [vmem:[%s3 + $0xc] sm:$0xf]
    %v109 = vld [vmem:[%s3 + $0x10] sm:$0xf]
    %v110 = vld [vmem:[%s3 + $0x14] sm:$0xf]
    %v111 = vld [vmem:[%s3 + $0x18] sm:$0xf]
    %v112 = vld [vmem:[%s3 + $0x1c] sm:$0xf]
    %v113 = vld [vmem:[%s3 + $0x20] sm:$0xf]
    %v114 = vld [vmem:[%s3 + $0x24] sm:$0xf]
    %v115 = vld [vmem:[%s3 + $0x28] sm:$0xf]
    %v116 = vld [vmem:[%s3 + $0x2c] sm:$0xf]
    %v117 = vld [vmem:[%s3 + $0x30] sm:$0xf]
    %v118 = vld [vmem:[%s3 + $0x34] sm:$0xf]
    %v119 = vld [vmem:[%s3 + $0x38] sm:$0xf]
    %v120 = vld [vmem:[%s3 + $0x3c] sm:$0xf]
    %v121 = vld [vmem:[%s4] sm:$0x1]
    %v123 = vperm.slane %v121, 0
    %v141 = vunpack.c.l.b16 %v105
    %v142 = vunpack.c.l.b16 %v106
    %v143 = vunpack.c.l.b16 %v107
    %v144 = vunpack.c.l.b16 %v108
    %v145 = vunpack.c.l.b16 %v109
    %v146 = vunpack.c.l.b16 %v110
    %v147 = vunpack.c.l.b16 %v111
    %v148 = vunpack.c.l.b16 %v112
    %v149 = vunpack.c.l.b16 %v113
    %v150 = vunpack.c.l.b16 %v114
    %v151 = vunpack.c.l.b16 %v115
    %v152 = vunpack.c.l.b16 %v116
    %v153 = vunpack.c.l.b16 %v117
    %v154 = vunpack.c.l.b16 %v118
    %v155 = vunpack.c.l.b16 %v119
    %v156 = vunpack.c.l.b16 %v120
    %v157 = vpack.c.b16 %v142, %v141
    %v158 = vpack.c.b16 %v144, %v143
    %v159 = vpack.c.b16 %v146, %v145
    %v160 = vpack.c.b16 %v148, %v147
    %v161 = vpack.c.b16 %v150, %v149
    %v162 = vpack.c.b16 %v152, %v151
    %v163 = vpack.c.b16 %v154, %v153
    %v164 = vpack.c.b16 %v156, %v155
    %173 = vmatpush.bf16.msra.mxu0 %v164
    %174 = vmatpush.bf16.msra.mxu0 %v163
    %175 = vmatpush.bf16.msra.mxu0 %v162
    %176 = vmatpush.bf16.msra.mxu0 %v161
    %177 = vmatpush.bf16.msra.mxu0 %v160
    %178 = vmatpush.bf16.msra.mxu0 %v159
    %179 = vmatpush.bf16.msra.mxu0 %v158
    %180 = vmatpush.bf16.msra.mxu0 %v157
    %181 = vmatmul.bf16.gmra.mxu0 %v104
    %v182 = vpop.f32.mrf.mxu0
    %v183 = vadd.f32 %v123, %v182
    %v184 = vpop.f32.mrf.mxu0
    %185 = vdwg.mxu0
    %vm186 = vcmask 17408
    %v187 = vsel %vm186, %v183, -inf
    %188 = vmax.xlane.f32.xlu0 %v187
    %v189 = vpop.xlane.xlu0 %188
    %v190 = vsub.f32 %v183, %v189
    %v191 = vmul.f32 %v190, 1.442695
    %v192 = vpow.pop %v191
    %v193 = vsel %vm186, %v192, 0.0
    %194 = vadd.xlane.f32.xlu0 %v193
    %v195 = vpop.xlane.xlu0 %194
    %v196 = vrcp.pop %v195
    %v197 = vmul.f32 %v195, %v196
    %v198 = vsub.f32 1.0, %v197
    %v199 = vmul.f32 %v196, %v198
    %v200 = vadd.f32 %v196, %v199
    %vm201 = vweird.f32 %v195
    %vm202 = vweird.f32 %v196
    %vm203 = vmor %vm201, %vm202
    %v204 = vsel %vm203, %v196, %v200
    %v205 = vand.u32 2147483647, %v195
    %vm206 = vcmp.eq.f32.partialorder %v205, 8.507059e+37
    %v207 = vand.u32 %v195, 2147483648
    %v208 = vor.u32 1.1754944e-38, %v207
    %v209 = vsel %vm206, %v208, %v204
    %v210 = vmul.f32 %v192, %v209
    %211 = vst.msk [vmem:[#allocation2] sm:$0x3] %vm186, %v210
    // Predicated region
    $region22: #{bert_snli_forward.3} parent=1 // pred_check
      _
    $region23: #{bert_snli_forward.3} parent=1 // pred_check_branch
      %213 = sbr.rel (0) target = $region25
    $region24: #{bert_snli_forward.3} parent=1 // pred_region
      %215 = vsyncadd [#allocation3], 0
      %s217 = sshll.u32 [#allocation2], 4
      %s218 = int_to_ptr.vmem [resolvable:$true] %s217
      %s219 = sshll.u32 %s5, 4
      %s220 = int_to_ptr.hbm [resolvable:$true] %s219
      %222 = dma.vmem_to_hbm [thread:$0]  %s218, 32, %s220, [#allocation3]
    $region25: #{bert_snli_forward.3} parent=1 // pred_fallthru
      _
    // Predicated region
    $region26: #{bert_snli_forward.3} parent=1 // pred_check
      _
    $region27: #{bert_snli_forward.3} parent=1 // pred_check_branch
      %224 = sbr.rel (0) target = $region29
    $region28: #{bert_snli_forward.3} parent=1 // pred_region
      %226 = dma.done [#allocation3], 32
    $region29: #{bert_snli_forward.3} parent=1 // pred_fallthru
      _
    %227 = vsyncpa [#allocation3], 1

// kernel: bert_snli_forward.2
$region0: #{bert_snli_forward.2}
  #allocation0 [shape = 'u32[]', space=smem, size = 0x4, offset = 0x4, fixed_abs, tag = 'smem constant byte address 0x4 - core index']
  #allocation1 [shape = 'u32[72,128]{1,0:T(1,128)}', space=vmem, size = 0x9000, scoped, tag = 'internal scratch']
  %s0 = inlined_call_operand.vmem [shape: bf16[32,128], index: 0, kind: input, shape index: {}]
  %s1 = inlined_call_operand.vmem [shape: f32[1,128], index: 1, kind: input, shape index: {}]
  %s2 = inlined_call_operand.vmem [shape: f32[1,128], index: 2, kind: input, shape index: {}]
  %s3 = inlined_call_operand.vmem [shape: f32[2,1,16], index: 3, kind: input, shape index: {}]
  %s4 = inlined_call_operand.vmem [shape: bf16[2,128,384], index: 4, kind: input, shape index: {}]
  %s5 = inlined_call_operand.vmem [shape: f32[2,1,384], index: 5, kind: input, shape index: {}]
  %s6 = inlined_call_operand.vmem [shape: bf16[2,128,128], index: 6, kind: input, shape index: {}]
  %s7 = inlined_call_operand.vmem [shape: f32[2,1,128], index: 7, kind: input, shape index: {}]
  %s8 = inlined_call_operand.vmem [shape: f32[2,1,128], index: 8, kind: input, shape index: {}]
  %s9 = inlined_call_operand.vmem [shape: f32[2,1,128], index: 9, kind: input, shape index: {}]
  %s10 = inlined_call_operand.hbm [shape: bf16[2,128,256], index: 10, kind: input, shape index: {}]
  %s11 = inlined_call_operand.vmem [shape: f32[2,1,256], index: 11, kind: input, shape index: {}]
  %s12 = inlined_call_operand.hbm [shape: bf16[2,256,128], index: 12, kind: input, shape index: {}]
  %s13 = inlined_call_operand.vmem [shape: f32[2,1,128], index: 13, kind: input, shape index: {}]
  %s14 = inlined_call_operand.vmem [shape: f32[2,1,128], index: 14, kind: input, shape index: {}]
  %s15 = inlined_call_operand.vmem [shape: f32[2,1,128], index: 15, kind: input, shape index: {}]
  %s16 = inlined_call_operand.vmem [shape: bf16[32,128], index: 16, kind: output, shape index: {}]
  %s17 = sld [smem:[#allocation0]]
  $region109: #{bert_snli_forward.2} parent=0
    _
  %s19 = ssub.s32 1, %s17
  %s20 = scalar_select 0, %s19, %s17
  $region1: #{bert_snli_forward.2} parent=0
    #allocation2 [shape = 'u8[131072]{0}', space=vmem, size = 0x20000, scoped, tag = 'input window, operand 10']
    #allocation3 [shape = 's32[2]{0}', space=sflag, size = 0x8, scoped, tag = 'scoped memory for bert_snli_forward.2']
    #allocation4 [shape = 'u8[131072]{0}', space=vmem, size = 0x20000, scoped, tag = 'input window, operand 12']
    #allocation5 [shape = 's32[2]{0}', space=sflag, size = 0x8, scoped, tag = 'scoped memory for bert_snli_forward.2']
    %21 = vsyncpa [#allocation3], 0
    %s22 = scalar_lea.sflag [#allocation3], 1
    %23 = vsyncpa %s22, 0
    %24 = vsyncpa [#allocation5], 0
    %s25 = scalar_lea.sflag [#allocation5], 1
    %26 = vsyncpa %s25, 0
    loop: start=0, step=1, limit=4
    $region2: #{bert_snli_forward.2} parent=1 // loop_pre_header
      _
    $region3: #{bert_snli_forward.2} parent=1 // loop_header
      %s28 = sphi 0, %s32
      %p29 = scmp.ge.s32.totalorder %s28, 4
      %s36 = sphi 0, %s36
      %s38 = sphi 0, %s36
      %s39 = sphi 0, %s38
      %s53 = sphi 0, %s39
      %s57 = sphi 0, %s57
      %s59 = sphi 0, %s57
      %s60 = sphi 0, %s59
      %s74 = sphi 0, %s60
      %s78 = sphi 0, %s78
      %s80 = sphi 0, %s78
      %s81 = sphi 0, %s80
      %s95 = sphi 0, %s81
      %s99 = sphi 0, %s99
      %s101 = sphi 0, %s99
      %s102 = sphi 0, %s101
      %s116 = sphi 0, %s102
      %s122 = sphi 0, %s124
      %s125 = sphi 0, %s122
      %s126 = sphi 0, %s125
      %s142 = sphi 0, %s126
      %s148 = sphi 0, %s150
      %s151 = sphi 0, %s148
      %s152 = sphi 0, %s151
      %s168 = sphi 0, %s152
      %s174 = sphi 0, %s176
      %s177 = sphi 0, %s174
      %s178 = sphi 0, %s177
      %s194 = sphi 0, %s178
      %s200 = sphi 0, %s202
      %s203 = sphi 0, %s200
      %s204 = sphi 0, %s203
      %s220 = sphi 0, %s204
      %s226 = sphi 0, %s228
      %s229 = sphi 0, %s226
      %s230 = sphi 0, %s229
      %s246 = sphi 0, %s230
      %s252 = sphi 0, %s254
      %s255 = sphi 0, %s252
      %s256 = sphi 0, %s255
      %s272 = sphi 0, %s256
      %s278 = sphi 0, %s280
      %s281 = sphi 0, %s278
      %s282 = sphi 0, %s281
      %s298 = sphi 0, %s282
      %s304 = sphi 0, %s306
      %s307 = sphi 0, %s304
      %s308 = sphi 0, %s307
      %s324 = sphi 0, %s308
      %s330 = sphi 0, %s332
      %s333 = sphi 0, %s330
      %s334 = sphi 0, %s333
      %s350 = sphi 0, %s334
      %s356 = sphi 0, %s358
      %s359 = sphi 0, %s356
      %s360 = sphi 0, %s359
      %s376 = sphi 0, %s360
      %s382 = sphi 0, %s384
      %s385 = sphi 0, %s382
      %s386 = sphi 0, %s385
      %s402 = sphi 0, %s386
      %s408 = sphi 0, %s410
      %s411 = sphi 0, %s408
      %s412 = sphi 0, %s411
      %s428 = sphi 0, %s412
      %s432 = sphi 0, %s432
      %s434 = sphi 0, %s432
      %s435 = sphi 0, %s434
      %s449 = sphi 0, %s435
    $region4: #{bert_snli_forward.2} parent=1 // loop_header_branch
      %31 = sbr.rel (%p29) target = $region8
    $region5: #{bert_snli_forward.2} parent=1 // loop_body
      %s33 = ssub.s32 %s28, 1
      %s34 = ssub.s32 %s28, 2
      %s35 = sadd.s32 %s28, 1
      %s37 = sadd.s32 %s36, 1
      %p40 = scmp.eq.s32.totalorder %s28, 1
      %p41 = scmp.ne.s32.totalorder %s36, %s38
      %p42 = scmp.eq.s32.totalorder %s28, 0
      %p43 = por %p41, %p42
      %p44 = scmp.ne.s32.totalorder %s36, %s38
      %p45 = scmp.eq.s32.totalorder %s33, 1
      %p46 = por %p44, %p45
      %p47 = scmp.ne.s32.totalorder %s38, %s39
      %p48 = scmp.eq.s32.totalorder %s33, 0
      %p49 = por %p47, %p48
      %p50 = scmp.ne.s32.totalorder %s38, %s39
      %p51 = scmp.eq.s32.totalorder %s34, 1
      %p52 = por %p50, %p51
      %p54 = scmp.ne.s32.totalorder %s39, %s53
      %p55 = scmp.eq.s32.totalorder %s34, 0
      %p56 = por %p54, %p55
      %s58 = sadd.s32 %s57, 1
      %p61 = scmp.eq.s32.totalorder %s28, 1
      %p62 = scmp.ne.s32.totalorder %s57, %s59
      %p63 = scmp.eq.s32.totalorder %s28, 0
      %p64 = por %p62, %p63
      %p65 = scmp.ne.s32.totalorder %s57, %s59
      %p66 = scmp.eq.s32.totalorder %s33, 1
      %p67 = por %p65, %p66
      %p68 = scmp.ne.s32.totalorder %s59, %s60
      %p69 = scmp.eq.s32.totalorder %s33, 0
      %p70 = por %p68, %p69
      %p71 = scmp.ne.s32.totalorder %s59, %s60
      %p72 = scmp.eq.s32.totalorder %s34, 1
      %p73 = por %p71, %p72
      %p75 = scmp.ne.s32.totalorder %s60, %s74
      %p76 = scmp.eq.s32.totalorder %s34, 0
      %p77 = por %p75, %p76
      %s79 = sadd.s32 %s78, 1
      %p82 = scmp.eq.s32.totalorder %s28, 1
      %p83 = scmp.ne.s32.totalorder %s78, %s80
      %p84 = scmp.eq.s32.totalorder %s28, 0
      %p85 = por %p83, %p84
      %p86 = scmp.ne.s32.totalorder %s78, %s80
      %p87 = scmp.eq.s32.totalorder %s33, 1
      %p88 = por %p86, %p87
      %p89 = scmp.ne.s32.totalorder %s80, %s81
      %p90 = scmp.eq.s32.totalorder %s33, 0
      %p91 = por %p89, %p90
      %p92 = scmp.ne.s32.totalorder %s80, %s81
      %p93 = scmp.eq.s32.totalorder %s34, 1
      %p94 = por %p92, %p93
      %p96 = scmp.ne.s32.totalorder %s81, %s95
      %p97 = scmp.eq.s32.totalorder %s34, 0
      %p98 = por %p96, %p97
      %s100 = sadd.s32 %s99, 1
      %p103 = scmp.eq.s32.totalorder %s28, 1
      %p104 = scmp.ne.s32.totalorder %s99, %s101
      %p105 = scmp.eq.s32.totalorder %s28, 0
      %p106 = por %p104, %p105
      %p107 = scmp.ne.s32.totalorder %s99, %s101
      %p108 = scmp.eq.s32.totalorder %s33, 1
      %p109 = por %p107, %p108
      %p110 = scmp.ne.s32.totalorder %s101, %s102
      %p111 = scmp.eq.s32.totalorder %s33, 0
      %p112 = por %p110, %p111
      %p113 = scmp.ne.s32.totalorder %s101, %s102
      %p114 = scmp.eq.s32.totalorder %s34, 1
      %p115 = por %p113, %p114
      %p117 = scmp.ne.s32.totalorder %s102, %s116
      %p118 = scmp.eq.s32.totalorder %s34, 0
      %p119 = por %p117, %p118
      %s120 = ssub.s32 %s28, %s35
      %p121 = scmp.eq.s32.totalorder %s120, 0
      %s123 = sadd.s32 %s122, 1
      %s124 = scalar_select %p121, %s122, %s123
      %p127 = pneg %p121
      %p128 = scmp.eq.s32.totalorder %s28, 1
      %p129 = por %p127, %p128
      %p130 = scmp.ne.s32.totalorder %s122, %s125
      %p131 = scmp.eq.s32.totalorder %s28, 0
      %p132 = por %p130, %p131
      %p133 = scmp.ne.s32.totalorder %s122, %s125
      %p134 = scmp.eq.s32.totalorder %s33, 1
      %p135 = por %p133, %p134
      %p136 = scmp.ne.s32.totalorder %s125, %s126
      %p137 = scmp.eq.s32.totalorder %s33, 0
      %p138 = por %p136, %p137
      %p139 = scmp.ne.s32.totalorder %s125, %s126
      %p140 = scmp.eq.s32.totalorder %s34, 1
      %p141 = por %p139, %p140
      %p143 = scmp.ne.s32.totalorder %s126, %s142
      %p144 = scmp.eq.s32.totalorder %s34, 0
      %p145 = por %p143, %p144
      %s146 = ssub.s32 %s28, %s35
      %p147 = scmp.eq.s32.totalorder %s146, 0
      %s149 = sadd.s32 %s148, 1
      %s150 = scalar_select %p147, %s148, %s149
      %p153 = pneg %p147
      %p154 = scmp.eq.s32.totalorder %s28, 1
      %p155 = por %p153, %p154
      %p156 = scmp.ne.s32.totalorder %s148, %s151
      %p157 = scmp.eq.s32.totalorder %s28, 0
      %p158 = por %p156, %p157
      %p159 = scmp.ne.s32.totalorder %s148, %s151
      %p160 = scmp.eq.s32.totalorder %s33, 1
      %p161 = por %p159, %p160
      %p162 = scmp.ne.s32.totalorder %s151, %s152
      %p163 = scmp.eq.s32.totalorder %s33, 0
      %p164 = por %p162, %p163
      %p165 = scmp.ne.s32.totalorder %s151, %s152
      %p166 = scmp.eq.s32.totalorder %s34, 1
      %p167 = por %p165, %p166
      %p169 = scmp.ne.s32.totalorder %s152, %s168
      %p170 = scmp.eq.s32.totalorder %s34, 0
      %p171 = por %p169, %p170
      %s172 = ssub.s32 %s28, %s35
      %p173 = scmp.eq.s32.totalorder %s172, 0
      %s175 = sadd.s32 %s174, 1
      %s176 = scalar_select %p173, %s174, %s175
      %p179 = pneg %p173
      %p180 = scmp.eq.s32.totalorder %s28, 1
      %p181 = por %p179, %p180
      %p182 = scmp.ne.s32.totalorder %s174, %s177
      %p183 = scmp.eq.s32.totalorder %s28, 0
      %p184 = por %p182, %p183
      %p185 = scmp.ne.s32.totalorder %s174, %s177
      %p186 = scmp.eq.s32.totalorder %s33, 1
      %p187 = por %p185, %p186
      %p188 = scmp.ne.s32.totalorder %s177, %s178
      %p189 = scmp.eq.s32.totalorder %s33, 0
      %p190 = por %p188, %p189
      %p191 = scmp.ne.s32.totalorder %s177, %s178
      %p192 = scmp.eq.s32.totalorder %s34, 1
      %p193 = por %p191, %p192
      %p195 = scmp.ne.s32.totalorder %s178, %s194
      %p196 = scmp.eq.s32.totalorder %s34, 0
      %p197 = por %p195, %p196
      %s198 = ssub.s32 %s28, %s35
      %p199 = scmp.eq.s32.totalorder %s198, 0
      %s201 = sadd.s32 %s200, 1
      %s202 = scalar_select %p199, %s200, %s201
      %p205 = pneg %p199
      %p206 = scmp.eq.s32.totalorder %s28, 1
      %p207 = por %p205, %p206
      %p208 = scmp.ne.s32.totalorder %s200, %s203
      %p209 = scmp.eq.s32.totalorder %s28, 0
      %p210 = por %p208, %p209
      %p211 = scmp.ne.s32.totalorder %s200, %s203
      %p212 = scmp.eq.s32.totalorder %s33, 1
      %p213 = por %p211, %p212
      %p214 = scmp.ne.s32.totalorder %s203, %s204
      %p215 = scmp.eq.s32.totalorder %s33, 0
      %p216 = por %p214, %p215
      %p217 = scmp.ne.s32.totalorder %s203, %s204
      %p218 = scmp.eq.s32.totalorder %s34, 1
      %p219 = por %p217, %p218
      %p221 = scmp.ne.s32.totalorder %s204, %s220
      %p222 = scmp.eq.s32.totalorder %s34, 0
      %p223 = por %p221, %p222
      %s224 = ssub.s32 %s28, %s35
      %p225 = scmp.eq.s32.totalorder %s224, 0
      %s227 = sadd.s32 %s226, 1
      %s228 = scalar_select %p225, %s226, %s227
      %p231 = pneg %p225
      %p232 = scmp.eq.s32.totalorder %s28, 1
      %p233 = por %p231, %p232
      %p234 = scmp.ne.s32.totalorder %s226, %s229
      %p235 = scmp.eq.s32.totalorder %s28, 0
      %p236 = por %p234, %p235
      %p237 = scmp.ne.s32.totalorder %s226, %s229
      %p238 = scmp.eq.s32.totalorder %s33, 1
      %p239 = por %p237, %p238
      %p240 = scmp.ne.s32.totalorder %s229, %s230
      %p241 = scmp.eq.s32.totalorder %s33, 0
      %p242 = por %p240, %p241
      %p243 = scmp.ne.s32.totalorder %s229, %s230
      %p244 = scmp.eq.s32.totalorder %s34, 1
      %p245 = por %p243, %p244
      %p247 = scmp.ne.s32.totalorder %s230, %s246
      %p248 = scmp.eq.s32.totalorder %s34, 0
      %p249 = por %p247, %p248
      %s250 = ssub.s32 %s28, %s35
      %p251 = scmp.eq.s32.totalorder %s250, 0
      %s253 = sadd.s32 %s252, 1
      %s254 = scalar_select %p251, %s252, %s253
      %p257 = pneg %p251
      %p258 = scmp.eq.s32.totalorder %s28, 1
      %p259 = por %p257, %p258
      %p260 = scmp.ne.s32.totalorder %s252, %s255
      %p261 = scmp.eq.s32.totalorder %s28, 0
      %p262 = por %p260, %p261
      %p263 = scmp.ne.s32.totalorder %s252, %s255
      %p264 = scmp.eq.s32.totalorder %s33, 1
      %p265 = por %p263, %p264
      %p266 = scmp.ne.s32.totalorder %s255, %s256
      %p267 = scmp.eq.s32.totalorder %s33, 0
      %p268 = por %p266, %p267
      %p269 = scmp.ne.s32.totalorder %s255, %s256
      %p270 = scmp.eq.s32.totalorder %s34, 1
      %p271 = por %p269, %p270
      %p273 = scmp.ne.s32.totalorder %s256, %s272
      %p274 = scmp.eq.s32.totalorder %s34, 0
      %p275 = por %p273, %p274
      %s276 = ssub.s32 %s28, %s35
      %p277 = scmp.eq.s32.totalorder %s276, 0
      %s279 = sadd.s32 %s278, 1
      %s280 = scalar_select %p277, %s278, %s279
      %p283 = pneg %p277
      %p284 = scmp.eq.s32.totalorder %s28, 1
      %p285 = por %p283, %p284
      %p286 = scmp.ne.s32.totalorder %s278, %s281
      %p287 = scmp.eq.s32.totalorder %s28, 0
      %p288 = por %p286, %p287
      %p289 = scmp.ne.s32.totalorder %s278, %s281
      %p290 = scmp.eq.s32.totalorder %s33, 1
      %p291 = por %p289, %p290
      %p292 = scmp.ne.s32.totalorder %s281, %s282
      %p293 = scmp.eq.s32.totalorder %s33, 0
      %p294 = por %p292, %p293
      %p295 = scmp.ne.s32.totalorder %s281, %s282
      %p296 = scmp.eq.s32.totalorder %s34, 1
      %p297 = por %p295, %p296
      %p299 = scmp.ne.s32.totalorder %s282, %s298
      %p300 = scmp.eq.s32.totalorder %s34, 0
      %p301 = por %p299, %p300
      %s302 = ssub.s32 %s28, %s35
      %p303 = scmp.eq.s32.totalorder %s302, 0
      %s305 = sadd.s32 %s304, 1
      %s306 = scalar_select %p303, %s304, %s305
      %p309 = pneg %p303
      %p310 = scmp.eq.s32.totalorder %s28, 1
      %p311 = por %p309, %p310
      %p312 = scmp.ne.s32.totalorder %s304, %s307
      %p313 = scmp.eq.s32.totalorder %s28, 0
      %p314 = por %p312, %p313
      %p315 = scmp.ne.s32.totalorder %s304, %s307
      %p316 = scmp.eq.s32.totalorder %s33, 1
      %p317 = por %p315, %p316
      %p318 = scmp.ne.s32.totalorder %s307, %s308
      %p319 = scmp.eq.s32.totalorder %s33, 0
      %p320 = por %p318, %p319
      %p321 = scmp.ne.s32.totalorder %s307, %s308
      %p322 = scmp.eq.s32.totalorder %s34, 1
      %p323 = por %p321, %p322
      %p325 = scmp.ne.s32.totalorder %s308, %s324
      %p326 = scmp.eq.s32.totalorder %s34, 0
      %p327 = por %p325, %p326
      %s328 = ssub.s32 %s28, %s35
      %p329 = scmp.eq.s32.totalorder %s328, 0
      %s331 = sadd.s32 %s330, 1
      %s332 = scalar_select %p329, %s330, %s331
      %p335 = pneg %p329
      %p336 = scmp.eq.s32.totalorder %s28, 1
      %p337 = por %p335, %p336
      %p338 = scmp.ne.s32.totalorder %s330, %s333
      %p339 = scmp.eq.s32.totalorder %s28, 0
      %p340 = por %p338, %p339
      %p341 = scmp.ne.s32.totalorder %s330, %s333
      %p342 = scmp.eq.s32.totalorder %s33, 1
      %p343 = por %p341, %p342
      %p344 = scmp.ne.s32.totalorder %s333, %s334
      %p345 = scmp.eq.s32.totalorder %s33, 0
      %p346 = por %p344, %p345
      %p347 = scmp.ne.s32.totalorder %s333, %s334
      %p348 = scmp.eq.s32.totalorder %s34, 1
      %p349 = por %p347, %p348
      %p351 = scmp.ne.s32.totalorder %s334, %s350
      %p352 = scmp.eq.s32.totalorder %s34, 0
      %p353 = por %p351, %p352
      %s354 = ssub.s32 %s28, %s35
      %p355 = scmp.eq.s32.totalorder %s354, 0
      %s357 = sadd.s32 %s356, 1
      %s358 = scalar_select %p355, %s356, %s357
      %p361 = pneg %p355
      %p362 = scmp.eq.s32.totalorder %s28, 1
      %p363 = por %p361, %p362
      %p364 = scmp.ne.s32.totalorder %s356, %s359
      %p365 = scmp.eq.s32.totalorder %s28, 0
      %p366 = por %p364, %p365
      %p367 = scmp.ne.s32.totalorder %s356, %s359
      %p368 = scmp.eq.s32.totalorder %s33, 1
      %p369 = por %p367, %p368
      %p370 = scmp.ne.s32.totalorder %s359, %s360
      %p371 = scmp.eq.s32.totalorder %s33, 0
      %p372 = por %p370, %p371
      %p373 = scmp.ne.s32.totalorder %s359, %s360
      %p374 = scmp.eq.s32.totalorder %s34, 1
      %p375 = por %p373, %p374
      %p377 = scmp.ne.s32.totalorder %s360, %s376
      %p378 = scmp.eq.s32.totalorder %s34, 0
      %p379 = por %p377, %p378
      %s380 = ssub.s32 %s28, %s35
      %p381 = scmp.eq.s32.totalorder %s380, 0
      %s383 = sadd.s32 %s382, 1
      %s384 = scalar_select %p381, %s382, %s383
      %p387 = pneg %p381
      %p388 = scmp.eq.s32.totalorder %s28, 1
      %p389 = por %p387, %p388
      %p390 = scmp.ne.s32.totalorder %s382, %s385
      %p391 = scmp.eq.s32.totalorder %s28, 0
      %p392 = por %p390, %p391
      %p393 = scmp.ne.s32.totalorder %s382, %s385
      %p394 = scmp.eq.s32.totalorder %s33, 1
      %p395 = por %p393, %p394
      %p396 = scmp.ne.s32.totalorder %s385, %s386
      %p397 = scmp.eq.s32.totalorder %s33, 0
      %p398 = por %p396, %p397
      %p399 = scmp.ne.s32.totalorder %s385, %s386
      %p400 = scmp.eq.s32.totalorder %s34, 1
      %p401 = por %p399, %p400
      %p403 = scmp.ne.s32.totalorder %s386, %s402
      %p404 = scmp.eq.s32.totalorder %s34, 0
      %p405 = por %p403, %p404
      %s406 = ssub.s32 %s28, %s35
      %p407 = scmp.eq.s32.totalorder %s406, 0
      %s409 = sadd.s32 %s408, 1
      %s410 = scalar_select %p407, %s408, %s409
      %p413 = pneg %p407
      %p414 = scmp.eq.s32.totalorder %s28, 1
      %p415 = por %p413, %p414
      %p416 = scmp.ne.s32.totalorder %s408, %s411
      %p417 = scmp.eq.s32.totalorder %s28, 0
      %p418 = por %p416, %p417
      %p419 = scmp.ne.s32.totalorder %s408, %s411
      %p420 = scmp.eq.s32.totalorder %s33, 1
      %p421 = por %p419, %p420
      %p422 = scmp.ne.s32.totalorder %s411, %s412
      %p423 = scmp.eq.s32.totalorder %s33, 0
      %p424 = por %p422, %p423
      %p425 = scmp.ne.s32.totalorder %s411, %s412
      %p426 = scmp.eq.s32.totalorder %s34, 1
      %p427 = por %p425, %p426
      %p429 = scmp.ne.s32.totalorder %s412, %s428
      %p430 = scmp.eq.s32.totalorder %s34, 0
      %p431 = por %p429, %p430
      %s433 = sadd.s32 %s432, 1
      %p436 = scmp.eq.s32.totalorder %s28, 1
      %p437 = scmp.ne.s32.totalorder %s432, %s434
      %p438 = scmp.eq.s32.totalorder %s28, 0
      %p439 = por %p437, %p438
      %p440 = scmp.ne.s32.totalorder %s432, %s434
      %p441 = scmp.eq.s32.totalorder %s33, 1
      %p442 = por %p440, %p441
      %p443 = scmp.ne.s32.totalorder %s434, %s435
      %p444 = scmp.eq.s32.totalorder %s33, 0
      %p445 = por %p443, %p444
      %p446 = scmp.ne.s32.totalorder %s434, %s435
      %p447 = scmp.eq.s32.totalorder %s34, 1
      %p448 = por %p446, %p447
      %p450 = scmp.ne.s32.totalorder %s435, %s449
      %p451 = scmp.eq.s32.totalorder %s34, 0
      %p452 = por %p450, %p451
      %p453 = scmp.le.s32.totalorder 1, %s28
      %p454 = scmp.lt.s32.totalorder %s28, 3
      %p455 = pnand %p453, %p454
      %p456 = pneg %p455
      // Predicated region
      $region9: #{bert_snli_forward.2} parent=5 // pred_check
        _
      $region10: #{bert_snli_forward.2} parent=5 // pred_check_branch
        %458 = sbr.rel (%p455) target = $region12
      $region11: #{bert_snli_forward.2} parent=5 // pred_region
        %s459 = ssub.s32 %s28, 1
        // Predicated region
        $region13: #{bert_snli_forward.2} parent=11 // pred_check
          %p460 = pneg %p49
        $region14: #{bert_snli_forward.2} parent=11 // pred_check_branch
          %462 = sbr.rel (%p460) target = $region16
        $region15: #{bert_snli_forward.2} parent=11 // pred_region
          _
        $region16: #{bert_snli_forward.2} parent=11 // pred_fallthru
          _
        // Predicated region
        $region17: #{bert_snli_forward.2} parent=11 // pred_check
          %p463 = pneg %p70
        $region18: #{bert_snli_forward.2} parent=11 // pred_check_branch
          %465 = sbr.rel (%p463) target = $region20
        $region19: #{bert_snli_forward.2} parent=11 // pred_region
          _
        $region20: #{bert_snli_forward.2} parent=11 // pred_fallthru
          _
        // Predicated region
        $region21: #{bert_snli_forward.2} parent=11 // pred_check
          %p466 = pneg %p91
        $region22: #{bert_snli_forward.2} parent=11 // pred_check_branch
          %468 = sbr.rel (%p466) target = $region24
        $region23: #{bert_snli_forward.2} parent=11 // pred_region
          _
        $region24: #{bert_snli_forward.2} parent=11 // pred_fallthru
          _
        // Predicated region
        $region25: #{bert_snli_forward.2} parent=11 // pred_check
          %p469 = pneg %p112
        $region26: #{bert_snli_forward.2} parent=11 // pred_check_branch
          %471 = sbr.rel (%p469) target = $region28
        $region27: #{bert_snli_forward.2} parent=11 // pred_region
          _
        $region28: #{bert_snli_forward.2} parent=11 // pred_fallthru
          _
      $region12: #{bert_snli_forward.2} parent=5 // pred_fallthru
        _
      %p472 = scmp.lt.s32.totalorder %s28, 2
      // Predicated region
      $region29: #{bert_snli_forward.2} parent=5 // pred_check
        %p473 = pneg %p472
      $region30: #{bert_snli_forward.2} parent=5 // pred_check_branch
        %475 = sbr.rel (%p473) target = $region32
      $region31: #{bert_snli_forward.2} parent=5 // pred_region
        // Predicated region
        $region33: #{bert_snli_forward.2} parent=31 // pred_check
          %p476 = pneg %p132
        $region34: #{bert_snli_forward.2} parent=31 // pred_check_branch
          %478 = sbr.rel (%p476) target = $region36
        $region35: #{bert_snli_forward.2} parent=31 // pred_region
          %p479 = scmp.lt.s32.totalorder %s28, 1
          %s480 = scalar_select %p479, %s28, 1
          %s481 = smul.addr %s480, 48
          %s482 = smul.addr %s481, 4
          %s483 = scalar_lea.vmem %s4, %s482
        $region36: #{bert_snli_forward.2} parent=31 // pred_fallthru
          _
        // Predicated region
        $region37: #{bert_snli_forward.2} parent=31 // pred_check
          %p484 = pneg %p158
        $region38: #{bert_snli_forward.2} parent=31 // pred_check_branch
          %486 = sbr.rel (%p484) target = $region40
        $region39: #{bert_snli_forward.2} parent=31 // pred_region
          %p487 = scmp.lt.s32.totalorder %s28, 1
          %s488 = scalar_select %p487, %s28, 1
          %s489 = smul.addr %s488, 3
          %s490 = scalar_lea.vmem %s5, %s489
        $region40: #{bert_snli_forward.2} parent=31 // pred_fallthru
          _
        // Predicated region
        $region41: #{bert_snli_forward.2} parent=31 // pred_check
          %p491 = pneg %p184
        $region42: #{bert_snli_forward.2} parent=31 // pred_check_branch
          %493 = sbr.rel (%p491) target = $region44
        $region43: #{bert_snli_forward.2} parent=31 // pred_region
          %p494 = scmp.lt.s32.totalorder %s28, 1
          %s495 = scalar_select %p494, %s28, 1
          %s496 = smul.addr %s495, 16
          %s497 = smul.addr %s496, 4
          %s498 = scalar_lea.vmem %s6, %s497
        $region44: #{bert_snli_forward.2} parent=31 // pred_fallthru
          _
        // Predicated region
        $region45: #{bert_snli_forward.2} parent=31 // pred_check
          %p499 = pneg %p210
        $region46: #{bert_snli_forward.2} parent=31 // pred_check_branch
          %501 = sbr.rel (%p499) target = $region48
        $region47: #{bert_snli_forward.2} parent=31 // pred_region
          %p502 = scmp.lt.s32.totalorder %s28, 1
          %s503 = scalar_select %p502, %s28, 1
          %s504 = scalar_lea.vmem %s7, %s503
        $region48: #{bert_snli_forward.2} parent=31 // pred_fallthru
          _
        // Predicated region
        $region49: #{bert_snli_forward.2} parent=31 // pred_check
          %p505 = pneg %p236
        $region50: #{bert_snli_forward.2} parent=31 // pred_check_branch
          %507 = sbr.rel (%p505) target = $region52
        $region51: #{bert_snli_forward.2} parent=31 // pred_region
          %p508 = scmp.lt.s32.totalorder %s28, 1
          %s509 = scalar_select %p508, %s28, 1
          %s510 = scalar_lea.vmem %s8, %s509
        $region52: #{bert_snli_forward.2} parent=31 // pred_fallthru
          _
        // Predicated region
        $region53: #{bert_snli_forward.2} parent=31 // pred_check
          %p511 = pneg %p262
        $region54: #{bert_snli_forward.2} parent=31 // pred_check_branch
          %513 = sbr.rel (%p511) target = $region56
        $region55: #{bert_snli_forward.2} parent=31 // pred_region
          %p514 = scmp.lt.s32.totalorder %s28, 1
          %s515 = scalar_select %p514, %s28, 1
          %s516 = scalar_lea.vmem %s9, %s515
        $region56: #{bert_snli_forward.2} parent=31 // pred_fallthru
          _
        // Predicated region
        $region57: #{bert_snli_forward.2} parent=31 // pred_check
          %p517 = pneg %p288
        $region58: #{bert_snli_forward.2} parent=31 // pred_check_branch
          %519 = sbr.rel (%p517) target = $region60
        $region59: #{bert_snli_forward.2} parent=31 // pred_region
          %s520 = sand.u32 %s278, 1
          %s521 = scalar_lea.sflag [#allocation3], %s520
          %s522 = sand.u32 %s278, 1
          %s523 = smul.addr %s522, 128
          %s524 = scalar_lea.vmem [#allocation2], %s523
          %526 = vsyncadd %s521, 0
          %s527 = smul.addr %s28, 32
          %s528 = smul.addr %s527, 4
          %s529 = scalar_lea.hbm %s10, %s528
          %s530 = sshll.u32 %s529, 4
          %s531 = int_to_ptr.hbm [resolvable:$true] %s530
          %s532 = sshll.u32 %s524, 4
          %s533 = int_to_ptr.vmem [resolvable:$true] %s532
          %538 = dma.hbm_to_vmem [thread:$0]  %s531, 2048, %s533, %s521, 128, 128, 8
        $region60: #{bert_snli_forward.2} parent=31 // pred_fallthru
          _
        // Predicated region
        $region61: #{bert_snli_forward.2} parent=31 // pred_check
          %p539 = pneg %p314
        $region62: #{bert_snli_forward.2} parent=31 // pred_check_branch
          %541 = sbr.rel (%p539) target = $region64
        $region63: #{bert_snli_forward.2} parent=31 // pred_region
          %p542 = scmp.lt.s32.totalorder %s28, 1
          %s543 = scalar_select %p542, %s28, 1
          %s544 = smul.addr %s543, 2
          %s545 = scalar_lea.vmem %s11, %s544
        $region64: #{bert_snli_forward.2} parent=31 // pred_fallthru
          _
        // Predicated region
        $region65: #{bert_snli_forward.2} parent=31 // pred_check
          %p546 = pneg %p340
        $region66: #{bert_snli_forward.2} parent=31 // pred_check_branch
          %548 = sbr.rel (%p546) target = $region68
        $region67: #{bert_snli_forward.2} parent=31 // pred_region
          %s549 = sand.u32 %s330, 1
          %s550 = scalar_lea.sflag [#allocation5], %s549
          %s551 = sand.u32 %s330, 1
          %s552 = smul.addr %s551, 128
          %s553 = scalar_lea.vmem [#allocation4], %s552
          %555 = vsyncadd %s550, 0
          %s556 = smul.addr %s28, 32
          %s557 = smul.addr %s556, 4
          %s558 = scalar_lea.hbm %s12, %s557
          %s559 = sshll.u32 %s558, 4
          %s560 = int_to_ptr.hbm [resolvable:$true] %s559
          %s561 = sshll.u32 %s553, 4
          %s562 = int_to_ptr.vmem [resolvable:$true] %s561
          %567 = dma.hbm_to_vmem [thread:$0]  %s560, 2048, %s562, %s550, 64, 64, 4
        $region68: #{bert_snli_forward.2} parent=31 // pred_fallthru
          _
        // Predicated region
        $region69: #{bert_snli_forward.2} parent=31 // pred_check
          %p568 = pneg %p366
        $region70: #{bert_snli_forward.2} parent=31 // pred_check_branch
          %570 = sbr.rel (%p568) target = $region72
        $region71: #{bert_snli_forward.2} parent=31 // pred_region
          %p571 = scmp.lt.s32.totalorder %s28, 1
          %s572 = scalar_select %p571, %s28, 1
          %s573 = scalar_lea.vmem %s13, %s572
        $region72: #{bert_snli_forward.2} parent=31 // pred_fallthru
          _
        // Predicated region
        $region73: #{bert_snli_forward.2} parent=31 // pred_check
          %p574 = pneg %p392
        $region74: #{bert_snli_forward.2} parent=31 // pred_check_branch
          %576 = sbr.rel (%p574) target = $region76
        $region75: #{bert_snli_forward.2} parent=31 // pred_region
          %p577 = scmp.lt.s32.totalorder %s28, 1
          %s578 = scalar_select %p577, %s28, 1
          %s579 = scalar_lea.vmem %s14, %s578
        $region76: #{bert_snli_forward.2} parent=31 // pred_fallthru
          _
        // Predicated region
        $region77: #{bert_snli_forward.2} parent=31 // pred_check
          %p580 = pneg %p418
        $region78: #{bert_snli_forward.2} parent=31 // pred_check_branch
          %582 = sbr.rel (%p580) target = $region80
        $region79: #{bert_snli_forward.2} parent=31 // pred_region
          %p583 = scmp.lt.s32.totalorder %s28, 1
          %s584 = scalar_select %p583, %s28, 1
          %s585 = scalar_lea.vmem %s15, %s584
        $region80: #{bert_snli_forward.2} parent=31 // pred_fallthru
          _
      $region32: #{bert_snli_forward.2} parent=5 // pred_fallthru
        _
      %p586 = scmp.le.s32.totalorder 1, %s28
      %p587 = scmp.lt.s32.totalorder %s28, 3
      %p588 = pnand %p586, %p587
      %p589 = pneg %p588
      // Predicated region
      $region81: #{bert_snli_forward.2} parent=5 // pred_check
        _
      $region82: #{bert_snli_forward.2} parent=5 // pred_check_branch
        %591 = sbr.rel (%p588) target = $region84
      $region83: #{bert_snli_forward.2} parent=5 // pred_region
        %s592 = ssub.s32 %s28, 1
        %s593 = sand.u32 %s281, 1
        %s594 = scalar_lea.sflag [#allocation3], %s593
        %s595 = sand.u32 %s281, 1
        %s596 = smul.addr %s595, 128
        %s597 = scalar_lea.vmem [#allocation2], %s596
        // Predicated region
        $region85: #{bert_snli_forward.2} parent=83 // pred_check
          %p598 = pneg %p294
        $region86: #{bert_snli_forward.2} parent=83 // pred_check_branch
          %600 = sbr.rel (%p598) target = $region88
        $region87: #{bert_snli_forward.2} parent=83 // pred_region
          %602 = dma.done %s594, 2048
        $region88: #{bert_snli_forward.2} parent=83 // pred_fallthru
          _
        %s603 = sand.u32 %s333, 1
        %s604 = scalar_lea.sflag [#allocation5], %s603
        %s605 = sand.u32 %s333, 1
        %s606 = smul.addr %s605, 128
        %s607 = scalar_lea.vmem [#allocation4], %s606
        // Predicated region
        $region89: #{bert_snli_forward.2} parent=83 // pred_check
          %p608 = pneg %p346
        $region90: #{bert_snli_forward.2} parent=83 // pred_check_branch
          %610 = sbr.rel (%p608) target = $region92
        $region91: #{bert_snli_forward.2} parent=83 // pred_region
          %612 = dma.done %s604, 2048
        $region92: #{bert_snli_forward.2} parent=83 // pred_fallthru
          _
        %p613 = pneg %p49
        %p614 = pneg %p46
        %p615 = pneg %p70
        %p616 = pneg %p67
        %p617 = pneg %p91
        %p618 = pneg %p88
        %p619 = pneg %p112
        %p620 = pneg %p109
        %p621 = scmp.lt.s32.totalorder %s33, 1
        %s622 = scalar_select %p621, %s33, 1
        %s623 = smul.addr %s622, 48
        %s624 = smul.addr %s623, 4
        %s625 = scalar_lea.vmem %s4, %s624
        %p626 = pneg %p138
        %p627 = pneg %p135
        %p628 = scmp.lt.s32.totalorder %s33, 1
        %s629 = scalar_select %p628, %s33, 1
        %s630 = smul.addr %s629, 3
        %s631 = scalar_lea.vmem %s5, %s630
        %p632 = pneg %p164
        %p633 = pneg %p161
        %p634 = scmp.lt.s32.totalorder %s33, 1
        %s635 = scalar_select %p634, %s33, 1
        %s636 = smul.addr %s635, 16
        %s637 = smul.addr %s636, 4
        %s638 = scalar_lea.vmem %s6, %s637
        %p639 = pneg %p190
        %p640 = pneg %p187
        %p641 = scmp.lt.s32.totalorder %s33, 1
        %s642 = scalar_select %p641, %s33, 1
        %s643 = scalar_lea.vmem %s7, %s642
        %p644 = pneg %p216
        %p645 = pneg %p213
        %p646 = scmp.lt.s32.totalorder %s33, 1
        %s647 = scalar_select %p646, %s33, 1
        %s648 = scalar_lea.vmem %s8, %s647
        %p649 = pneg %p242
        %p650 = pneg %p239
        %p651 = scmp.lt.s32.totalorder %s33, 1
        %s652 = scalar_select %p651, %s33, 1
        %s653 = scalar_lea.vmem %s9, %s652
        %p654 = pneg %p268
        %p655 = pneg %p265
        %s656 = sand.u32 %s281, 1
        %s657 = scalar_lea.sflag [#allocation3], %s656
        %s658 = sand.u32 %s281, 1
        %s659 = smul.addr %s658, 128
        %s660 = scalar_lea.vmem [#allocation2], %s659
        %p661 = pneg %p294
        %p662 = pneg %p291
        %p663 = scmp.lt.s32.totalorder %s33, 1
        %s664 = scalar_select %p663, %s33, 1
        %s665 = smul.addr %s664, 2
        %s666 = scalar_lea.vmem %s11, %s665
        %p667 = pneg %p320
        %p668 = pneg %p317
        %s669 = sand.u32 %s333, 1
        %s670 = scalar_lea.sflag [#allocation5], %s669
        %s671 = sand.u32 %s333, 1
        %s672 = smul.addr %s671, 128
        %s673 = scalar_lea.vmem [#allocation4], %s672
        %p674 = pneg %p346
        %p675 = pneg %p343
        %p676 = scmp.lt.s32.totalorder %s33, 1
        %s677 = scalar_select %p676, %s33, 1
        %s678 = scalar_lea.vmem %s13, %s677
        %p679 = pneg %p372
        %p680 = pneg %p369
        %p681 = scmp.lt.s32.totalorder %s33, 1
        %s682 = scalar_select %p681, %s33, 1
        %s683 = scalar_lea.vmem %s14, %s682
        %p684 = pneg %p398
        %p685 = pneg %p395
        %p686 = scmp.lt.s32.totalorder %s33, 1
        %s687 = scalar_select %p686, %s33, 1
        %s688 = scalar_lea.vmem %s15, %s687
        %p689 = pneg %p424
        %p690 = pneg %p421
        %p691 = pneg %p445
        %p692 = pneg %p442
        %p693 = scmp.lt.s32.totalorder %s33, 1
        %s694 = scalar_select %p693, %s33, 1
        %s695 = smul.addr %s694, 48
        %s696 = smul.addr %s695, 4
        %s697 = scalar_lea.vmem %s4, %s696
        %p698 = scmp.lt.s32.totalorder %s33, 1
        %s699 = scalar_select %p698, %s33, 1
        %s700 = smul.addr %s699, 3
        %s701 = scalar_lea.vmem %s5, %s700
        %p702 = scmp.lt.s32.totalorder %s33, 1
        %s703 = scalar_select %p702, %s33, 1
        %s704 = smul.addr %s703, 16
        %s705 = smul.addr %s704, 4
        %s706 = scalar_lea.vmem %s6, %s705
        %p707 = scmp.lt.s32.totalorder %s33, 1
        %s708 = scalar_select %p707, %s33, 1
        %s709 = scalar_lea.vmem %s7, %s708
        %p710 = scmp.lt.s32.totalorder %s33, 1
        %s711 = scalar_select %p710, %s33, 1
        %s712 = scalar_lea.vmem %s8, %s711
        %p713 = scmp.lt.s32.totalorder %s33, 1
        %s714 = scalar_select %p713, %s33, 1
        %s715 = scalar_lea.vmem %s9, %s714
        %p716 = scmp.lt.s32.totalorder %s33, 1
        %s717 = scalar_select %p716, %s33, 1
        %s718 = smul.addr %s717, 2
        %s719 = scalar_lea.vmem %s11, %s718
        %p720 = scmp.lt.s32.totalorder %s33, 1
        %s721 = scalar_select %p720, %s33, 1
        %s722 = scalar_lea.vmem %s13, %s721
        %p723 = scmp.lt.s32.totalorder %s33, 1
        %s724 = scalar_select %p723, %s33, 1
        %s725 = scalar_lea.vmem %s14, %s724
        %p726 = scmp.lt.s32.totalorder %s33, 1
        %s727 = scalar_select %p726, %s33, 1
        %s728 = scalar_lea.vmem %s15, %s727
        %p730 = scmp.eq.s32.totalorder %s33, 0
        // Predicated region
        $region93: #{bert_snli_forward.2} parent=83 // pred_check
          %p731 = pneg %p730
        $region94: #{bert_snli_forward.2} parent=83 // pred_check_branch
          %733 = sbr.rel (%p731) target = $region96
        $region95: #{bert_snli_forward.2} parent=83 // pred_region
          %v734 = vld [vmem:[%s0] sm:$0xf]
          %v735 = vld [vmem:[%s0 + $0x4] sm:$0xf]
          %v736 = vld [vmem:[%s0 + $0x8] sm:$0xf]
          %v737 = vld [vmem:[%s0 + $0xc] sm:$0xf]
          %v738 = vunpack.c.l.bf16 %v734
          %v739 = vunpack.c.l.bf16 %v735
          %v740 = vunpack.c.l.bf16 %v736
          %v741 = vunpack.c.l.bf16 %v737
          %v742 = vld [vmem:[%s1] sm:$0x1]
          %v743 = vld [vmem:[%s2] sm:$0x1]
          %744 = vadd.xlane.f32.xlu0 %v738
          %v745 = vpop.xlane.xlu0 %744
          %746 = vadd.xlane.f32.xlu0 %v739
          %v747 = vpop.xlane.xlu0 %746
          %748 = vadd.xlane.f32.xlu0 %v740
          %v749 = vpop.xlane.xlu0 %748
          %750 = vadd.xlane.f32.xlu0 %v741
          %v751 = vpop.xlane.xlu0 %750
          %v752 = vrcp.pop 128.0
          %v753 = vmul.f32 128.0, %v752
          %v754 = vsub.f32 1.0, %v753
          %v755 = vmul.f32 %v752, %v754
          %v756 = vadd.f32 %v752, %v755
          %vm757 = vweird.f32 %v752
          %v758 = vsel %vm757, %v752, %v756
          %v759 = vmul.f32 %v745, %v758
          %v760 = vmul.f32 %v747, %v758
          %v761 = vmul.f32 %v749, %v758
          %v762 = vmul.f32 %v751, %v758
          %v763 = vsub.f32 %v738, %v759
          %v764 = vsub.f32 %v739, %v760
          %v765 = vsub.f32 %v740, %v761
          %v766 = vsub.f32 %v741, %v762
          %v767 = vmul.f32 %v763, %v763
          %v768 = vmul.f32 %v764, %v764
          %v769 = vmul.f32 %v765, %v765
          %v770 = vmul.f32 %v766, %v766
          %771 = vadd.xlane.f32.xlu0 %v767
          %v772 = vpop.xlane.xlu0 %771
          %773 = vadd.xlane.f32.xlu0 %v768
          %v774 = vpop.xlane.xlu0 %773
          %775 = vadd.xlane.f32.xlu0 %v769
          %v776 = vpop.xlane.xlu0 %775
          %777 = vadd.xlane.f32.xlu0 %v770
          %v778 = vpop.xlane.xlu0 %777
          %v779 = vmul.f32 %v772, %v758
          %v780 = vmul.f32 %v774, %v758
          %v781 = vmul.f32 %v776, %v758
          %v782 = vmul.f32 %v778, %v758
          %v783 = vadd.f32 %v779, 1e-12
          %v784 = vadd.f32 %v780, 1e-12
          %v785 = vadd.f32 %v781, 1e-12
          %v786 = vadd.f32 %v782, 1e-12
          %v787 = vrsqrt.pop %v783
          %v788 = vmul.f32 %v787, %v783
          %v789 = vmul.f32 %v788, %v787
          %v790 = vmul.f32 0.5, %v789
          %v791 = vsub.f32 1.5, %v790
          %v792 = vmul.f32 %v787, %v791
          %vm793 = vweird.f32 %v783
          %vm794 = vweird.f32 %v787
          %vm795 = vmor %vm793, %vm794
          %v796 = vsel %vm795, %v787, %v792
          %v797 = vrsqrt.pop %v784
          %v798 = vmul.f32 %v797, %v784
          %v799 = vmul.f32 %v798, %v797
          %v800 = vmul.f32 0.5, %v799
          %v801 = vsub.f32 1.5, %v800
          %v802 = vmul.f32 %v797, %v801
          %vm803 = vweird.f32 %v784
          %vm804 = vweird.f32 %v797
          %vm805 = vmor %vm803, %vm804
          %v806 = vsel %vm805, %v797, %v802
          %v807 = vrsqrt.pop %v785
          %v808 = vmul.f32 %v807, %v785
          %v809 = vmul.f32 %v808, %v807
          %v810 = vmul.f32 0.5, %v809
          %v811 = vsub.f32 1.5, %v810
          %v812 = vmul.f32 %v807, %v811
          %vm813 = vweird.f32 %v785
          %vm814 = vweird.f32 %v807
          %vm815 = vmor %vm813, %vm814
          %v816 = vsel %vm815, %v807, %v812
          %v817 = vrsqrt.pop %v786
          %v818 = vmul.f32 %v817, %v786
          %v819 = vmul.f32 %v818, %v817
          %v820 = vmul.f32 0.5, %v819
          %v821 = vsub.f32 1.5, %v820
          %v822 = vmul.f32 %v817, %v821
          %vm823 = vweird.f32 %v786
          %vm824 = vweird.f32 %v817
          %vm825 = vmor %vm823, %vm824
          %v826 = vsel %vm825, %v817, %v822
          %v827 = vmul.f32 %v763, %v796
          %v828 = vmul.f32 %v764, %v806
          %v829 = vmul.f32 %v765, %v816
          %v830 = vmul.f32 %v766, %v826
          %v832 = vperm.slane %v742, 0
          %v834 = vmul.f32 %v827, %v832
          %v835 = vmul.f32 %v828, %v832
          %v836 = vmul.f32 %v829, %v832
          %v837 = vmul.f32 %v830, %v832
          %v839 = vperm.slane %v743, 0
          %v841 = vadd.f32 %v834, %v839
          %v842 = vadd.f32 %v835, %v839
          %v843 = vadd.f32 %v836, %v839
          %v844 = vadd.f32 %v837, %v839
          %v845 = vpack.c.bf16 %v841, %v841
          %v846 = vpack.c.bf16 %v842, %v842
          %v847 = vpack.c.bf16 %v843, %v843
          %v848 = vpack.c.bf16 %v844, %v844
          %849 = vst [vmem:[%s16] sm:$0xf] %v845
          %850 = vst [vmem:[%s16 + $0x4] sm:$0xf] %v846
          %851 = vst [vmem:[%s16 + $0x8] sm:$0xf] %v847
          %852 = vst [vmem:[%s16 + $0xc] sm:$0xf] %v848
        $region96: #{bert_snli_forward.2} parent=83 // pred_fallthru
          _
        %v853 = vld [vmem:[%s16] sm:$0xf]
        %v854 = vld [vmem:[%s16 + $0x4] sm:$0xf]
        %v855 = vld [vmem:[%s16 + $0x8] sm:$0xf]
        %v856 = vld [vmem:[%s16 + $0xc] sm:$0xf]
        %v857 = vunpack.c.l.bf16 %v853
        %v858 = vunpack.c.l.bf16 %v854
        %v859 = vunpack.c.l.bf16 %v855
        %v860 = vunpack.c.l.bf16 %v856
        %v861 = vld [vmem:[%s697] sm:$0xff]
        %v862 = vld [vmem:[%s697 + $0x8] sm:$0xf]
        %v863 = vld [vmem:[%s697 + $0xc] sm:$0xff]
        %v864 = vld [vmem:[%s697 + $0x14] sm:$0xf]
        %v865 = vld [vmem:[%s697 + $0x18] sm:$0xff]
        %v866 = vld [vmem:[%s697 + $0x20] sm:$0xf]
        %v867 = vld [vmem:[%s697 + $0x24] sm:$0xff]
        %v868 = vld [vmem:[%s697 + $0x2c] sm:$0xf]
        %v869 = vld [vmem:[%s697 + $0x30] sm:$0xff]
        %v870 = vld [vmem:[%s697 + $0x38] sm:$0xf]
        %v871 = vld [vmem:[%s697 + $0x3c] sm:$0xff]
        %v872 = vld [vmem:[%s697 + $0x44] sm:$0xf]
        %v873 = vld [vmem:[%s697 + $0x48] sm:$0xff]
        %v874 = vld [vmem:[%s697 + $0x50] sm:$0xf]
        %v875 = vld [vmem:[%s697 + $0x54] sm:$0xff]
        %v876 = vld [vmem:[%s697 + $0x5c] sm:$0xf]
        %v877 = vld [vmem:[%s697 + $0x60] sm:$0xff]
        %v878 = vld [vmem:[%s697 + $0x68] sm:$0xf]
        %v879 = vld [vmem:[%s697 + $0x6c] sm:$0xff]
        %v880 = vld [vmem:[%s697 + $0x74] sm:$0xf]
        %v881 = vld [vmem:[%s697 + $0x78] sm:$0xff]
        %v882 = vld [vmem:[%s697 + $0x80] sm:$0xf]
        %v883 = vld [vmem:[%s697 + $0x84] sm:$0xff]
        %v884 = vld [vmem:[%s697 + $0x8c] sm:$0xf]
        %v885 = vld [vmem:[%s697 + $0x90] sm:$0xff]
        %v886 = vld [vmem:[%s697 + $0x98] sm:$0xf]
        %v887 = vld [vmem:[%s697 + $0x9c] sm:$0xff]
        %v888 = vld [vmem:[%s697 + $0xa4] sm:$0xf]
        %v889 = vld [vmem:[%s697 + $0xa8] sm:$0xff]
        %v890 = vld [vmem:[%s697 + $0xb0] sm:$0xf]
        %v891 = vld [vmem:[%s697 + $0xb4] sm:$0xff]
        %v892 = vld [vmem:[%s697 + $0xbc] sm:$0xf]
        %v893 = vld [vmem:[%s701] sm:$0x7]
        %v895 = vperm.slane %v893, 0
        %v896 = vperm.slane %v893, 1
        %v897 = vperm.slane %v893, 2
        %v905 = vunpack.c.l.b16 %v853
        %v906 = vunpack.c.l.b16 %v854
        %v907 = vunpack.c.l.b16 %v855
        %v908 = vunpack.c.l.b16 %v856
        %v909 = vpack.c.b16 %v906, %v905
        %v910 = vpack.c.b16 %v908, %v907
        %v945 = vunpack.c.l.b16 %v861
        %v946 = vunpack.c.h.b16 %v861
        %v947 = vunpack.c.l.b16 %v862
        %v948 = vunpack.c.l.b16 %v863
        %v949 = vunpack.c.h.b16 %v863
        %v950 = vunpack.c.l.b16 %v864
        %v951 = vunpack.c.l.b16 %v865
        %v952 = vunpack.c.h.b16 %v865
        %v953 = vunpack.c.l.b16 %v866
        %v954 = vunpack.c.l.b16 %v867
        %v955 = vunpack.c.h.b16 %v867
        %v956 = vunpack.c.l.b16 %v868
        %v957 = vunpack.c.l.b16 %v869
        %v958 = vunpack.c.h.b16 %v869
        %v959 = vunpack.c.l.b16 %v870
        %v960 = vunpack.c.l.b16 %v871
        %v961 = vunpack.c.h.b16 %v871
        %v962 = vunpack.c.l.b16 %v872
        %v963 = vunpack.c.l.b16 %v873
        %v964 = vunpack.c.h.b16 %v873
        %v965 = vunpack.c.l.b16 %v874
        %v966 = vunpack.c.l.b16 %v875
        %v967 = vunpack.c.h.b16 %v875
        %v968 = vunpack.c.l.b16 %v876
        %v969 = vunpack.c.l.b16 %v877
        %v970 = vunpack.c.h.b16 %v877
        %v971 = vunpack.c.l.b16 %v878
        %v972 = vunpack.c.l.b16 %v879
        %v973 = vunpack.c.h.b16 %v879
        %v974 = vunpack.c.l.b16 %v880
        %v975 = vunpack.c.l.b16 %v881
        %v976 = vunpack.c.h.b16 %v881
        %v977 = vunpack.c.l.b16 %v882
        %v978 = vunpack.c.l.b16 %v883
        %v979 = vunpack.c.h.b16 %v883
        %v980 = vunpack.c.l.b16 %v884
        %v981 = vunpack.c.l.b16 %v885
        %v982 = vunpack.c.h.b16 %v885
        %v983 = vunpack.c.l.b16 %v886
        %v984 = vunpack.c.l.b16 %v887
        %v985 = vunpack.c.h.b16 %v887
        %v986 = vunpack.c.l.b16 %v888
        %v987 = vunpack.c.l.b16 %v889
        %v988 = vunpack.c.h.b16 %v889
        %v989 = vunpack.c.l.b16 %v890
        %v990 = vunpack.c.l.b16 %v891
        %v991 = vunpack.c.h.b16 %v891
        %v992 = vunpack.c.l.b16 %v892
        %v993 = vpack.c.b16 %v948, %v945
        %v994 = vpack.c.b16 %v949, %v946
        %v995 = vpack.c.b16 %v950, %v947
        %v996 = vpack.c.b16 %v954, %v951
        %v997 = vpack.c.b16 %v955, %v952
        %v998 = vpack.c.b16 %v956, %v953
        %v999 = vpack.c.b16 %v960, %v957
        %v1000 = vpack.c.b16 %v961, %v958
        %v1001 = vpack.c.b16 %v962, %v959
        %v1002 = vpack.c.b16 %v966, %v963
        %v1003 = vpack.c.b16 %v967, %v964
        %v1004 = vpack.c.b16 %v968, %v965
        %v1005 = vpack.c.b16 %v972, %v969
        %v1006 = vpack.c.b16 %v973, %v970
        %v1007 = vpack.c.b16 %v974, %v971
        %v1008 = vpack.c.b16 %v978, %v975
        %v1009 = vpack.c.b16 %v979, %v976
        %v1010 = vpack.c.b16 %v980, %v977
        %v1011 = vpack.c.b16 %v984, %v981
        %v1012 = vpack.c.b16 %v985, %v982
        %v1013 = vpack.c.b16 %v986, %v983
        %v1014 = vpack.c.b16 %v990, %v987
        %v1015 = vpack.c.b16 %v991, %v988
        %v1016 = vpack.c.b16 %v992, %v989
        %1041 = vmatpush.bf16.msra.mxu0 %v1014
        %1042 = vmatpush.bf16.msra.mxu0 %v1011
        %1043 = vmatpush.bf16.msra.mxu0 %v1008
        %1044 = vmatpush.bf16.msra.mxu0 %v1005
        %1045 = vmatpush.bf16.msra.mxu0 %v1002
        %1046 = vmatpush.bf16.msra.mxu0 %v999
        %1047 = vmatpush.bf16.msra.mxu0 %v996
        %1048 = vmatpush.bf16.msra.mxu0 %v993
        %1049 = vmatmul.bf16.gmra.mxu0 %v909
        %v1050 = vpop.f32.mrf.mxu0
        %v1051 = vadd.f32 %v895, %v1050
        %v1052 = vpop.f32.mrf.mxu0
        %v1053 = vadd.f32 %v895, %v1052
        %1054 = vmatmul.bf16.gmra.mxu0 %v910
        %v1055 = vpop.f32.mrf.mxu0
        %v1056 = vadd.f32 %v895, %v1055
        %v1057 = vpop.f32.mrf.mxu0
        %v1058 = vadd.f32 %v895, %v1057
        %1059 = vdwg.mxu0
        %1060 = vmatpush.bf16.msra.mxu0 %v1015
        %1061 = vmatpush.bf16.msra.mxu0 %v1012
        %1062 = vmatpush.bf16.msra.mxu0 %v1009
        %1063 = vmatpush.bf16.msra.mxu0 %v1006
        %1064 = vmatpush.bf16.msra.mxu0 %v1003
        %1065 = vmatpush.bf16.msra.mxu0 %v1000
        %1066 = vmatpush.bf16.msra.mxu0 %v997
        %1067 = vmatpush.bf16.msra.mxu0 %v994
        %1068 = vmatmul.bf16.gmra.mxu0 %v909
        %v1069 = vpop.f32.mrf.mxu0
        %v1070 = vadd.f32 %v896, %v1069
        %v1071 = vpop.f32.mrf.mxu0
        %v1072 = vadd.f32 %v896, %v1071
        %1073 = vmatmul.bf16.gmra.mxu0 %v910
        %v1074 = vpop.f32.mrf.mxu0
        %v1075 = vadd.f32 %v896, %v1074
        %v1076 = vpop.f32.mrf.mxu0
        %v1077 = vadd.f32 %v896, %v1076
        %1078 = vdwg.mxu0
        %1079 = vmatpush.bf16.msra.mxu0 %v1016
        %1080 = vmatpush.bf16.msra.mxu0 %v1013
        %1081 = vmatpush.bf16.msra.mxu0 %v1010
        %1082 = vmatpush.bf16.msra.mxu0 %v1007
        %1083 = vmatpush.bf16.msra.mxu0 %v1004
        %1084 = vmatpush.bf16.msra.mxu0 %v1001
        %1085 = vmatpush.bf16.msra.mxu0 %v998
        %1086 = vmatpush.bf16.msra.mxu0 %v995
        %1087 = vmatmul.bf16.gmra.mxu0 %v909
        %v1088 = vpop.f32.mrf.mxu0
        %v1089 = vadd.f32 %v897, %v1088
        %v1090 = vpop.f32.mrf.mxu0
        %v1091 = vadd.f32 %v897, %v1090
        %1092 = vmatmul.bf16.gmra.mxu0 %v910
        %v1093 = vpop.f32.mrf.mxu0
        %v1094 = vadd.f32 %v897, %v1093
        %v1095 = vpop.f32.mrf.mxu0
        %v1096 = vadd.f32 %v897, %v1095
        %1097 = vdwg.mxu0
        %v1098 = vpack.c.bf16 %v1070, %v1051
        %v1099 = vpack.c.bf16 %v1089, %v1089
        %v1100 = vpack.c.bf16 %v1072, %v1053
        %v1101 = vpack.c.bf16 %v1091, %v1091
        %v1102 = vpack.c.bf16 %v1075, %v1056
        %v1103 = vpack.c.bf16 %v1094, %v1094
        %v1104 = vpack.c.bf16 %v1077, %v1058
        %v1105 = vpack.c.bf16 %v1096, %v1096
        %v1106 = vld [vmem:[%s3] sm:$0x1]
        %v1107 = vld [vmem:[%s3 + $0x1] sm:$0x1]
        %v1110 = vperm.slane %v1106, 0
        %v1111 = vperm.slane %v1107, 0
        %v1114 = vld [vmem:[%s706] sm:$0xf]
        %v1115 = vld [vmem:[%s706 + $0x4] sm:$0xf]
        %v1116 = vld [vmem:[%s706 + $0x8] sm:$0xf]
        %v1117 = vld [vmem:[%s706 + $0xc] sm:$0xf]
        %v1118 = vld [vmem:[%s706 + $0x10] sm:$0xf]
        %v1119 = vld [vmem:[%s706 + $0x14] sm:$0xf]
        %v1120 = vld [vmem:[%s706 + $0x18] sm:$0xf]
        %v1121 = vld [vmem:[%s706 + $0x1c] sm:$0xf]
        %v1122 = vld [vmem:[%s706 + $0x20] sm:$0xf]
        %v1123 = vld [vmem:[%s706 + $0x24] sm:$0xf]
        %v1124 = vld [vmem:[%s706 + $0x28] sm:$0xf]
        %v1125 = vld [vmem:[%s706 + $0x2c] sm:$0xf]
        %v1126 = vld [vmem:[%s706 + $0x30] sm:$0xf]
        %v1127 = vld [vmem:[%s706 + $0x34] sm:$0xf]
        %v1128 = vld [vmem:[%s706 + $0x38] sm:$0xf]
        %v1129 = vld [vmem:[%s706 + $0x3c] sm:$0xf]
        %v1134 = vrot.slane %v1098, 4
        %v1135 = vrot.slane %v1100, 4
        %v1136 = vrot.slane %v1102, 4
        %v1137 = vrot.slane %v1104, 4
        %v1138 = vunpack.c.l.b16 %v1098
        %v1139 = vunpack.c.l.b16 %v1100
        %v1140 = vpack.c.b16 %v1139, %v1138
        %v1141 = vunpack.c.l.b16 %v1134
        %v1142 = vunpack.c.l.b16 %v1135
        %v1143 = vpack.c.b16 %v1142, %v1141
        %vm1144 = vcmask 261120
        %v1146 = vsel %vm1144, %v1140, 0
        %v1149 = vsel %vm1144, %v1143, 0
        %1151 = vmatpush.bf16.xpose.msra.mxu0 0
        %1152 = vmatpush.bf16.xpose.msra.mxu0 0
        %1153 = vmatpush.bf16.xpose.msra.mxu0 0
        %1154 = vmatpush.bf16.xpose.msra.mxu0 0
        %1155 = vmatpush.bf16.xpose.msra.mxu0 0
        %1156 = vmatpush.bf16.xpose.msra.mxu0 0
        %1157 = vmatpush.bf16.xpose.msra.mxu0 0
        %1158 = vmatpush.bf16.xpose.msra.mxu0 %v1149
        %1159 = vmatmul.bf16.gmra.mxu0 %v1146
        %v1160 = vpop.f32.mrf.mxu0
        %v1161 = vadd.f32 0.0, %v1160
        %v1162 = vpop.f32.mrf.mxu0
        %v1163 = vadd.f32 0.0, %v1162
        %1164 = vdwg.mxu0
        %v1165 = vunpack.c.l.b16 %v1102
        %v1166 = vunpack.c.l.b16 %v1104
        %v1167 = vpack.c.b16 %v1166, %v1165
        %v1168 = vunpack.c.l.b16 %v1136
        %v1169 = vunpack.c.l.b16 %v1137
        %v1170 = vpack.c.b16 %v1169, %v1168
        %v1172 = vsel %vm1144, %v1167, 0
        %v1175 = vsel %vm1144, %v1170, 0
        %1177 = vmatpush.bf16.xpose.msra.mxu0 0
        %1178 = vmatpush.bf16.xpose.msra.mxu0 0
        %1179 = vmatpush.bf16.xpose.msra.mxu0 0
        %1180 = vmatpush.bf16.xpose.msra.mxu0 0
        %1181 = vmatpush.bf16.xpose.msra.mxu0 0
        %1182 = vmatpush.bf16.xpose.msra.mxu0 0
        %1183 = vmatpush.bf16.xpose.msra.mxu0 0
        %1184 = vmatpush.bf16.xpose.msra.mxu0 %v1175
        %1185 = vmatmul.bf16.gmra.mxu0 %v1172
        %v1186 = vpop.f32.mrf.mxu0
        %v1187 = vadd.f32 0.0, %v1186
        %v1188 = vpop.f32.mrf.mxu0
        %v1189 = vadd.f32 0.0, %v1188
        %1190 = vdwg.mxu0
        %v1191 = vmul.f32 %v1161, 0.17677669
        %v1192 = vmul.f32 %v1163, 0.17677669
        %v1193 = vmul.f32 %v1187, 0.17677669
        %v1194 = vmul.f32 %v1189, 0.17677669
        %v1195 = vadd.f32 %v1191, %v1110
        %v1196 = vadd.f32 %v1192, %v1110
        %v1197 = vadd.f32 %v1193, %v1111
        %v1198 = vadd.f32 %v1194, %v1111
        %vm1199 = vcmask 130048
        %v1200 = vsel %vm1199, %v1195, -inf
        %1201 = vmax.xlane.f32.xlu0 %v1200
        %v1202 = vpop.xlane.xlu0 %1201
        %v1203 = vsel %vm1199, %v1196, -inf
        %1204 = vmax.xlane.f32.xlu0 %v1203
        %v1205 = vpop.xlane.xlu0 %1204
        %v1206 = vsel %vm1199, %v1197, -inf
        %1207 = vmax.xlane.f32.xlu0 %v1206
        %v1208 = vpop.xlane.xlu0 %1207
        %v1209 = vsel %vm1199, %v1198, -inf
        %1210 = vmax.xlane.f32.xlu0 %v1209
        %v1211 = vpop.xlane.xlu0 %1210
        %v1212 = vsub.f32 %v1195, %v1202
        %v1213 = vsub.f32 %v1196, %v1205
        %v1214 = vsub.f32 %v1197, %v1208
        %v1215 = vsub.f32 %v1198, %v1211
        %v1216 = vmul.f32 %v1212, 1.442695
        %v1217 = vpow.pop %v1216
        %v1218 = vmul.f32 %v1213, 1.442695
        %v1219 = vpow.pop %v1218
        %v1220 = vmul.f32 %v1214, 1.442695
        %v1221 = vpow.pop %v1220
        %v1222 = vmul.f32 %v1215, 1.442695
        %v1223 = vpow.pop %v1222
        %v1224 = vsel %vm1199, %v1217, 0.0
        %1225 = vadd.xlane.f32.xlu0 %v1224
        %v1226 = vpop.xlane.xlu0 %1225
        %v1227 = vsel %vm1199, %v1219, 0.0
        %1228 = vadd.xlane.f32.xlu0 %v1227
        %v1229 = vpop.xlane.xlu0 %1228
        %v1230 = vsel %vm1199, %v1221, 0.0
        %1231 = vadd.xlane.f32.xlu0 %v1230
        %v1232 = vpop.xlane.xlu0 %1231
        %v1233 = vsel %vm1199, %v1223, 0.0
        %1234 = vadd.xlane.f32.xlu0 %v1233
        %v1235 = vpop.xlane.xlu0 %1234
        %v1236 = vrcp.pop %v1226
        %v1237 = vrcp.pop %v1229
        %v1238 = vrcp.pop %v1232
        %v1239 = vrcp.pop %v1235
        %v1240 = vmul.f32 %v1217, %v1236
        %v1241 = vmul.f32 %v1219, %v1237
        %v1242 = vmul.f32 %v1221, %v1238
        %v1243 = vmul.f32 %v1223, %v1239
        %v1244 = vpack.c.bf16 %v1240, %v1240
        %v1245 = vpack.c.bf16 %v1241, %v1241
        %v1246 = vpack.c.bf16 %v1242, %v1242
        %v1247 = vpack.c.bf16 %v1243, %v1243
        %v1250 = vunpack.c.l.b16 %v1244
        %v1251 = vunpack.c.l.b16 %v1245
        %v1252 = vpack.c.b16 %v1251, %v1250
        %v1255 = vunpack.c.l.b16 %v1099
        %v1256 = vunpack.c.l.b16 %v1101
        %v1257 = vpack.c.b16 %v1256, %v1255
        %v1260 = vsel %vm1199, %v1252, 0
        %1262 = vmatpush.bf16.msra.mxu0 0
        %1263 = vmatpush.bf16.msra.mxu0 0
        %1264 = vmatpush.bf16.msra.mxu0 0
        %1265 = vmatpush.bf16.msra.mxu0 0
        %1266 = vmatpush.bf16.msra.mxu0 0
        %1267 = vmatpush.bf16.msra.mxu0 0
        %1268 = vmatpush.bf16.msra.mxu0 0
        %1269 = vmatpush.bf16.msra.mxu0 %v1257
        %1270 = vmatmul.bf16.gmra.mxu0 %v1260
        %v1271 = vpop.f32.mrf.mxu0
        %v1272 = vadd.f32 0.0, %v1271
        %v1273 = vpop.f32.mrf.mxu0
        %v1274 = vadd.f32 0.0, %v1273
        %1275 = vdwg.mxu0
        %v1278 = vunpack.c.l.b16 %v1246
        %v1279 = vunpack.c.l.b16 %v1247
        %v1280 = vpack.c.b16 %v1279, %v1278
        %v1283 = vunpack.c.l.b16 %v1103
        %v1284 = vunpack.c.l.b16 %v1105
        %v1285 = vpack.c.b16 %v1284, %v1283
        %v1288 = vsel %vm1199, %v1280, 0
        %1290 = vmatpush.bf16.msra.mxu0 0
        %1291 = vmatpush.bf16.msra.mxu0 0
        %1292 = vmatpush.bf16.msra.mxu0 0
        %1293 = vmatpush.bf16.msra.mxu0 0
        %1294 = vmatpush.bf16.msra.mxu0 0
        %1295 = vmatpush.bf16.msra.mxu0 0
        %1296 = vmatpush.bf16.msra.mxu0 0
        %1297 = vmatpush.bf16.msra.mxu0 %v1285
        %1298 = vmatmul.bf16.gmra.mxu0 %v1288
        %v1299 = vpop.f32.mrf.mxu0
        %v1300 = vadd.f32 0.0, %v1299
        %v1301 = vpop.f32.mrf.mxu0
        %v1302 = vadd.f32 0.0, %v1301
        %1303 = vdwg.mxu0
        %v1304 = vpack.c.bf16 %v1274, %v1272
        %v1305 = vpack.c.bf16 %v1302, %v1300
        %1306 = vrot.lane.b32.xlu0 %v1098, 96
        %v1307 = vpop.permute.xlu0 %1306
        %1308 = vrot.lane.b32.xlu0 %v1100, 96
        %v1309 = vpop.permute.xlu0 %1308
        %1310 = vrot.lane.b32.xlu0 %v1102, 96
        %v1311 = vpop.permute.xlu0 %1310
        %1312 = vrot.lane.b32.xlu0 %v1104, 96
        %v1313 = vpop.permute.xlu0 %1312
        %v1314 = vrot.slane %v1307, 4
        %v1315 = vrot.slane %v1309, 4
        %v1316 = vrot.slane %v1311, 4
        %v1317 = vrot.slane %v1313, 4
        %1318 = vrot.lane.b32.xlu0 %v1140, 96
        %v1319 = vpop.permute.xlu0 %1318
        %v1320 = vunpack.c.l.b16 %v1314
        %v1321 = vunpack.c.l.b16 %v1315
        %v1322 = vpack.c.b16 %v1321, %v1320
        %v1324 = vsel %vm1144, %v1319, 0
        %v1327 = vsel %vm1144, %v1322, 0
        %1329 = vmatpush.bf16.xpose.msra.mxu0 0
        %1330 = vmatpush.bf16.xpose.msra.mxu0 0
        %1331 = vmatpush.bf16.xpose.msra.mxu0 0
        %1332 = vmatpush.bf16.xpose.msra.mxu0 0
        %1333 = vmatpush.bf16.xpose.msra.mxu0 0
        %1334 = vmatpush.bf16.xpose.msra.mxu0 0
        %1335 = vmatpush.bf16.xpose.msra.mxu0 0
        %1336 = vmatpush.bf16.xpose.msra.mxu0 %v1327
        %1337 = vmatmul.bf16.gmra.mxu0 %v1324
        %v1338 = vpop.f32.mrf.mxu0
        %v1339 = vadd.f32 0.0, %v1338
        %v1340 = vpop.f32.mrf.mxu0
        %v1341 = vadd.f32 0.0, %v1340
        %1342 = vdwg.mxu0
        %1343 = vrot.lane.b32.xlu0 %v1167, 96
        %v1344 = vpop.permute.xlu0 %1343
        %v1345 = vunpack.c.l.b16 %v1316
        %v1346 = vunpack.c.l.b16 %v1317
        %v1347 = vpack.c.b16 %v1346, %v1345
        %v1349 = vsel %vm1144, %v1344, 0
        %v1352 = vsel %vm1144, %v1347, 0
        %1354 = vmatpush.bf16.xpose.msra.mxu0 0
        %1355 = vmatpush.bf16.xpose.msra.mxu0 0
        %1356 = vmatpush.bf16.xpose.msra.mxu0 0
        %1357 = vmatpush.bf16.xpose.msra.mxu0 0
        %1358 = vmatpush.bf16.xpose.msra.mxu0 0
        %1359 = vmatpush.bf16.xpose.msra.mxu0 0
        %1360 = vmatpush.bf16.xpose.msra.mxu0 0
        %1361 = vmatpush.bf16.xpose.msra.mxu0 %v1352
        %1362 = vmatmul.bf16.gmra.mxu0 %v1349
        %v1363 = vpop.f32.mrf.mxu0
        %v1364 = vadd.f32 0.0, %v1363
        %v1365 = vpop.f32.mrf.mxu0
        %v1366 = vadd.f32 0.0, %v1365
        %1367 = vdwg.mxu0
        %v1368 = vmul.f32 %v1339, 0.17677669
        %v1369 = vmul.f32 %v1341, 0.17677669
        %v1370 = vmul.f32 %v1364, 0.17677669
        %v1371 = vmul.f32 %v1366, 0.17677669
        %v1372 = vadd.f32 %v1368, %v1110
        %v1373 = vadd.f32 %v1369, %v1110
        %v1374 = vadd.f32 %v1370, %v1111
        %v1375 = vadd.f32 %v1371, %v1111
        %v1376 = vsel %vm1199, %v1372, -inf
        %1377 = vmax.xlane.f32.xlu0 %v1376
        %v1378 = vpop.xlane.xlu0 %1377
        %v1379 = vsel %vm1199, %v1373, -inf
        %1380 = vmax.xlane.f32.xlu0 %v1379
        %v1381 = vpop.xlane.xlu0 %1380
        %v1382 = vsel %vm1199, %v1374, -inf
        %1383 = vmax.xlane.f32.xlu0 %v1382
        %v1384 = vpop.xlane.xlu0 %1383
        %v1385 = vsel %vm1199, %v1375, -inf
        %1386 = vmax.xlane.f32.xlu0 %v1385
        %v1387 = vpop.xlane.xlu0 %1386
        %v1388 = vsub.f32 %v1372, %v1378
        %v1389 = vsub.f32 %v1373, %v1381
        %v1390 = vsub.f32 %v1374, %v1384
        %v1391 = vsub.f32 %v1375, %v1387
        %v1392 = vmul.f32 %v1388, 1.442695
        %v1393 = vpow.pop %v1392
        %v1394 = vmul.f32 %v1389, 1.442695
        %v1395 = vpow.pop %v1394
        %v1396 = vmul.f32 %v1390, 1.442695
        %v1397 = vpow.pop %v1396
        %v1398 = vmul.f32 %v1391, 1.442695
        %v1399 = vpow.pop %v1398
        %v1400 = vsel %vm1199, %v1393, 0.0
        %1401 = vadd.xlane.f32.xlu0 %v1400
        %v1402 = vpop.xlane.xlu0 %1401
        %v1403 = vsel %vm1199, %v1395, 0.0
        %1404 = vadd.xlane.f32.xlu0 %v1403
        %v1405 = vpop.xlane.xlu0 %1404
        %v1406 = vsel %vm1199, %v1397, 0.0
        %1407 = vadd.xlane.f32.xlu0 %v1406
        %v1408 = vpop.xlane.xlu0 %1407
        %v1409 = vsel %vm1199, %v1399, 0.0
        %1410 = vadd.xlane.f32.xlu0 %v1409
        %v1411 = vpop.xlane.xlu0 %1410
        %v1412 = vrcp.pop %v1402
        %v1413 = vrcp.pop %v1405
        %v1414 = vrcp.pop %v1408
        %v1415 = vrcp.pop %v1411
        %v1416 = vmul.f32 %v1393, %v1412
        %v1417 = vmul.f32 %v1395, %v1413
        %v1418 = vmul.f32 %v1397, %v1414
        %v1419 = vmul.f32 %v1399, %v1415
        %v1420 = vpack.c.bf16 %v1416, %v1416
        %v1421 = vpack.c.bf16 %v1417, %v1417
        %v1422 = vpack.c.bf16 %v1418, %v1418
        %v1423 = vpack.c.bf16 %v1419, %v1419
        %v1426 = vunpack.c.l.b16 %v1420
        %v1427 = vunpack.c.l.b16 %v1421
        %v1428 = vpack.c.b16 %v1427, %v1426
        %1429 = vrot.lane.b32.xlu0 %v1257, 96
        %v1430 = vpop.permute.xlu0 %1429
        %v1433 = vsel %vm1199, %v1428, 0
        %1435 = vmatpush.bf16.msra.mxu0 0
        %1436 = vmatpush.bf16.msra.mxu0 0
        %1437 = vmatpush.bf16.msra.mxu0 0
        %1438 = vmatpush.bf16.msra.mxu0 0
        %1439 = vmatpush.bf16.msra.mxu0 0
        %1440 = vmatpush.bf16.msra.mxu0 0
        %1441 = vmatpush.bf16.msra.mxu0 0
        %1442 = vmatpush.bf16.msra.mxu0 %v1430
        %1443 = vmatmul.bf16.gmra.mxu0 %v1433
        %v1444 = vpop.f32.mrf.mxu0
        %v1445 = vadd.f32 0.0, %v1444
        %v1446 = vpop.f32.mrf.mxu0
        %v1447 = vadd.f32 0.0, %v1446
        %1448 = vdwg.mxu0
        %v1451 = vunpack.c.l.b16 %v1422
        %v1452 = vunpack.c.l.b16 %v1423
        %v1453 = vpack.c.b16 %v1452, %v1451
        %1454 = vrot.lane.b32.xlu0 %v1285, 96
        %v1455 = vpop.permute.xlu0 %1454
        %v1458 = vsel %vm1199, %v1453, 0
        %1460 = vmatpush.bf16.msra.mxu0 0
        %1461 = vmatpush.bf16.msra.mxu0 0
        %1462 = vmatpush.bf16.msra.mxu0 0
        %1463 = vmatpush.bf16.msra.mxu0 0
        %1464 = vmatpush.bf16.msra.mxu0 0
        %1465 = vmatpush.bf16.msra.mxu0 0
        %1466 = vmatpush.bf16.msra.mxu0 0
        %1467 = vmatpush.bf16.msra.mxu0 %v1455
        %1468 = vmatmul.bf16.gmra.mxu0 %v1458
        %v1469 = vpop.f32.mrf.mxu0
        %v1470 = vadd.f32 0.0, %v1469
        %v1471 = vpop.f32.mrf.mxu0
        %v1472 = vadd.f32 0.0, %v1471
        %1473 = vdwg.mxu0
        %v1474 = vpack.c.bf16 %v1447, %v1445
        %v1475 = vpack.c.bf16 %v1472, %v1470
        %v1480 = vunpack.c.l.b16 %v1118
        %v1481 = vunpack.c.l.b16 %v1119
        %v1482 = vunpack.c.l.b16 %v1120
        %v1483 = vunpack.c.l.b16 %v1121
        %v1484 = vpack.c.b16 %v1481, %v1480
        %v1485 = vpack.c.b16 %v1483, %v1482
        %v1489 = vsel %vm1144, %v1474, 0
        %v1492 = vsel %vm1144, %v1475, 0
        %1494 = vmatpush.bf16.msra.mxu0 0
        %1495 = vmatpush.bf16.msra.mxu0 0
        %1496 = vmatpush.bf16.msra.mxu0 0
        %1497 = vmatpush.bf16.msra.mxu0 0
        %1498 = vmatpush.bf16.msra.mxu0 0
        %1499 = vmatpush.bf16.msra.mxu0 0
        %1500 = vmatpush.bf16.msra.mxu0 %v1485
        %1501 = vmatpush.bf16.msra.mxu0 %v1484
        %1502 = vmatmul.bf16.gmra.mxu0 %v1489
        %v1503 = vpop.f32.mrf.mxu0
        %v1504 = vadd.f32 0.0, %v1503
        %v1505 = vpop.f32.mrf.mxu0
        %v1506 = vadd.f32 0.0, %v1505
        %1507 = vmatmul.bf16.gmra.mxu0 %v1492
        %v1508 = vpop.f32.mrf.mxu0
        %v1509 = vadd.f32 0.0, %v1508
        %v1510 = vpop.f32.mrf.mxu0
        %v1511 = vadd.f32 0.0, %v1510
        %1512 = vdwg.mxu0
        %v1517 = vunpack.c.l.b16 %v1114
        %v1518 = vunpack.c.l.b16 %v1115
        %v1519 = vunpack.c.l.b16 %v1116
        %v1520 = vunpack.c.l.b16 %v1117
        %v1521 = vpack.c.b16 %v1518, %v1517
        %v1522 = vpack.c.b16 %v1520, %v1519
        %v1526 = vsel %vm1144, %v1304, 0
        %v1529 = vsel %vm1144, %v1305, 0
        %1531 = vmatpush.bf16.msra.mxu0 0
        %1532 = vmatpush.bf16.msra.mxu0 0
        %1533 = vmatpush.bf16.msra.mxu0 0
        %1534 = vmatpush.bf16.msra.mxu0 0
        %1535 = vmatpush.bf16.msra.mxu0 0
        %1536 = vmatpush.bf16.msra.mxu0 0
        %1537 = vmatpush.bf16.msra.mxu0 %v1522
        %1538 = vmatpush.bf16.msra.mxu0 %v1521
        %1539 = vmatmul.bf16.gmra.mxu0 %v1526
        %v1540 = vpop.f32.mrf.mxu0
        %v1541 = vadd.f32 %v1504, %v1540
        %v1542 = vpop.f32.mrf.mxu0
        %v1543 = vadd.f32 %v1506, %v1542
        %1544 = vmatmul.bf16.gmra.mxu0 %v1529
        %v1545 = vpop.f32.mrf.mxu0
        %v1546 = vadd.f32 %v1509, %v1545
        %v1547 = vpop.f32.mrf.mxu0
        %v1548 = vadd.f32 %v1511, %v1547
        %1549 = vdwg.mxu0
        %1550 = vrot.lane.b32.xlu0 %v1098, 64
        %v1551 = vpop.permute.xlu0 %1550
        %1552 = vrot.lane.b32.xlu0 %v1100, 64
        %v1553 = vpop.permute.xlu0 %1552
        %1554 = vrot.lane.b32.xlu0 %v1102, 64
        %v1555 = vpop.permute.xlu0 %1554
        %1556 = vrot.lane.b32.xlu0 %v1104, 64
        %v1557 = vpop.permute.xlu0 %1556
        %v1558 = vrot.slane %v1551, 4
        %v1559 = vrot.slane %v1553, 4
        %v1560 = vrot.slane %v1555, 4
        %v1561 = vrot.slane %v1557, 4
        %1562 = vrot.lane.b32.xlu0 %v1140, 64
        %v1563 = vpop.permute.xlu0 %1562
        %v1564 = vunpack.c.l.b16 %v1558
        %v1565 = vunpack.c.l.b16 %v1559
        %v1566 = vpack.c.b16 %v1565, %v1564
        %v1568 = vsel %vm1144, %v1563, 0
        %v1571 = vsel %vm1144, %v1566, 0
        %1573 = vmatpush.bf16.xpose.msra.mxu0 0
        %1574 = vmatpush.bf16.xpose.msra.mxu0 0
        %1575 = vmatpush.bf16.xpose.msra.mxu0 0
        %1576 = vmatpush.bf16.xpose.msra.mxu0 0
        %1577 = vmatpush.bf16.xpose.msra.mxu0 0
        %1578 = vmatpush.bf16.xpose.msra.mxu0 0
        %1579 = vmatpush.bf16.xpose.msra.mxu0 0
        %1580 = vmatpush.bf16.xpose.msra.mxu0 %v1571
        %1581 = vmatmul.bf16.gmra.mxu0 %v1568
        %v1582 = vpop.f32.mrf.mxu0
        %v1583 = vadd.f32 0.0, %v1582
        %v1584 = vpop.f32.mrf.mxu0
        %v1585 = vadd.f32 0.0, %v1584
        %1586 = vdwg.mxu0
        %1587 = vrot.lane.b32.xlu0 %v1167, 64
        %v1588 = vpop.permute.xlu0 %1587
        %v1589 = vunpack.c.l.b16 %v1560
        %v1590 = vunpack.c.l.b16 %v1561
        %v1591 = vpack.c.b16 %v1590, %v1589
        %v1593 = vsel %vm1144, %v1588, 0
        %v1596 = vsel %vm1144, %v1591, 0
        %1598 = vmatpush.bf16.xpose.msra.mxu0 0
        %1599 = vmatpush.bf16.xpose.msra.mxu0 0
        %1600 = vmatpush.bf16.xpose.msra.mxu0 0
        %1601 = vmatpush.bf16.xpose.msra.mxu0 0
        %1602 = vmatpush.bf16.xpose.msra.mxu0 0
        %1603 = vmatpush.bf16.xpose.msra.mxu0 0
        %1604 = vmatpush.bf16.xpose.msra.mxu0 0
        %1605 = vmatpush.bf16.xpose.msra.mxu0 %v1596
        %1606 = vmatmul.bf16.gmra.mxu0 %v1593
        %v1607 = vpop.f32.mrf.mxu0
        %v1608 = vadd.f32 0.0, %v1607
        %v1609 = vpop.f32.mrf.mxu0
        %v1610 = vadd.f32 0.0, %v1609
        %1611 = vdwg.mxu0
        %v1612 = vmul.f32 %v1583, 0.17677669
        %v1613 = vmul.f32 %v1585, 0.17677669
        %v1614 = vmul.f32 %v1608, 0.17677669
        %v1615 = vmul.f32 %v1610, 0.17677669
        %v1616 = vadd.f32 %v1612, %v1110
        %v1617 = vadd.f32 %v1613, %v1110
        %v1618 = vadd.f32 %v1614, %v1111
        %v1619 = vadd.f32 %v1615, %v1111
        %v1620 = vsel %vm1199, %v1616, -inf
        %1621 = vmax.xlane.f32.xlu0 %v1620
        %v1622 = vpop.xlane.xlu0 %1621
        %v1623 = vsel %vm1199, %v1617, -inf
        %1624 = vmax.xlane.f32.xlu0 %v1623
        %v1625 = vpop.xlane.xlu0 %1624
        %v1626 = vsel %vm1199, %v1618, -inf
        %1627 = vmax.xlane.f32.xlu0 %v1626
        %v1628 = vpop.xlane.xlu0 %1627
        %v1629 = vsel %vm1199, %v1619, -inf
        %1630 = vmax.xlane.f32.xlu0 %v1629
        %v1631 = vpop.xlane.xlu0 %1630
        %v1632 = vsub.f32 %v1616, %v1622
        %v1633 = vsub.f32 %v1617, %v1625
        %v1634 = vsub.f32 %v1618, %v1628
        %v1635 = vsub.f32 %v1619, %v1631
        %v1636 = vmul.f32 %v1632, 1.442695
        %v1637 = vpow.pop %v1636
        %v1638 = vmul.f32 %v1633, 1.442695
        %v1639 = vpow.pop %v1638
        %v1640 = vmul.f32 %v1634, 1.442695
        %v1641 = vpow.pop %v1640
        %v1642 = vmul.f32 %v1635, 1.442695
        %v1643 = vpow.pop %v1642
        %v1644 = vsel %vm1199, %v1637, 0.0
        %1645 = vadd.xlane.f32.xlu0 %v1644
        %v1646 = vpop.xlane.xlu0 %1645
        %v1647 = vsel %vm1199, %v1639, 0.0
        %1648 = vadd.xlane.f32.xlu0 %v1647
        %v1649 = vpop.xlane.xlu0 %1648
        %v1650 = vsel %vm1199, %v1641, 0.0
        %1651 = vadd.xlane.f32.xlu0 %v1650
        %v1652 = vpop.xlane.xlu0 %1651
        %v1653 = vsel %vm1199, %v1643, 0.0
        %1654 = vadd.xlane.f32.xlu0 %v1653
        %v1655 = vpop.xlane.xlu0 %1654
        %v1656 = vrcp.pop %v1646
        %v1657 = vrcp.pop %v1649
        %v1658 = vrcp.pop %v1652
        %v1659 = vrcp.pop %v1655
        %v1660 = vmul.f32 %v1637, %v1656
        %v1661 = vmul.f32 %v1639, %v1657
        %v1662 = vmul.f32 %v1641, %v1658
        %v1663 = vmul.f32 %v1643, %v1659
        %v1664 = vpack.c.bf16 %v1660, %v1660
        %v1665 = vpack.c.bf16 %v1661, %v1661
        %v1666 = vpack.c.bf16 %v1662, %v1662
        %v1667 = vpack.c.bf16 %v1663, %v1663
        %v1670 = vunpack.c.l.b16 %v1664
        %v1671 = vunpack.c.l.b16 %v1665
        %v1672 = vpack.c.b16 %v1671, %v1670
        %1673 = vrot.lane.b32.xlu0 %v1257, 64
        %v1674 = vpop.permute.xlu0 %1673
        %v1677 = vsel %vm1199, %v1672, 0
        %1679 = vmatpush.bf16.msra.mxu0 0
        %1680 = vmatpush.bf16.msra.mxu0 0
        %1681 = vmatpush.bf16.msra.mxu0 0
        %1682 = vmatpush.bf16.msra.mxu0 0
        %1683 = vmatpush.bf16.msra.mxu0 0
        %1684 = vmatpush.bf16.msra.mxu0 0
        %1685 = vmatpush.bf16.msra.mxu0 0
        %1686 = vmatpush.bf16.msra.mxu0 %v1674
        %1687 = vmatmul.bf16.gmra.mxu0 %v1677
        %v1688 = vpop.f32.mrf.mxu0
        %v1689 = vadd.f32 0.0, %v1688
        %v1690 = vpop.f32.mrf.mxu0
        %v1691 = vadd.f32 0.0, %v1690
        %1692 = vdwg.mxu0
        %v1695 = vunpack.c.l.b16 %v1666
        %v1696 = vunpack.c.l.b16 %v1667
        %v1697 = vpack.c.b16 %v1696, %v1695
        %1698 = vrot.lane.b32.xlu0 %v1285, 64
        %v1699 = vpop.permute.xlu0 %1698
        %v1702 = vsel %vm1199, %v1697, 0
        %1704 = vmatpush.bf16.msra.mxu0 0
        %1705 = vmatpush.bf16.msra.mxu0 0
        %1706 = vmatpush.bf16.msra.mxu0 0
        %1707 = vmatpush.bf16.msra.mxu0 0
        %1708 = vmatpush.bf16.msra.mxu0 0
        %1709 = vmatpush.bf16.msra.mxu0 0
        %1710 = vmatpush.bf16.msra.mxu0 0
        %1711 = vmatpush.bf16.msra.mxu0 %v1699
        %1712 = vmatmul.bf16.gmra.mxu0 %v1702
        %v1713 = vpop.f32.mrf.mxu0
        %v1714 = vadd.f32 0.0, %v1713
        %v1715 = vpop.f32.mrf.mxu0
        %v1716 = vadd.f32 0.0, %v1715
        %1717 = vdwg.mxu0
        %v1718 = vpack.c.bf16 %v1691, %v1689
        %v1719 = vpack.c.bf16 %v1716, %v1714
        %v1724 = vunpack.c.l.b16 %v1122
        %v1725 = vunpack.c.l.b16 %v1123
        %v1726 = vunpack.c.l.b16 %v1124
        %v1727 = vunpack.c.l.b16 %v1125
        %v1728 = vpack.c.b16 %v1725, %v1724
        %v1729 = vpack.c.b16 %v1727, %v1726
        %v1733 = vsel %vm1144, %v1718, 0
        %v1736 = vsel %vm1144, %v1719, 0
        %1738 = vmatpush.bf16.msra.mxu0 0
        %1739 = vmatpush.bf16.msra.mxu0 0
        %1740 = vmatpush.bf16.msra.mxu0 0
        %1741 = vmatpush.bf16.msra.mxu0 0
        %1742 = vmatpush.bf16.msra.mxu0 0
        %1743 = vmatpush.bf16.msra.mxu0 0
        %1744 = vmatpush.bf16.msra.mxu0 %v1729
        %1745 = vmatpush.bf16.msra.mxu0 %v1728
        %1746 = vmatmul.bf16.gmra.mxu0 %v1733
        %v1747 = vpop.f32.mrf.mxu0
        %v1748 = vadd.f32 0.0, %v1747
        %v1749 = vpop.f32.mrf.mxu0
        %v1750 = vadd.f32 0.0, %v1749
        %1751 = vmatmul.bf16.gmra.mxu0 %v1736
        %v1752 = vpop.f32.mrf.mxu0
        %v1753 = vadd.f32 0.0, %v1752
        %v1754 = vpop.f32.mrf.mxu0
        %v1755 = vadd.f32 0.0, %v1754
        %1756 = vdwg.mxu0
        %v1757 = vadd.f32 %v1541, %v1748
        %v1758 = vadd.f32 %v1543, %v1750
        %v1759 = vadd.f32 %v1546, %v1753
        %v1760 = vadd.f32 %v1548, %v1755
        %1761 = vrot.lane.b32.xlu0 %v1098, 32
        %v1762 = vpop.permute.xlu0 %1761
        %1763 = vrot.lane.b32.xlu0 %v1100, 32
        %v1764 = vpop.permute.xlu0 %1763
        %1765 = vrot.lane.b32.xlu0 %v1102, 32
        %v1766 = vpop.permute.xlu0 %1765
        %1767 = vrot.lane.b32.xlu0 %v1104, 32
        %v1768 = vpop.permute.xlu0 %1767
        %v1769 = vrot.slane %v1762, 4
        %v1770 = vrot.slane %v1764, 4
        %v1771 = vrot.slane %v1766, 4
        %v1772 = vrot.slane %v1768, 4
        %1773 = vrot.lane.b32.xlu0 %v1140, 32
        %v1774 = vpop.permute.xlu0 %1773
        %v1775 = vunpack.c.l.b16 %v1769
        %v1776 = vunpack.c.l.b16 %v1770
        %v1777 = vpack.c.b16 %v1776, %v1775
        %v1779 = vsel %vm1144, %v1774, 0
        %v1782 = vsel %vm1144, %v1777, 0
        %1784 = vmatpush.bf16.xpose.msra.mxu0 0
        %1785 = vmatpush.bf16.xpose.msra.mxu0 0
        %1786 = vmatpush.bf16.xpose.msra.mxu0 0
        %1787 = vmatpush.bf16.xpose.msra.mxu0 0
        %1788 = vmatpush.bf16.xpose.msra.mxu0 0
        %1789 = vmatpush.bf16.xpose.msra.mxu0 0
        %1790 = vmatpush.bf16.xpose.msra.mxu0 0
        %1791 = vmatpush.bf16.xpose.msra.mxu0 %v1782
        %1792 = vmatmul.bf16.gmra.mxu0 %v1779
        %v1793 = vpop.f32.mrf.mxu0
        %v1794 = vadd.f32 0.0, %v1793
        %v1795 = vpop.f32.mrf.mxu0
        %v1796 = vadd.f32 0.0, %v1795
        %1797 = vdwg.mxu0
        %1798 = vrot.lane.b32.xlu0 %v1167, 32
        %v1799 = vpop.permute.xlu0 %1798
        %v1800 = vunpack.c.l.b16 %v1771
        %v1801 = vunpack.c.l.b16 %v1772
        %v1802 = vpack.c.b16 %v1801, %v1800
        %v1804 = vsel %vm1144, %v1799, 0
        %v1807 = vsel %vm1144, %v1802, 0
        %1809 = vmatpush.bf16.xpose.msra.mxu0 0
        %1810 = vmatpush.bf16.xpose.msra.mxu0 0
        %1811 = vmatpush.bf16.xpose.msra.mxu0 0
        %1812 = vmatpush.bf16.xpose.msra.mxu0 0
        %1813 = vmatpush.bf16.xpose.msra.mxu0 0
        %1814 = vmatpush.bf16.xpose.msra.mxu0 0
        %1815 = vmatpush.bf16.xpose.msra.mxu0 0
        %1816 = vmatpush.bf16.xpose.msra.mxu0 %v1807
        %1817 = vmatmul.bf16.gmra.mxu0 %v1804
        %v1818 = vpop.f32.mrf.mxu0
        %v1819 = vadd.f32 0.0, %v1818
        %v1820 = vpop.f32.mrf.mxu0
        %v1821 = vadd.f32 0.0, %v1820
        %1822 = vdwg.mxu0
        %v1823 = vmul.f32 %v1794, 0.17677669
        %v1824 = vmul.f32 %v1796, 0.17677669
        %v1825 = vmul.f32 %v1819, 0.17677669
        %v1826 = vmul.f32 %v1821, 0.17677669
        %v1827 = vadd.f32 %v1823, %v1110
        %v1828 = vadd.f32 %v1824, %v1110
        %v1829 = vadd.f32 %v1825, %v1111
        %v1830 = vadd.f32 %v1826, %v1111
        %v1831 = vsel %vm1199, %v1827, -inf
        %1832 = vmax.xlane.f32.xlu0 %v1831
        %v1833 = vpop.xlane.xlu0 %1832
        %v1834 = vsel %vm1199, %v1828, -inf
        %1835 = vmax.xlane.f32.xlu0 %v1834
        %v1836 = vpop.xlane.xlu0 %1835
        %v1837 = vsel %vm1199, %v1829, -inf
        %1838 = vmax.xlane.f32.xlu0 %v1837
        %v1839 = vpop.xlane.xlu0 %1838
        %v1840 = vsel %vm1199, %v1830, -inf
        %1841 = vmax.xlane.f32.xlu0 %v1840
        %v1842 = vpop.xlane.xlu0 %1841
        %v1843 = vsub.f32 %v1827, %v1833
        %v1844 = vsub.f32 %v1828, %v1836
        %v1845 = vsub.f32 %v1829, %v1839
        %v1846 = vsub.f32 %v1830, %v1842
        %v1847 = vmul.f32 %v1843, 1.442695
        %v1848 = vpow.pop %v1847
        %v1849 = vmul.f32 %v1844, 1.442695
        %v1850 = vpow.pop %v1849
        %v1851 = vmul.f32 %v1845, 1.442695
        %v1852 = vpow.pop %v1851
        %v1853 = vmul.f32 %v1846, 1.442695
        %v1854 = vpow.pop %v1853
        %v1855 = vsel %vm1199, %v1848, 0.0
        %1856 = vadd.xlane.f32.xlu0 %v1855
        %v1857 = vpop.xlane.xlu0 %1856
        %v1858 = vsel %vm1199, %v1850, 0.0
        %1859 = vadd.xlane.f32.xlu0 %v1858
        %v1860 = vpop.xlane.xlu0 %1859
        %v1861 = vsel %vm1199, %v1852, 0.0
        %1862 = vadd.xlane.f32.xlu0 %v1861
        %v1863 = vpop.xlane.xlu0 %1862
        %v1864 = vsel %vm1199, %v1854, 0.0
        %1865 = vadd.xlane.f32.xlu0 %v1864
        %v1866 = vpop.xlane.xlu0 %1865
        %v1867 = vrcp.pop %v1857
        %v1868 = vrcp.pop %v1860
        %v1869 = vrcp.pop %v1863
        %v1870 = vrcp.pop %v1866
        %v1871 = vmul.f32 %v1848, %v1867
        %v1872 = vmul.f32 %v1850, %v1868
        %v1873 = vmul.f32 %v1852, %v1869
        %v1874 = vmul.f32 %v1854, %v1870
        %v1875 = vpack.c.bf16 %v1871, %v1871
        %v1876 = vpack.c.bf16 %v1872, %v1872
        %v1877 = vpack.c.bf16 %v1873, %v1873
        %v1878 = vpack.c.bf16 %v1874, %v1874
        %v1881 = vunpack.c.l.b16 %v1875
        %v1882 = vunpack.c.l.b16 %v1876
        %v1883 = vpack.c.b16 %v1882, %v1881
        %1884 = vrot.lane.b32.xlu0 %v1257, 32
        %v1885 = vpop.permute.xlu0 %1884
        %v1888 = vsel %vm1199, %v1883, 0
        %1890 = vmatpush.bf16.msra.mxu0 0
        %1891 = vmatpush.bf16.msra.mxu0 0
        %1892 = vmatpush.bf16.msra.mxu0 0
        %1893 = vmatpush.bf16.msra.mxu0 0
        %1894 = vmatpush.bf16.msra.mxu0 0
        %1895 = vmatpush.bf16.msra.mxu0 0
        %1896 = vmatpush.bf16.msra.mxu0 0
        %1897 = vmatpush.bf16.msra.mxu0 %v1885
        %1898 = vmatmul.bf16.gmra.mxu0 %v1888
        %v1899 = vpop.f32.mrf.mxu0
        %v1900 = vadd.f32 0.0, %v1899
        %v1901 = vpop.f32.mrf.mxu0
        %v1902 = vadd.f32 0.0, %v1901
        %1903 = vdwg.mxu0
        %v1906 = vunpack.c.l.b16 %v1877
        %v1907 = vunpack.c.l.b16 %v1878
        %v1908 = vpack.c.b16 %v1907, %v1906
        %1909 = vrot.lane.b32.xlu0 %v1285, 32
        %v1910 = vpop.permute.xlu0 %1909
        %v1913 = vsel %vm1199, %v1908, 0
        %1915 = vmatpush.bf16.msra.mxu0 0
        %1916 = vmatpush.bf16.msra.mxu0 0
        %1917 = vmatpush.bf16.msra.mxu0 0
        %1918 = vmatpush.bf16.msra.mxu0 0
        %1919 = vmatpush.bf16.msra.mxu0 0
        %1920 = vmatpush.bf16.msra.mxu0 0
        %1921 = vmatpush.bf16.msra.mxu0 0
        %1922 = vmatpush.bf16.msra.mxu0 %v1910
        %1923 = vmatmul.bf16.gmra.mxu0 %v1913
        %v1924 = vpop.f32.mrf.mxu0
        %v1925 = vadd.f32 0.0, %v1924
        %v1926 = vpop.f32.mrf.mxu0
        %v1927 = vadd.f32 0.0, %v1926
        %1928 = vdwg.mxu0
        %v1929 = vpack.c.bf16 %v1902, %v1900
        %v1930 = vpack.c.bf16 %v1927, %v1925
        %v1935 = vunpack.c.l.b16 %v1126
        %v1936 = vunpack.c.l.b16 %v1127
        %v1937 = vunpack.c.l.b16 %v1128
        %v1938 = vunpack.c.l.b16 %v1129
        %v1939 = vpack.c.b16 %v1936, %v1935
        %v1940 = vpack.c.b16 %v1938, %v1937
        %v1944 = vsel %vm1144, %v1929, 0
        %v1947 = vsel %vm1144, %v1930, 0
        %1949 = vmatpush.bf16.msra.mxu0 0
        %1950 = vmatpush.bf16.msra.mxu0 0
        %1951 = vmatpush.bf16.msra.mxu0 0
        %1952 = vmatpush.bf16.msra.mxu0 0
        %1953 = vmatpush.bf16.msra.mxu0 0
        %1954 = vmatpush.bf16.msra.mxu0 0
        %1955 = vmatpush.bf16.msra.mxu0 %v1940
        %1956 = vmatpush.bf16.msra.mxu0 %v1939
        %1957 = vmatmul.bf16.gmra.mxu0 %v1944
        %v1958 = vpop.f32.mrf.mxu0
        %v1959 = vadd.f32 0.0, %v1958
        %v1960 = vpop.f32.mrf.mxu0
        %v1961 = vadd.f32 0.0, %v1960
        %1962 = vmatmul.bf16.gmra.mxu0 %v1947
        %v1963 = vpop.f32.mrf.mxu0
        %v1964 = vadd.f32 0.0, %v1963
        %v1965 = vpop.f32.mrf.mxu0
        %v1966 = vadd.f32 0.0, %v1965
        %1967 = vdwg.mxu0
        %v1968 = vadd.f32 %v1757, %v1959
        %v1969 = vadd.f32 %v1758, %v1961
        %v1970 = vadd.f32 %v1759, %v1964
        %v1971 = vadd.f32 %v1760, %v1966
        %v1972 = vadd.f32 %v857, %v1968
        %v1973 = vadd.f32 %v858, %v1969
        %v1974 = vadd.f32 %v859, %v1970
        %v1975 = vadd.f32 %v860, %v1971
        %v1976 = vld [vmem:[%s709] sm:$0x1]
        %v1978 = vperm.slane %v1976, 0
        %v1980 = vadd.f32 %v1972, %v1978
        %v1981 = vadd.f32 %v1973, %v1978
        %v1982 = vadd.f32 %v1974, %v1978
        %v1983 = vadd.f32 %v1975, %v1978
        %v1984 = vld [vmem:[%s712] sm:$0x1]
        %v1985 = vld [vmem:[%s715] sm:$0x1]
        %1986 = vadd.xlane.f32.xlu0 %v1980
        %v1987 = vpop.xlane.xlu0 %1986
        %1988 = vadd.xlane.f32.xlu0 %v1981
        %v1989 = vpop.xlane.xlu0 %1988
        %1990 = vadd.xlane.f32.xlu0 %v1982
        %v1991 = vpop.xlane.xlu0 %1990
        %1992 = vadd.xlane.f32.xlu0 %v1983
        %v1993 = vpop.xlane.xlu0 %1992
        %v1994 = vrcp.pop 128.0
        %v1995 = vmul.f32 128.0, %v1994
        %v1996 = vsub.f32 1.0, %v1995
        %v1997 = vmul.f32 %v1994, %v1996
        %v1998 = vadd.f32 %v1994, %v1997
        %vm1999 = vweird.f32 %v1994
        %v2000 = vsel %vm1999, %v1994, %v1998
        %v2001 = vmul.f32 %v1987, %v2000
        %v2002 = vmul.f32 %v1989, %v2000
        %v2003 = vmul.f32 %v1991, %v2000
        %v2004 = vmul.f32 %v1993, %v2000
        %v2005 = vsub.f32 %v1980, %v2001
        %v2006 = vsub.f32 %v1981, %v2002
        %v2007 = vsub.f32 %v1982, %v2003
        %v2008 = vsub.f32 %v1983, %v2004
        %v2009 = vmul.f32 %v2005, %v2005
        %v2010 = vmul.f32 %v2006, %v2006
        %v2011 = vmul.f32 %v2007, %v2007
        %v2012 = vmul.f32 %v2008, %v2008
        %2013 = vadd.xlane.f32.xlu0 %v2009
        %v2014 = vpop.xlane.xlu0 %2013
        %2015 = vadd.xlane.f32.xlu0 %v2010
        %v2016 = vpop.xlane.xlu0 %2015
        %2017 = vadd.xlane.f32.xlu0 %v2011
        %v2018 = vpop.xlane.xlu0 %2017
        %2019 = vadd.xlane.f32.xlu0 %v2012
        %v2020 = vpop.xlane.xlu0 %2019
        %v2021 = vmul.f32 %v2014, %v2000
        %v2022 = vmul.f32 %v2016, %v2000
        %v2023 = vmul.f32 %v2018, %v2000
        %v2024 = vmul.f32 %v2020, %v2000
        %v2025 = vadd.f32 %v2021, 1e-12
        %v2026 = vadd.f32 %v2022, 1e-12
        %v2027 = vadd.f32 %v2023, 1e-12
        %v2028 = vadd.f32 %v2024, 1e-12
        %v2029 = vrsqrt.pop %v2025
        %v2030 = vmul.f32 %v2029, %v2025
        %v2031 = vmul.f32 %v2030, %v2029
        %v2032 = vmul.f32 0.5, %v2031
        %v2033 = vsub.f32 1.5, %v2032
        %v2034 = vmul.f32 %v2029, %v2033
        %vm2035 = vweird.f32 %v2025
        %vm2036 = vweird.f32 %v2029
        %vm2037 = vmor %vm2035, %vm2036
        %v2038 = vsel %vm2037, %v2029, %v2034
        %v2039 = vrsqrt.pop %v2026
        %v2040 = vmul.f32 %v2039, %v2026
        %v2041 = vmul.f32 %v2040, %v2039
        %v2042 = vmul.f32 0.5, %v2041
        %v2043 = vsub.f32 1.5, %v2042
        %v2044 = vmul.f32 %v2039, %v2043
        %vm2045 = vweird.f32 %v2026
        %vm2046 = vweird.f32 %v2039
        %vm2047 = vmor %vm2045, %vm2046
        %v2048 = vsel %vm2047, %v2039, %v2044
        %v2049 = vrsqrt.pop %v2027
        %v2050 = vmul.f32 %v2049, %v2027
        %v2051 = vmul.f32 %v2050, %v2049
        %v2052 = vmul.f32 0.5, %v2051
        %v2053 = vsub.f32 1.5, %v2052
        %v2054 = vmul.f32 %v2049, %v2053
        %vm2055 = vweird.f32 %v2027
        %vm2056 = vweird.f32 %v2049
        %vm2057 = vmor %vm2055, %vm2056
        %v2058 = vsel %vm2057, %v2049, %v2054
        %v2059 = vrsqrt.pop %v2028
        %v2060 = vmul.f32 %v2059, %v2028
        %v2061 = vmul.f32 %v2060, %v2059
        %v2062 = vmul.f32 0.5, %v2061
        %v2063 = vsub.f32 1.5, %v2062
        %v2064 = vmul.f32 %v2059, %v2063
        %vm2065 = vweird.f32 %v2028
        %vm2066 = vweird.f32 %v2059
        %vm2067 = vmor %vm2065, %vm2066
        %v2068 = vsel %vm2067, %v2059, %v2064
        %v2069 = vmul.f32 %v2005, %v2038
        %v2070 = vmul.f32 %v2006, %v2048
        %v2071 = vmul.f32 %v2007, %v2058
        %v2072 = vmul.f32 %v2008, %v2068
        %v2074 = vperm.slane %v1984, 0
        %v2076 = vmul.f32 %v2069, %v2074
        %v2077 = vmul.f32 %v2070, %v2074
        %v2078 = vmul.f32 %v2071, %v2074
        %v2079 = vmul.f32 %v2072, %v2074
        %v2081 = vperm.slane %v1985, 0
        %v2083 = vadd.f32 %v2076, %v2081
        %v2084 = vadd.f32 %v2077, %v2081
        %v2085 = vadd.f32 %v2078, %v2081
        %v2086 = vadd.f32 %v2079, %v2081
        %v2087 = vpack.c.bf16 %v2084, %v2083
        %v2088 = vpack.c.bf16 %v2086, %v2085
        %v2089 = vld [vmem:[%s597] sm:$0xff]
        %v2090 = vld [vmem:[%s597 + $0x8] sm:$0xff]
        %v2091 = vld [vmem:[%s597 + $0x10] sm:$0xff]
        %v2092 = vld [vmem:[%s597 + $0x18] sm:$0xff]
        %v2093 = vld [vmem:[%s597 + $0x20] sm:$0xff]
        %v2094 = vld [vmem:[%s597 + $0x28] sm:$0xff]
        %v2095 = vld [vmem:[%s597 + $0x30] sm:$0xff]
        %v2096 = vld [vmem:[%s597 + $0x38] sm:$0xff]
        %v2097 = vld [vmem:[%s597 + $0x40] sm:$0xff]
        %v2098 = vld [vmem:[%s597 + $0x48] sm:$0xff]
        %v2099 = vld [vmem:[%s597 + $0x50] sm:$0xff]
        %v2100 = vld [vmem:[%s597 + $0x58] sm:$0xff]
        %v2101 = vld [vmem:[%s597 + $0x60] sm:$0xff]
        %v2102 = vld [vmem:[%s597 + $0x68] sm:$0xff]
        %v2103 = vld [vmem:[%s597 + $0x70] sm:$0xff]
        %v2104 = vld [vmem:[%s597 + $0x78] sm:$0xff]
        %v2105 = vld [vmem:[%s719] sm:$0x3]
        %v2107 = vperm.slane %v2105, 0
        %v2108 = vperm.slane %v2105, 1
        %v2127 = vunpack.c.l.b16 %v2089
        %v2128 = vunpack.c.h.b16 %v2089
        %v2129 = vunpack.c.l.b16 %v2090
        %v2130 = vunpack.c.h.b16 %v2090
        %v2131 = vunpack.c.l.b16 %v2091
        %v2132 = vunpack.c.h.b16 %v2091
        %v2133 = vunpack.c.l.b16 %v2092
        %v2134 = vunpack.c.h.b16 %v2092
        %v2135 = vunpack.c.l.b16 %v2093
        %v2136 = vunpack.c.h.b16 %v2093
        %v2137 = vunpack.c.l.b16 %v2094
        %v2138 = vunpack.c.h.b16 %v2094
        %v2139 = vunpack.c.l.b16 %v2095
        %v2140 = vunpack.c.h.b16 %v2095
        %v2141 = vunpack.c.l.b16 %v2096
        %v2142 = vunpack.c.h.b16 %v2096
        %v2143 = vunpack.c.l.b16 %v2097
        %v2144 = vunpack.c.h.b16 %v2097
        %v2145 = vunpack.c.l.b16 %v2098
        %v2146 = vunpack.c.h.b16 %v2098
        %v2147 = vunpack.c.l.b16 %v2099
        %v2148 = vunpack.c.h.b16 %v2099
        %v2149 = vunpack.c.l.b16 %v2100
        %v2150 = vunpack.c.h.b16 %v2100
        %v2151 = vunpack.c.l.b16 %v2101
        %v2152 = vunpack.c.h.b16 %v2101
        %v2153 = vunpack.c.l.b16 %v2102
        %v2154 = vunpack.c.h.b16 %v2102
        %v2155 = vunpack.c.l.b16 %v2103
        %v2156 = vunpack.c.h.b16 %v2103
        %v2157 = vunpack.c.l.b16 %v2104
        %v2158 = vunpack.c.h.b16 %v2104
        %v2159 = vpack.c.b16 %v2129, %v2127
        %v2160 = vpack.c.b16 %v2130, %v2128
        %v2161 = vpack.c.b16 %v2133, %v2131
        %v2162 = vpack.c.b16 %v2134, %v2132
        %v2163 = vpack.c.b16 %v2137, %v2135
        %v2164 = vpack.c.b16 %v2138, %v2136
        %v2165 = vpack.c.b16 %v2141, %v2139
        %v2166 = vpack.c.b16 %v2142, %v2140
        %v2167 = vpack.c.b16 %v2145, %v2143
        %v2168 = vpack.c.b16 %v2146, %v2144
        %v2169 = vpack.c.b16 %v2149, %v2147
        %v2170 = vpack.c.b16 %v2150, %v2148
        %v2171 = vpack.c.b16 %v2153, %v2151
        %v2172 = vpack.c.b16 %v2154, %v2152
        %v2173 = vpack.c.b16 %v2157, %v2155
        %v2174 = vpack.c.b16 %v2158, %v2156
        %2191 = vmatpush.bf16.msra.mxu0 %v2173
        %2192 = vmatpush.bf16.msra.mxu0 %v2171
        %2193 = vmatpush.bf16.msra.mxu0 %v2169
        %2194 = vmatpush.bf16.msra.mxu0 %v2167
        %2195 = vmatpush.bf16.msra.mxu0 %v2165
        %2196 = vmatpush.bf16.msra.mxu0 %v2163
        %2197 = vmatpush.bf16.msra.mxu0 %v2161
        %2198 = vmatpush.bf16.msra.mxu0 %v2159
        %2199 = vmatmul.bf16.gmra.mxu0 %v2087
        %v2200 = vpop.f32.mrf.mxu0
        %v2201 = vadd.f32 %v2107, %v2200
        %v2202 = vpop.f32.mrf.mxu0
        %v2203 = vadd.f32 %v2107, %v2202
        %2204 = vmatmul.bf16.gmra.mxu0 %v2088
        %v2205 = vpop.f32.mrf.mxu0
        %v2206 = vadd.f32 %v2107, %v2205
        %v2207 = vpop.f32.mrf.mxu0
        %v2208 = vadd.f32 %v2107, %v2207
        %2209 = vdwg.mxu0
        %2210 = vmatpush.bf16.msra.mxu0 %v2174
        %2211 = vmatpush.bf16.msra.mxu0 %v2172
        %2212 = vmatpush.bf16.msra.mxu0 %v2170
        %2213 = vmatpush.bf16.msra.mxu0 %v2168
        %2214 = vmatpush.bf16.msra.mxu0 %v2166
        %2215 = vmatpush.bf16.msra.mxu0 %v2164
        %2216 = vmatpush.bf16.msra.mxu0 %v2162
        %2217 = vmatpush.bf16.msra.mxu0 %v2160
        %2218 = vmatmul.bf16.gmra.mxu0 %v2087
        %v2219 = vpop.f32.mrf.mxu0
        %v2220 = vadd.f32 %v2108, %v2219
        %v2221 = vpop.f32.mrf.mxu0
        %v2222 = vadd.f32 %v2108, %v2221
        %2223 = vmatmul.bf16.gmra.mxu0 %v2088
        %v2224 = vpop.f32.mrf.mxu0
        %v2225 = vadd.f32 %v2108, %v2224
        %v2226 = vpop.f32.mrf.mxu0
        %v2227 = vadd.f32 %v2108, %v2226
        %2228 = vdwg.mxu0
        %v2229 = vmul.f32 %v2201, 0.5
        %v2230 = vmul.f32 %v2220, 0.5
        %v2231 = vmul.f32 %v2203, 0.5
        %v2232 = vmul.f32 %v2222, 0.5
        %v2233 = vmul.f32 %v2206, 0.5
        %v2234 = vmul.f32 %v2225, 0.5
        %v2235 = vmul.f32 %v2208, 0.5
        %v2236 = vmul.f32 %v2227, 0.5
        %v2237 = vmul.f32 %v2201, 0.044715
        %v2238 = vmul.f32 %v2220, 0.044715
        %v2239 = vmul.f32 %v2203, 0.044715
        %v2240 = vmul.f32 %v2222, 0.044715
        %v2241 = vmul.f32 %v2206, 0.044715
        %v2242 = vmul.f32 %v2225, 0.044715
        %v2243 = vmul.f32 %v2208, 0.044715
        %v2244 = vmul.f32 %v2227, 0.044715
        %v2245 = vmul.f32 %v2237, %v2201
        %v2246 = vmul.f32 %v2238, %v2220
        %v2247 = vmul.f32 %v2239, %v2203
        %v2248 = vmul.f32 %v2240, %v2222
        %v2249 = vmul.f32 %v2241, %v2206
        %v2250 = vmul.f32 %v2242, %v2225
        %v2251 = vmul.f32 %v2243, %v2208
        %v2252 = vmul.f32 %v2244, %v2227
        %v2253 = vmul.f32 %v2245, %v2201
        %v2254 = vmul.f32 %v2246, %v2220
        %v2255 = vmul.f32 %v2247, %v2203
        %v2256 = vmul.f32 %v2248, %v2222
        %v2257 = vmul.f32 %v2249, %v2206
        %v2258 = vmul.f32 %v2250, %v2225
        %v2259 = vmul.f32 %v2251, %v2208
        %v2260 = vmul.f32 %v2252, %v2227
        %v2261 = vadd.f32 %v2201, %v2253
        %v2262 = vadd.f32 %v2220, %v2254
        %v2263 = vadd.f32 %v2203, %v2255
        %v2264 = vadd.f32 %v2222, %v2256
        %v2265 = vadd.f32 %v2206, %v2257
        %v2266 = vadd.f32 %v2225, %v2258
        %v2267 = vadd.f32 %v2208, %v2259
        %v2268 = vadd.f32 %v2227, %v2260
        %v2269 = vmul.f32 %v2261, 0.7978846
        %v2270 = vmul.f32 %v2262, 0.7978846
        %v2271 = vmul.f32 %v2263, 0.7978846
        %v2272 = vmul.f32 %v2264, 0.7978846
        %v2273 = vmul.f32 %v2265, 0.7978846
        %v2274 = vmul.f32 %v2266, 0.7978846
        %v2275 = vmul.f32 %v2267, 0.7978846
        %v2276 = vmul.f32 %v2268, 0.7978846
        %v2277 = vtanh.pop %v2269
        %v2278 = vtanh.pop %v2270
        %v2279 = vtanh.pop %v2271
        %v2280 = vtanh.pop %v2272
        %v2281 = vtanh.pop %v2273
        %v2282 = vtanh.pop %v2274
        %v2283 = vtanh.pop %v2275
        %v2284 = vtanh.pop %v2276
        %v2285 = vadd.f32 %v2277, 1.0
        %v2286 = vadd.f32 %v2278, 1.0
        %v2287 = vadd.f32 %v2279, 1.0
        %v2288 = vadd.f32 %v2280, 1.0
        %v2289 = vadd.f32 %v2281, 1.0
        %v2290 = vadd.f32 %v2282, 1.0
        %v2291 = vadd.f32 %v2283, 1.0
        %v2292 = vadd.f32 %v2284, 1.0
        %v2293 = vmul.f32 %v2229, %v2285
        %v2294 = vmul.f32 %v2230, %v2286
        %v2295 = vmul.f32 %v2231, %v2287
        %v2296 = vmul.f32 %v2232, %v2288
        %v2297 = vmul.f32 %v2233, %v2289
        %v2298 = vmul.f32 %v2234, %v2290
        %v2299 = vmul.f32 %v2235, %v2291
        %v2300 = vmul.f32 %v2236, %v2292
        %v2301 = vpack.c.bf16 %v2295, %v2293
        %v2302 = vpack.c.bf16 %v2296, %v2294
        %v2303 = vpack.c.bf16 %v2299, %v2297
        %v2304 = vpack.c.bf16 %v2300, %v2298
        %v2305 = vld [vmem:[%s607] sm:$0xf]
        %v2306 = vld [vmem:[%s607 + $0x4] sm:$0xf]
        %v2307 = vld [vmem:[%s607 + $0x8] sm:$0xf]
        %v2308 = vld [vmem:[%s607 + $0xc] sm:$0xf]
        %v2309 = vld [vmem:[%s607 + $0x10] sm:$0xf]
        %v2310 = vld [vmem:[%s607 + $0x14] sm:$0xf]
        %v2311 = vld [vmem:[%s607 + $0x18] sm:$0xf]
        %v2312 = vld [vmem:[%s607 + $0x1c] sm:$0xf]
        %v2313 = vld [vmem:[%s607 + $0x20] sm:$0xf]
        %v2314 = vld [vmem:[%s607 + $0x24] sm:$0xf]
        %v2315 = vld [vmem:[%s607 + $0x28] sm:$0xf]
        %v2316 = vld [vmem:[%s607 + $0x2c] sm:$0xf]
        %v2317 = vld [vmem:[%s607 + $0x30] sm:$0xf]
        %v2318 = vld [vmem:[%s607 + $0x34] sm:$0xf]
        %v2319 = vld [vmem:[%s607 + $0x38] sm:$0xf]
        %v2320 = vld [vmem:[%s607 + $0x3c] sm:$0xf]
        %v2321 = vld [vmem:[%s607 + $0x40] sm:$0xf]
        %v2322 = vld [vmem:[%s607 + $0x44] sm:$0xf]
        %v2323 = vld [vmem:[%s607 + $0x48] sm:$0xf]
        %v2324 = vld [vmem:[%s607 + $0x4c] sm:$0xf]
        %v2325 = vld [vmem:[%s607 + $0x50] sm:$0xf]
        %v2326 = vld [vmem:[%s607 + $0x54] sm:$0xf]
        %v2327 = vld [vmem:[%s607 + $0x58] sm:$0xf]
        %v2328 = vld [vmem:[%s607 + $0x5c] sm:$0xf]
        %v2329 = vld [vmem:[%s607 + $0x60] sm:$0xf]
        %v2330 = vld [vmem:[%s607 + $0x64] sm:$0xf]
        %v2331 = vld [vmem:[%s607 + $0x68] sm:$0xf]
        %v2332 = vld [vmem:[%s607 + $0x6c] sm:$0xf]
        %v2333 = vld [vmem:[%s607 + $0x70] sm:$0xf]
        %v2334 = vld [vmem:[%s607 + $0x74] sm:$0xf]
        %v2335 = vld [vmem:[%s607 + $0x78] sm:$0xf]
        %v2336 = vld [vmem:[%s607 + $0x7c] sm:$0xf]
        %v2337 = vld [vmem:[%s722] sm:$0x1]
        %v2339 = vperm.slane %v2337, 0
        %v2373 = vunpack.c.l.b16 %v2305
        %v2374 = vunpack.c.l.b16 %v2306
        %v2375 = vunpack.c.l.b16 %v2307
        %v2376 = vunpack.c.l.b16 %v2308
        %v2377 = vunpack.c.l.b16 %v2309
        %v2378 = vunpack.c.l.b16 %v2310
        %v2379 = vunpack.c.l.b16 %v2311
        %v2380 = vunpack.c.l.b16 %v2312
        %v2381 = vunpack.c.l.b16 %v2313
        %v2382 = vunpack.c.l.b16 %v2314
        %v2383 = vunpack.c.l.b16 %v2315
        %v2384 = vunpack.c.l.b16 %v2316
        %v2385 = vunpack.c.l.b16 %v2317
        %v2386 = vunpack.c.l.b16 %v2318
        %v2387 = vunpack.c.l.b16 %v2319
        %v2388 = vunpack.c.l.b16 %v2320
        %v2389 = vunpack.c.l.b16 %v2321
        %v2390 = vunpack.c.l.b16 %v2322
        %v2391 = vunpack.c.l.b16 %v2323
        %v2392 = vunpack.c.l.b16 %v2324
        %v2393 = vunpack.c.l.b16 %v2325
        %v2394 = vunpack.c.l.b16 %v2326
        %v2395 = vunpack.c.l.b16 %v2327
        %v2396 = vunpack.c.l.b16 %v2328
        %v2397 = vunpack.c.l.b16 %v2329
        %v2398 = vunpack.c.l.b16 %v2330
        %v2399 = vunpack.c.l.b16 %v2331
        %v2400 = vunpack.c.l.b16 %v2332
        %v2401 = vunpack.c.l.b16 %v2333
        %v2402 = vunpack.c.l.b16 %v2334
        %v2403 = vunpack.c.l.b16 %v2335
        %v2404 = vunpack.c.l.b16 %v2336
        %v2405 = vpack.c.b16 %v2374, %v2373
        %v2406 = vpack.c.b16 %v2376, %v2375
        %v2407 = vpack.c.b16 %v2378, %v2377
        %v2408 = vpack.c.b16 %v2380, %v2379
        %v2409 = vpack.c.b16 %v2382, %v2381
        %v2410 = vpack.c.b16 %v2384, %v2383
        %v2411 = vpack.c.b16 %v2386, %v2385
        %v2412 = vpack.c.b16 %v2388, %v2387
        %v2413 = vpack.c.b16 %v2390, %v2389
        %v2414 = vpack.c.b16 %v2392, %v2391
        %v2415 = vpack.c.b16 %v2394, %v2393
        %v2416 = vpack.c.b16 %v2396, %v2395
        %v2417 = vpack.c.b16 %v2398, %v2397
        %v2418 = vpack.c.b16 %v2400, %v2399
        %v2419 = vpack.c.b16 %v2402, %v2401
        %v2420 = vpack.c.b16 %v2404, %v2403
        %2437 = vmatpush.bf16.msra.mxu0 %v2412
        %2438 = vmatpush.bf16.msra.mxu0 %v2411
        %2439 = vmatpush.bf16.msra.mxu0 %v2410
        %2440 = vmatpush.bf16.msra.mxu0 %v2409
        %2441 = vmatpush.bf16.msra.mxu0 %v2408
        %2442 = vmatpush.bf16.msra.mxu0 %v2407
        %2443 = vmatpush.bf16.msra.mxu0 %v2406
        %2444 = vmatpush.bf16.msra.mxu0 %v2405
        %2445 = vmatmul.bf16.gmra.mxu0 %v2301
        %v2446 = vpop.f32.mrf.mxu0
        %v2447 = vadd.f32 %v2339, %v2446
        %v2448 = vpop.f32.mrf.mxu0
        %v2449 = vadd.f32 %v2339, %v2448
        %2450 = vmatmul.bf16.gmra.mxu0 %v2303
        %v2451 = vpop.f32.mrf.mxu0
        %v2452 = vadd.f32 %v2339, %v2451
        %v2453 = vpop.f32.mrf.mxu0
        %v2454 = vadd.f32 %v2339, %v2453
        %2455 = vdwg.mxu0
        %2456 = vmatpush.bf16.msra.mxu0 %v2420
        %2457 = vmatpush.bf16.msra.mxu0 %v2419
        %2458 = vmatpush.bf16.msra.mxu0 %v2418
        %2459 = vmatpush.bf16.msra.mxu0 %v2417
        %2460 = vmatpush.bf16.msra.mxu0 %v2416
        %2461 = vmatpush.bf16.msra.mxu0 %v2415
        %2462 = vmatpush.bf16.msra.mxu0 %v2414
        %2463 = vmatpush.bf16.msra.mxu0 %v2413
        %2464 = vmatmul.bf16.gmra.mxu0 %v2302
        %v2465 = vpop.f32.mrf.mxu0
        %v2466 = vadd.f32 %v2447, %v2465
        %v2467 = vpop.f32.mrf.mxu0
        %v2468 = vadd.f32 %v2449, %v2467
        %2469 = vmatmul.bf16.gmra.mxu0 %v2304
        %v2470 = vpop.f32.mrf.mxu0
        %v2471 = vadd.f32 %v2452, %v2470
        %v2472 = vpop.f32.mrf.mxu0
        %v2473 = vadd.f32 %v2454, %v2472
        %2474 = vdwg.mxu0
        %v2475 = vadd.f32 %v2083, %v2466
        %v2476 = vadd.f32 %v2084, %v2468
        %v2477 = vadd.f32 %v2085, %v2471
        %v2478 = vadd.f32 %v2086, %v2473
        %v2479 = vld [vmem:[%s725] sm:$0x1]
        %v2480 = vld [vmem:[%s728] sm:$0x1]
        %2481 = vadd.xlane.f32.xlu0 %v2475
        %v2482 = vpop.xlane.xlu0 %2481
        %2483 = vadd.xlane.f32.xlu0 %v2476
        %v2484 = vpop.xlane.xlu0 %2483
        %2485 = vadd.xlane.f32.xlu0 %v2477
        %v2486 = vpop.xlane.xlu0 %2485
        %2487 = vadd.xlane.f32.xlu0 %v2478
        %v2488 = vpop.xlane.xlu0 %2487
        %v2489 = vmul.f32 %v2482, %v2000
        %v2490 = vmul.f32 %v2484, %v2000
        %v2491 = vmul.f32 %v2486, %v2000
        %v2492 = vmul.f32 %v2488, %v2000
        %v2493 = vsub.f32 %v2475, %v2489
        %v2494 = vsub.f32 %v2476, %v2490
        %v2495 = vsub.f32 %v2477, %v2491
        %v2496 = vsub.f32 %v2478, %v2492
        %v2497 = vmul.f32 %v2493, %v2493
        %v2498 = vmul.f32 %v2494, %v2494
        %v2499 = vmul.f32 %v2495, %v2495
        %v2500 = vmul.f32 %v2496, %v2496
        %2501 = vadd.xlane.f32.xlu0 %v2497
        %v2502 = vpop.xlane.xlu0 %2501
        %2503 = vadd.xlane.f32.xlu0 %v2498
        %v2504 = vpop.xlane.xlu0 %2503
        %2505 = vadd.xlane.f32.xlu0 %v2499
        %v2506 = vpop.xlane.xlu0 %2505
        %2507 = vadd.xlane.f32.xlu0 %v2500
        %v2508 = vpop.xlane.xlu0 %2507
        %v2509 = vmul.f32 %v2502, %v2000
        %v2510 = vmul.f32 %v2504, %v2000
        %v2511 = vmul.f32 %v2506, %v2000
        %v2512 = vmul.f32 %v2508, %v2000
        %v2513 = vadd.f32 %v2509, 1e-12
        %v2514 = vadd.f32 %v2510, 1e-12
        %v2515 = vadd.f32 %v2511, 1e-12
        %v2516 = vadd.f32 %v2512, 1e-12
        %v2517 = vrsqrt.pop %v2513
        %v2518 = vmul.f32 %v2517, %v2513
        %v2519 = vmul.f32 %v2518, %v2517
        %v2520 = vmul.f32 0.5, %v2519
        %v2521 = vsub.f32 1.5, %v2520
        %v2522 = vmul.f32 %v2517, %v2521
        %vm2523 = vweird.f32 %v2513
        %vm2524 = vweird.f32 %v2517
        %vm2525 = vmor %vm2523, %vm2524
        %v2526 = vsel %vm2525, %v2517, %v2522
        %v2527 = vrsqrt.pop %v2514
        %v2528 = vmul.f32 %v2527, %v2514
        %v2529 = vmul.f32 %v2528, %v2527
        %v2530 = vmul.f32 0.5, %v2529
        %v2531 = vsub.f32 1.5, %v2530
        %v2532 = vmul.f32 %v2527, %v2531
        %vm2533 = vweird.f32 %v2514
        %vm2534 = vweird.f32 %v2527
        %vm2535 = vmor %vm2533, %vm2534
        %v2536 = vsel %vm2535, %v2527, %v2532
        %v2537 = vrsqrt.pop %v2515
        %v2538 = vmul.f32 %v2537, %v2515
        %v2539 = vmul.f32 %v2538, %v2537
        %v2540 = vmul.f32 0.5, %v2539
        %v2541 = vsub.f32 1.5, %v2540
        %v2542 = vmul.f32 %v2537, %v2541
        %vm2543 = vweird.f32 %v2515
        %vm2544 = vweird.f32 %v2537
        %vm2545 = vmor %vm2543, %vm2544
        %v2546 = vsel %vm2545, %v2537, %v2542
        %v2547 = vrsqrt.pop %v2516
        %v2548 = vmul.f32 %v2547, %v2516
        %v2549 = vmul.f32 %v2548, %v2547
        %v2550 = vmul.f32 0.5, %v2549
        %v2551 = vsub.f32 1.5, %v2550
        %v2552 = vmul.f32 %v2547, %v2551
        %vm2553 = vweird.f32 %v2516
        %vm2554 = vweird.f32 %v2547
        %vm2555 = vmor %vm2553, %vm2554
        %v2556 = vsel %vm2555, %v2547, %v2552
        %v2557 = vmul.f32 %v2493, %v2526
        %v2558 = vmul.f32 %v2494, %v2536
        %v2559 = vmul.f32 %v2495, %v2546
        %v2560 = vmul.f32 %v2496, %v2556
        %v2562 = vperm.slane %v2479, 0
        %v2564 = vmul.f32 %v2557, %v2562
        %v2565 = vmul.f32 %v2558, %v2562
        %v2566 = vmul.f32 %v2559, %v2562
        %v2567 = vmul.f32 %v2560, %v2562
        %v2569 = vperm.slane %v2480, 0
        %v2571 = vadd.f32 %v2564, %v2569
        %v2572 = vadd.f32 %v2565, %v2569
        %v2573 = vadd.f32 %v2566, %v2569
        %v2574 = vadd.f32 %v2567, %v2569
        %v2575 = vpack.c.bf16 %v2571, %v2571
        %v2576 = vpack.c.bf16 %v2572, %v2572
        %v2577 = vpack.c.bf16 %v2573, %v2573
        %v2578 = vpack.c.bf16 %v2574, %v2574
        %2579 = vst [vmem:[%s16] sm:$0xf] %v2575
        %2580 = vst [vmem:[%s16 + $0x4] sm:$0xf] %v2576
        %2581 = vst [vmem:[%s16 + $0x8] sm:$0xf] %v2577
        %2582 = vst [vmem:[%s16 + $0xc] sm:$0xf] %v2578
        // Predicated region
        $region97: #{bert_snli_forward.2} parent=83 // pred_check
          %p2583 = pneg %p442
        $region98: #{bert_snli_forward.2} parent=83 // pred_check_branch
          %2585 = sbr.rel (%p2583) target = $region100
        $region99: #{bert_snli_forward.2} parent=83 // pred_region
          _
        $region100: #{bert_snli_forward.2} parent=83 // pred_fallthru
          _
        // Predicated region
        $region101: #{bert_snli_forward.2} parent=83 // pred_check
          %p2586 = pneg %p442
        $region102: #{bert_snli_forward.2} parent=83 // pred_check_branch
          %2588 = sbr.rel (%p2586) target = $region104
        $region103: #{bert_snli_forward.2} parent=83 // pred_region
          _
        $region104: #{bert_snli_forward.2} parent=83 // pred_fallthru
          _
      $region84: #{bert_snli_forward.2} parent=5 // pred_fallthru
        _
      %p2589 = scmp.le.s32.totalorder 2, %s28
      // Predicated region
      $region105: #{bert_snli_forward.2} parent=5 // pred_check
        %p2590 = pneg %p2589
      $region106: #{bert_snli_forward.2} parent=5 // pred_check_branch
        %2592 = sbr.rel (%p2590) target = $region108
      $region107: #{bert_snli_forward.2} parent=5 // pred_region
        %s2593 = ssub.s32 %s28, 2
      $region108: #{bert_snli_forward.2} parent=5 // pred_fallthru
        _
    $region6: #{bert_snli_forward.2} parent=1 // loop_footer
      %s32 = sadd.s32 1, %s28
    $region7: #{bert_snli_forward.2} parent=1 // loop_footer_branch
      %27 = sbr.rel target = $region3
    $region8: #{bert_snli_forward.2} parent=1 // loop_exit
      _
    %2594 = vsyncpa [#allocation3], 1
    %s2595 = scalar_lea.sflag [#allocation3], 1
    %2596 = vsyncpa %s2595, 1
    %2597 = vsyncpa [#allocation5], 1
    %s2598 = scalar_lea.sflag [#allocation5], 1
    %2599 = vsyncpa %s2598, 1

</llo_original>
